<compile_context>
chip_gen: v6e
topology: v6e:2x2x1
jax: 0.10.0
libtpu: 0.0.40
codegen_flags: <defaults>
</compile_context>

<pallas_src>
import numpy as np
import jax
import jax.numpy as jnp
from jax.experimental import pallas as pl
from jax.experimental.pallas import tpu as pltpu

HIGHEST = jax.lax.Precision.HIGHEST   # used only by the pure-JAX reference

MAIN_PARAM_ORDER = (
    "wp1", "bp1", "w3", "b3",
    "wp2x", "wp2a", "bp2", "w5", "b5",
    "wp3a", "wp3b", "bp3", "w7", "b7",
    "wp4a", "wp4b", "bp4", "w9", "b9",
    "wp5a", "wp5b", "bp5",
)


# ----------------------------------------------------------------------------
# Pass 1: dense temporal block -> x_end tiles + per-tile channel sums (SE pool)
# ----------------------------------------------------------------------------
def _dense_tblock_main_kernel(
        x_ref,
        wp1_ref, bp1_ref, w3_ref, b3_ref,
        wp2x_ref, wp2a_ref, bp2_ref, w5_ref, b5_ref,
        wp3a_ref, wp3b_ref, bp3_ref, w7_ref, b7_ref,
        wp4a_ref, wp4b_ref, bp4_ref, w9_ref, b9_ref,
        wp5a_ref, wp5b_ref, bp5_ref,
        xend_ref, psum_ref):
    F, C, HWt = x_ref.shape
    N = F * HWt

    def relu(v):
        return jnp.maximum(v, 0.0)

    def pw(parts, b_ref):
        # 1x1x1 Conv3d in (channels, pixels) layout:  out = sum_i W_i^T @ a_i + b.
        # torch.cat along channels is realized as the weight-row split `parts`.
        acc = None
        for w_ref, a in parts:
            y = jnp.dot(w_ref[...], a, preferred_element_type=jnp.float32)
            acc = y if acc is None else acc + y
        return acc + b_ref[...]                      # bias added once (Cout, 1)

    def tconv(w_ref, b_ref, a, dil, pad_l, pad_r):
        # (K,1,1) Conv3d with padding='same'.  a: (Cin, F*HWt).
        # Zero-pad along frames (lane axis), then one batched matmul per tap
        # against an aligned lane-shifted slice.
        K = w_ref.shape[0]
        cin = a.shape[0]
        a_pad = jnp.concatenate(
            [jnp.zeros((cin, pad_l * HWt), jnp.float32),
             a,
             jnp.zeros((cin, pad_r * HWt), jnp.float32)], axis=1)
        acc = None
        for k in range(K):
            off = k * dil * HWt
            y = jnp.dot(w_ref[k], a_pad[:, off:off + N],
                        preferred_element_type=jnp.float32)
            acc = y if acc is None else acc + y
        return acc + b_ref[...]

    # (F, C, HWt) tile -> (C, F*HWt): each frame slab already has the right
    # (C sublanes, pixels lanes) layout; lane concatenation is a plain copy.
    x_t = jnp.concatenate([x_ref[f] for f in range(F)], axis=1)

    p1 = relu(pw([(wp1_ref, x_t)], bp1_ref))                              # (C/2, N)
    x1 = relu(tconv(w3_ref, b3_ref, p1, dil=1, pad_l=1, pad_r=1))          # (C/4, N)
    p2 = relu(pw([(wp2x_ref, x_t), (wp2a_ref, x1)], bp2_ref))              # cat(x, x1)
    x3 = relu(tconv(w5_ref, b5_ref, p2, dil=2, pad_l=2, pad_r=2))
    p3 = relu(pw([(wp3a_ref, x1), (wp3b_ref, x3)], bp3_ref))               # cat(x1, x3)
    x5 = relu(tconv(w7_ref, b7_ref, p3, dil=2, pad_l=3, pad_r=3))
    p4 = relu(pw([(wp4a_ref, x3), (wp4b_ref, x5)], bp4_ref))               # cat(x3, x5)
    x7 = relu(tconv(w9_ref, b9_ref, p4, dil=2, pad_l=4, pad_r=4))
    x_end = relu(pw([(wp5a_ref, x5), (wp5b_ref, x7)], bp5_ref))            # (C, N)

    # Store back in (F, C, HWt) block layout (lane-dense stores, HWt on lanes).
    for f in range(F):
        xend_ref[f] = x_end[:, f * HWt:(f + 1) * HWt]
    # Per-tile channel sums for the SE global average pool.
    psum_ref[0] = jnp.sum(x_end, axis=1, keepdims=True)                    # (C, 1)


# ----------------------------------------------------------------------------
# Pass 2: SE gate from pooled mean, applied per tile
# ----------------------------------------------------------------------------
def _make_se_gate_kernel(inv_count):
    def kernel(psum_ref, wfc1_ref, wfc2_ref, x_ref, o_ref):
        F = x_ref.shape[0]
        mean = jnp.sum(psum_ref[...], axis=0) * inv_count                  # (C, 1)
        h = jnp.maximum(jnp.dot(wfc1_ref[...], mean,
                                preferred_element_type=jnp.float32), 0.0)  # (C/r, 1)
        g = jnp.dot(wfc2_ref[...], h, preferred_element_type=jnp.float32)  # (C, 1)
        gate = 1.0 / (1.0 + jnp.exp(-g))
        for f in range(F):
            o_ref[f] = x_ref[f] * gate        # (C, HWt) * (C, 1), lane broadcast
    return kernel


# ----------------------------------------------------------------------------
# Wrapper
# ----------------------------------------------------------------------------
def _pick_hw_tile(hw, max_tile=1024):
    # <=1024 pixel rows per tile: big enough to amortize per-step overhead on
    # v5e/v6e, small enough to stay well inside v7x's 64 MiB VMEM.
    if hw <= max_tile:
        return hw
    for cand in (1024, 896, 768, 640, 512, 384, 256, 128):
        if hw % cand == 0:
            return cand
    return hw   # no nice divisor: fall back to full residency


def _const_spec(a):
    zeros = (0,) * a.ndim
    return pl.BlockSpec(a.shape, lambda *_args, _z=zeros: _z)


def _prep_params(params):
    """Transpose / split weights into the kernel's (Cout, Cin) column layout."""
    f32 = lambda a: jnp.asarray(a, jnp.float32)
    t = lambda w: f32(w).T
    col = lambda b: f32(b).reshape(-1, 1)
    tk = lambda w: jnp.transpose(f32(w), (0, 2, 1))        # (K, Cin, Cout)->(K, Cout, Cin)

    C = params["wp1"].shape[0]
    C4 = params["w3"].shape[2]
    wp2, wp3 = f32(params["wp2"]), f32(params["wp3"])
    wp4, wp5 = f32(params["wp4"]), f32(params["wp5"])

    return {
        "wp1": t(params["wp1"]), "bp1": col(params["bp1"]),
        "w3": tk(params["w3"]), "b3": col(params["b3"]),
        "wp2x": wp2[:C].T, "wp2a": wp2[C:].T, "bp2": col(params["bp2"]),
        "w5": tk(params["w5"]), "b5": col(params["b5"]),
        "wp3a": wp3[:C4].T, "wp3b": wp3[C4:].T, "bp3": col(params["bp3"]),
        "w7": tk(params["w7"]), "b7": col(params["b7"]),
        "wp4a": wp4[:C4].T, "wp4b": wp4[C4:].T, "bp4": col(params["bp4"]),
        "w9": tk(params["w9"]), "b9": col(params["b9"]),
        "wp5a": wp5[:C4].T, "wp5b": wp5[C4:].T, "bp5": col(params["bp5"]),
        "wfc1": t(params["wfc1"]), "wfc2": t(params["wfc2"]),
    }


@jax.jit
def dense_tblock_forward(x_fchw, params):
    F, C, H, W = x_fchw.shape
    HW = H * W
    HWt = _pick_hw_tile(HW)
    assert HW % HWt == 0
    T = HW // HWt

    # Free reshape only — no HBM transpose in the wrapper.
    x = x_fchw.reshape(F, C, HW).astype(jnp.float32)
    kp = _prep_params(params)

    cparams = pltpu.CompilerParams(
        dimension_semantics=("parallel",),
        vmem_limit_bytes=32 * 1024 * 1024,
    )

    main_in = [x] + [kp[name] for name in MAIN_PARAM_ORDER]
    main_specs = [pl.BlockSpec((F, C, HWt), lambda t: (0, 0, t))]
    main_specs += [_const_spec(kp[name]) for name in MAIN_PARAM_ORDER]

    xend, psums = pl.pallas_call(
        _dense_tblock_main_kernel,
        grid=(T,),
        in_specs=main_specs,
        out_specs=(pl.BlockSpec((F, C, HWt), lambda t: (0, 0, t)),
                   pl.BlockSpec((1, C, 1), lambda t: (t, 0, 0))),
        out_shape=(jax.ShapeDtypeStruct((F, C, HW), jnp.float32),
                   jax.ShapeDtypeStruct((T, C, 1), jnp.float32)),
        compiler_params=cparams,
    )(*main_in)

    gate_kernel = _make_se_gate_kernel(1.0 / float(F * HW))
    out = pl.pallas_call(
        gate_kernel,
        grid=(T,),
        in_specs=[_const_spec(psums), _const_spec(kp["wfc1"]),
                  _const_spec(kp["wfc2"]),
                  pl.BlockSpec((F, C, HWt), lambda t: (0, 0, t))],
        out_specs=pl.BlockSpec((F, C, HWt), lambda t: (0, 0, t)),
        out_shape=jax.ShapeDtypeStruct((F, C, HW), jnp.float32),
        compiler_params=cparams,
    )(psums, kp["wfc1"], kp["wfc2"], xend)

    return out.reshape(F, C, H, W)


# ----------------------------------------------------------------------------
# Parameter init + pure-JAX reference (for the self-test)
# ----------------------------------------------------------------------------
def init_params(key, C, reduce_ratio=4, se_ratio=16):
    C2 = C // 2
    C4 = C // reduce_ratio
    shapes = {
        "wp1": (C, C2), "bp1": (1, C2),
        "w3": (3, C2, C4), "b3": (1, C4),
        "wp2": (C + C4, C2), "bp2": (1, C2),
        "w5": (3, C2, C4), "b5": (1, C4),
        "wp3": (2 * C4, C2), "bp3": (1, C2),
        "w7": (4, C2, C4), "b7": (1, C4),
        "wp4": (2 * C4, C2), "bp4": (1, C2),
        "w9": (5, C2, C4), "b9": (1, C4),
        "wp5": (2 * C4, C), "bp5": (1, C),
        "wfc1": (C, C // se_ratio), "wfc2": (C // se_ratio, C),   # SE fc, bias=False
    }
    params = {}
    keys = jax.random.split(key, len(shapes))
    for k_rng, (name, shp) in zip(keys, sorted(shapes.items())):
        scale = 0.05 if name.startswith("b") else 0.2
        params[name] = scale * jax.random.normal(k_rng, shp, jnp.float32)
    return params


def ref_forward(x_fchw, p):
    """Pure-JAX reference (f32 HIGHEST precision, lax.conv for temporal convs)."""
    F, C, H, W = x_fchw.shape
    a = jnp.transpose(x_fchw, (0, 2, 3, 1)).reshape(F, H * W, C)
    relu = jax.nn.relu

    def pw(v, w, b):
        return jnp.einsum("fpc,cd->fpd", v, w, precision=HIGHEST) + b.reshape(1, 1, -1)

    def tconv(v, w, b, dil, pad):
        K, _, cout = w.shape
        lhs = jnp.transpose(v, (1, 2, 0))          # (HW, Cin, F)
        rhs = jnp.transpose(w, (2, 1, 0))          # (Cout, Cin, K)
        out = jax.lax.conv_general_dilated(
            lhs, rhs, window_strides=(1,), padding=[(pad, pad)],
            rhs_dilation=(dil,), dimension_numbers=("NCH", "OIH", "NCH"),
            precision=HIGHEST)
        out = out + b.reshape(1, cout, 1)
        return jnp.transpose(out, (2, 0, 1))       # (F, HW, Cout)

    x1 = relu(tconv(relu(pw(a, p["wp1"], p["bp1"])), p["w3"], p["b3"], 1, 1))
    x2 = jnp.concatenate([a, x1], axis=-1)
    x3 = relu(tconv(relu(pw(x2, p["wp2"], p["bp2"])), p["w5"], p["b5"], 2, 2))
    x4 = jnp.concatenate([x1, x3], axis=-1)
    x5 = relu(tconv(relu(pw(x4, p["wp3"], p["bp3"])), p["w7"], p["b7"], 2, 3))
    x6 = jnp.concatenate([x3, x5], axis=-1)
    x7 = relu(tconv(relu(pw(x6, p["wp4"], p["bp4"])), p["w9"], p["b9"], 2, 4))
    x8 = jnp.concatenate([x5, x7], axis=-1)
    xe = relu(pw(x8, p["wp5"], p["bp5"]))
    y = jnp.mean(xe, axis=(0, 1))                  # (C,)
    y = relu(y @ p["wfc1"])
    y = jax.nn.sigmoid(y @ p["wfc2"])
    xe = xe * y.reshape(1, 1, C)
    return jnp.transpose(xe.reshape(F, H, W, C), (0, 3, 1, 2))


if __name__ == "__main__":
    key = jax.random.PRNGKey(0)
    kx, kp = jax.random.split(key)
    # in_channel=32 so SE hidden = 32 // 16 = 2 is non-degenerate.
    F, C, H, W = 8, 32, 8, 8
    x = jax.random.normal(kx, (F, C, H, W), jnp.float32)
    params = init_params(kp, C)

    out = jax.block_until_ready(dense_tblock_forward(x, params))
    assert out.shape == (F, C, H, W), out.shape

    # Kernel uses default (bf16-input) MXU precision per the perf review; the
    # reference is f32 HIGHEST, so use a tolerance that covers bf16 rounding
    # through the 5 matmul stages while still catching structural bugs.
    ref = ref_forward(x, params)
    np.testing.assert_allclose(np.asarray(out), np.asarray(ref), rtol=3e-2, atol=3e-2)
    print("KERNEL_OK")
</pallas_src>

<mosaic_0001>
module attributes {stable_mosaic.version = 11 : i64} {
  func.func @kernel(%arg0: i32, %arg1: memref<1x32x1xf32, #tpu.memory_space<vmem>>, %arg2: memref<2x32xf32, #tpu.memory_space<vmem>>, %arg3: memref<32x2xf32, #tpu.memory_space<vmem>>, %arg4: memref<8x32x64xf32, #tpu.memory_space<vmem>>, %arg5: memref<8x32x64xf32, #tpu.memory_space<vmem>>) attributes {dimension_semantics = [#tpu.dimension_semantics<parallel>], iteration_bounds = array<i64: 1>, scalar_prefetch = 0 : i64, scratch_operands = 0 : i64, tpu.core_type = #tpu.core_type<tc>, window_params = [{pipeline_mode = #tpu.pipeline_mode<synchronous>, transform_indices = @transform_0, window_bounds = array<i64: 1, 32, 1>}, {pipeline_mode = #tpu.pipeline_mode<synchronous>, transform_indices = @transform_1, window_bounds = array<i64: 2, 32>}, {pipeline_mode = #tpu.pipeline_mode<synchronous>, transform_indices = @transform_2, window_bounds = array<i64: 32, 2>}, {transform_indices = @transform_3, window_bounds = array<i64: 8, 32, 64>}, {transform_indices = @transform_4, window_bounds = array<i64: 8, 32, 64>}]} {
    %c0 = arith.constant 0 : index
    %c0_0 = arith.constant 0 : index
    %c0_1 = arith.constant 0 : index
    %0 = vector.load %arg1[%c0, %c0_0, %c0_1] : memref<1x32x1xf32, #tpu.memory_space<vmem>>, vector<1x32x1xf32>
    %cst = arith.constant dense<0.000000e+00> : vector<32x1xf32>
    %1 = vector.multi_reduction <add>, %0, %cst [0] : vector<1x32x1xf32> to vector<32x1xf32>
    %cst_2 = arith.constant 0.001953125 : f32
    %2 = vector.broadcast %cst_2 : f32 to vector<32x1xf32>
    %3 = arith.mulf %1, %2 : vector<32x1xf32>
    %c0_3 = arith.constant 0 : index
    %c0_4 = arith.constant 0 : index
    %4 = vector.load %arg2[%c0_3, %c0_4] : memref<2x32xf32, #tpu.memory_space<vmem>>, vector<2x32xf32>
    %cst_5 = arith.constant dense<0.000000e+00> : vector<2x1xf32>
    %5 = tpu.matmul %4, %3, %cst_5 {dimension_numbers = #tpu.dot_dimension_numbers<[1], [0], [0], [1], [0, 0, 1, 1], [], []>} : vector<2x32xf32>, vector<32x1xf32>, vector<2x1xf32> -> vector<2x1xf32>
    %cst_6 = arith.constant 0.000000e+00 : f32
    %6 = vector.broadcast %cst_6 : f32 to vector<2x1xf32>
    %7 = arith.maximumf %5, %6 : vector<2x1xf32>
    %c0_7 = arith.constant 0 : index
    %c0_8 = arith.constant 0 : index
    %8 = vector.load %arg3[%c0_7, %c0_8] : memref<32x2xf32, #tpu.memory_space<vmem>>, vector<32x2xf32>
    %cst_9 = arith.constant dense<0.000000e+00> : vector<32x1xf32>
    %9 = tpu.matmul %8, %7, %cst_9 {dimension_numbers = #tpu.dot_dimension_numbers<[1], [0], [0], [1], [0, 0, 1, 1], [], []>} : vector<32x2xf32>, vector<2x1xf32>, vector<32x1xf32> -> vector<32x1xf32>
    %cst_10 = arith.constant 0.000000e+00 : f32
    %10 = vector.broadcast %cst_10 : f32 to vector<32x1xf32>
    %11 = arith.subf %10, %9 : vector<32x1xf32>
    %12 = math.exp %11 : vector<32x1xf32>
    %cst_11 = arith.constant 1.000000e+00 : f32
    %13 = vector.broadcast %cst_11 : f32 to vector<32x1xf32>
    %14 = arith.addf %13, %12 : vector<32x1xf32>
    %cst_12 = arith.constant 1.000000e+00 : f32
    %15 = vector.broadcast %cst_12 : f32 to vector<32x1xf32>
    %16 = arith.divf %15, %14 : vector<32x1xf32>
    %c0_13 = arith.constant 0 : index
    %c0_14 = arith.constant 0 : index
    %c0_15 = arith.constant 0 : index
    %17 = vector.load %arg4[%c0_13, %c0_14, %c0_15] : memref<8x32x64xf32, #tpu.memory_space<vmem>>, vector<1x32x64xf32>
    %18 = vector.shape_cast %17 : vector<1x32x64xf32> to vector<32x64xf32>
    %19 = vector.broadcast %16 : vector<32x1xf32> to vector<32x64xf32>
    %20 = arith.mulf %18, %19 : vector<32x64xf32>
    %c0_16 = arith.constant 0 : index
    %c0_17 = arith.constant 0 : index
    %c0_18 = arith.constant 0 : index
    %21 = vector.load %arg5[%c0_16, %c0_17, %c0_18] : memref<8x32x64xf32, #tpu.memory_space<vmem>>, vector<1x32x64xf32>
    %22 = vector.shape_cast %21 : vector<1x32x64xf32> to vector<32x64xf32>
    %23 = vector.shape_cast %20 : vector<32x64xf32> to vector<1x32x64xf32>
    tpu.vector_store %arg5[%c0_16, %c0_17, %c0_18], %23 {strides = array<i32>} : memref<8x32x64xf32, #tpu.memory_space<vmem>>, vector<1x32x64xf32>,
    %c1 = arith.constant 1 : index
    %c0_19 = arith.constant 0 : index
    %c0_20 = arith.constant 0 : index
    %24 = vector.load %arg4[%c1, %c0_19, %c0_20] : memref<8x32x64xf32, #tpu.memory_space<vmem>>, vector<1x32x64xf32>
    %25 = vector.shape_cast %24 : vector<1x32x64xf32> to vector<32x64xf32>
    %26 = vector.broadcast %16 : vector<32x1xf32> to vector<32x64xf32>
    %27 = arith.mulf %25, %26 : vector<32x64xf32>
    %c1_21 = arith.constant 1 : index
    %c0_22 = arith.constant 0 : index
    %c0_23 = arith.constant 0 : index
    %28 = vector.load %arg5[%c1_21, %c0_22, %c0_23] : memref<8x32x64xf32, #tpu.memory_space<vmem>>, vector<1x32x64xf32>
    %29 = vector.shape_cast %28 : vector<1x32x64xf32> to vector<32x64xf32>
    %30 = vector.shape_cast %27 : vector<32x64xf32> to vector<1x32x64xf32>
    tpu.vector_store %arg5[%c1_21, %c0_22, %c0_23], %30 {strides = array<i32>} : memref<8x32x64xf32, #tpu.memory_space<vmem>>, vector<1x32x64xf32>,
    %c2 = arith.constant 2 : index
    %c0_24 = arith.constant 0 : index
    %c0_25 = arith.constant 0 : index
    %31 = vector.load %arg4[%c2, %c0_24, %c0_25] : memref<8x32x64xf32, #tpu.memory_space<vmem>>, vector<1x32x64xf32>
    %32 = vector.shape_cast %31 : vector<1x32x64xf32> to vector<32x64xf32>
    %33 = vector.broadcast %16 : vector<32x1xf32> to vector<32x64xf32>
    %34 = arith.mulf %32, %33 : vector<32x64xf32>
    %c2_26 = arith.constant 2 : index
    %c0_27 = arith.constant 0 : index
    %c0_28 = arith.constant 0 : index
    %35 = vector.load %arg5[%c2_26, %c0_27, %c0_28] : memref<8x32x64xf32, #tpu.memory_space<vmem>>, vector<1x32x64xf32>
    %36 = vector.shape_cast %35 : vector<1x32x64xf32> to vector<32x64xf32>
    %37 = vector.shape_cast %34 : vector<32x64xf32> to vector<1x32x64xf32>
    tpu.vector_store %arg5[%c2_26, %c0_27, %c0_28], %37 {strides = array<i32>} : memref<8x32x64xf32, #tpu.memory_space<vmem>>, vector<1x32x64xf32>,
    %c3 = arith.constant 3 : index
    %c0_29 = arith.constant 0 : index
    %c0_30 = arith.constant 0 : index
    %38 = vector.load %arg4[%c3, %c0_29, %c0_30] : memref<8x32x64xf32, #tpu.memory_space<vmem>>, vector<1x32x64xf32>
    %39 = vector.shape_cast %38 : vector<1x32x64xf32> to vector<32x64xf32>
    %40 = vector.broadcast %16 : vector<32x1xf32> to vector<32x64xf32>
    %41 = arith.mulf %39, %40 : vector<32x64xf32>
    %c3_31 = arith.constant 3 : index
    %c0_32 = arith.constant 0 : index
    %c0_33 = arith.constant 0 : index
    %42 = vector.load %arg5[%c3_31, %c0_32, %c0_33] : memref<8x32x64xf32, #tpu.memory_space<vmem>>, vector<1x32x64xf32>
    %43 = vector.shape_cast %42 : vector<1x32x64xf32> to vector<32x64xf32>
    %44 = vector.shape_cast %41 : vector<32x64xf32> to vector<1x32x64xf32>
    tpu.vector_store %arg5[%c3_31, %c0_32, %c0_33], %44 {strides = array<i32>} : memref<8x32x64xf32, #tpu.memory_space<vmem>>, vector<1x32x64xf32>,
    %c4 = arith.constant 4 : index
    %c0_34 = arith.constant 0 : index
    %c0_35 = arith.constant 0 : index
    %45 = vector.load %arg4[%c4, %c0_34, %c0_35] : memref<8x32x64xf32, #tpu.memory_space<vmem>>, vector<1x32x64xf32>
    %46 = vector.shape_cast %45 : vector<1x32x64xf32> to vector<32x64xf32>
    %47 = vector.broadcast %16 : vector<32x1xf32> to vector<32x64xf32>
    %48 = arith.mulf %46, %47 : vector<32x64xf32>
    %c4_36 = arith.constant 4 : index
    %c0_37 = arith.constant 0 : index
    %c0_38 = arith.constant 0 : index
    %49 = vector.load %arg5[%c4_36, %c0_37, %c0_38] : memref<8x32x64xf32, #tpu.memory_space<vmem>>, vector<1x32x64xf32>
    %50 = vector.shape_cast %49 : vector<1x32x64xf32> to vector<32x64xf32>
    %51 = vector.shape_cast %48 : vector<32x64xf32> to vector<1x32x64xf32>
    tpu.vector_store %arg5[%c4_36, %c0_37, %c0_38], %51 {strides = array<i32>} : memref<8x32x64xf32, #tpu.memory_space<vmem>>, vector<1x32x64xf32>,
    %c5 = arith.constant 5 : index
    %c0_39 = arith.constant 0 : index
    %c0_40 = arith.constant 0 : index
    %52 = vector.load %arg4[%c5, %c0_39, %c0_40] : memref<8x32x64xf32, #tpu.memory_space<vmem>>, vector<1x32x64xf32>
    %53 = vector.shape_cast %52 : vector<1x32x64xf32> to vector<32x64xf32>
    %54 = vector.broadcast %16 : vector<32x1xf32> to vector<32x64xf32>
    %55 = arith.mulf %53, %54 : vector<32x64xf32>
    %c5_41 = arith.constant 5 : index
    %c0_42 = arith.constant 0 : index
    %c0_43 = arith.constant 0 : index
    %56 = vector.load %arg5[%c5_41, %c0_42, %c0_43] : memref<8x32x64xf32, #tpu.memory_space<vmem>>, vector<1x32x64xf32>
    %57 = vector.shape_cast %56 : vector<1x32x64xf32> to vector<32x64xf32>
    %58 = vector.shape_cast %55 : vector<32x64xf32> to vector<1x32x64xf32>
    tpu.vector_store %arg5[%c5_41, %c0_42, %c0_43], %58 {strides = array<i32>} : memref<8x32x64xf32, #tpu.memory_space<vmem>>, vector<1x32x64xf32>,
    %c6 = arith.constant 6 : index
    %c0_44 = arith.constant 0 : index
    %c0_45 = arith.constant 0 : index
    %59 = vector.load %arg4[%c6, %c0_44, %c0_45] : memref<8x32x64xf32, #tpu.memory_space<vmem>>, vector<1x32x64xf32>
    %60 = vector.shape_cast %59 : vector<1x32x64xf32> to vector<32x64xf32>
    %61 = vector.broadcast %16 : vector<32x1xf32> to vector<32x64xf32>
    %62 = arith.mulf %60, %61 : vector<32x64xf32>
    %c6_46 = arith.constant 6 : index
    %c0_47 = arith.constant 0 : index
    %c0_48 = arith.constant 0 : index
    %63 = vector.load %arg5[%c6_46, %c0_47, %c0_48] : memref<8x32x64xf32, #tpu.memory_space<vmem>>, vector<1x32x64xf32>
    %64 = vector.shape_cast %63 : vector<1x32x64xf32> to vector<32x64xf32>
    %65 = vector.shape_cast %62 : vector<32x64xf32> to vector<1x32x64xf32>
    tpu.vector_store %arg5[%c6_46, %c0_47, %c0_48], %65 {strides = array<i32>} : memref<8x32x64xf32, #tpu.memory_space<vmem>>, vector<1x32x64xf32>,
    %c7 = arith.constant 7 : index
    %c0_49 = arith.constant 0 : index
    %c0_50 = arith.constant 0 : index
    %66 = vector.load %arg4[%c7, %c0_49, %c0_50] : memref<8x32x64xf32, #tpu.memory_space<vmem>>, vector<1x32x64xf32>
    %67 = vector.shape_cast %66 : vector<1x32x64xf32> to vector<32x64xf32>
    %68 = vector.broadcast %16 : vector<32x1xf32> to vector<32x64xf32>
    %69 = arith.mulf %67, %68 : vector<32x64xf32>
    %c7_51 = arith.constant 7 : index
    %c0_52 = arith.constant 0 : index
    %c0_53 = arith.constant 0 : index
    %70 = vector.load %arg5[%c7_51, %c0_52, %c0_53] : memref<8x32x64xf32, #tpu.memory_space<vmem>>, vector<1x32x64xf32>
    %71 = vector.shape_cast %70 : vector<1x32x64xf32> to vector<32x64xf32>
    %72 = vector.shape_cast %69 : vector<32x64xf32> to vector<1x32x64xf32>
    tpu.vector_store %arg5[%c7_51, %c0_52, %c0_53], %72 {strides = array<i32>} : memref<8x32x64xf32, #tpu.memory_space<vmem>>, vector<1x32x64xf32>,
    return
  }
  func.func @transform_0(%arg0: i32) -> (i32, i32, i32) {
    %c0_i32 = arith.constant 0 : i32
    %c0_i32_0 = arith.constant 0 : i32
    %c0_i32_1 = arith.constant 0 : i32
    %c0_i32_2 = arith.constant 0 : i32
    return %c0_i32, %c0_i32_0, %c0_i32_1 : i32, i32, i32
  }
  func.func @transform_1(%arg0: i32) -> (i32, i32) {
    %c0_i32 = arith.constant 0 : i32
    %c0_i32_0 = arith.constant 0 : i32
    %c0_i32_1 = arith.constant 0 : i32
    return %c0_i32, %c0_i32_0 : i32, i32
  }
  func.func @transform_2(%arg0: i32) -> (i32, i32) {
    %c0_i32 = arith.constant 0 : i32
    %c0_i32_0 = arith.constant 0 : i32
    %c0_i32_1 = arith.constant 0 : i32
    return %c0_i32, %c0_i32_0 : i32, i32
  }
  func.func @transform_3(%arg0: i32) -> (i32, i32, i32) {
    %c0_i32 = arith.constant 0 : i32
    %c0_i32_0 = arith.constant 0 : i32
    %c0_i32_1 = arith.constant 0 : i32
    return %c0_i32, %c0_i32_0, %arg0 : i32, i32, i32
  }
  func.func @transform_4(%arg0: i32) -> (i32, i32, i32) {
    %c0_i32 = arith.constant 0 : i32
    %c0_i32_0 = arith.constant 0 : i32
    %c0_i32_1 = arith.constant 0 : i32
    return %c0_i32, %c0_i32_0, %arg0 : i32, i32, i32
  }
}

module attributes {stable_mosaic.version = 11 : i64} {
  func.func @_dense_tblock_main_kernel(%arg0: i32, %arg1: memref<8x32x64xf32, #tpu.memory_space<vmem>>, %arg2: memref<16x32xf32, #tpu.memory_space<vmem>>, %arg3: memref<16x1xf32, #tpu.memory_space<vmem>>, %arg4: memref<3x8x16xf32, #tpu.memory_space<vmem>>, %arg5: memref<8x1xf32, #tpu.memory_space<vmem>>, %arg6: memref<16x32xf32, #tpu.memory_space<vmem>>, %arg7: memref<16x8xf32, #tpu.memory_space<vmem>>, %arg8: memref<16x1xf32, #tpu.memory_space<vmem>>, %arg9: memref<3x8x16xf32, #tpu.memory_space<vmem>>, %arg10: memref<8x1xf32, #tpu.memory_space<vmem>>, %arg11: memref<16x8xf32, #tpu.memory_space<vmem>>, %arg12: memref<16x8xf32, #tpu.memory_space<vmem>>, %arg13: memref<16x1xf32, #tpu.memory_space<vmem>>, %arg14: memref<4x8x16xf32, #tpu.memory_space<vmem>>, %arg15: memref<8x1xf32, #tpu.memory_space<vmem>>, %arg16: memref<16x8xf32, #tpu.memory_space<vmem>>, %arg17: memref<16x8xf32, #tpu.memory_space<vmem>>, %arg18: memref<16x1xf32, #tpu.memory_space<vmem>>, %arg19: memref<5x8x16xf32, #tpu.memory_space<vmem>>, %arg20: memref<8x1xf32, #tpu.memory_space<vmem>>, %arg21: memref<32x8xf32, #tpu.memory_space<vmem>>, %arg22: memref<32x8xf32, #tpu.memory_space<vmem>>, %arg23: memref<32x1xf32, #tpu.memory_space<vmem>>, %arg24: memref<8x32x64xf32, #tpu.memory_space<vmem>>, %arg25: memref<1x32x1xf32, #tpu.memory_space<vmem>>) attributes {dimension_semantics = [#tpu.dimension_semantics<parallel>], iteration_bounds = array<i64: 1>, scalar_prefetch = 0 : i64, scratch_operands = 0 : i64, tpu.core_type = #tpu.core_type<tc>, window_params = [{transform_indices = @transform_0, window_bounds = array<i64: 8, 32, 64>}, {pipeline_mode = #tpu.pipeline_mode<synchronous>, transform_indices = @transform_1, window_bounds = array<i64: 16, 32>}, {pipeline_mode = #tpu.pipeline_mode<synchronous>, transform_indices = @transform_2, window_bounds = array<i64: 16, 1>}, {pipeline_mode = #tpu.pipeline_mode<synchronous>, transform_indices = @transform_3, window_bounds = array<i64: 3, 8, 16>}, {pipeline_mode = #tpu.pipeline_mode<synchronous>, transform_indices = @transform_4, window_bounds = array<i64: 8, 1>}, {pipeline_mode = #tpu.pipeline_mode<synchronous>, transform_indices = @transform_5, window_bounds = array<i64: 16, 32>}, {pipeline_mode = #tpu.pipeline_mode<synchronous>, transform_indices = @transform_6, window_bounds = array<i64: 16, 8>}, {pipeline_mode = #tpu.pipeline_mode<synchronous>, transform_indices = @transform_7, window_bounds = array<i64: 16, 1>}, {pipeline_mode = #tpu.pipeline_mode<synchronous>, transform_indices = @transform_8, window_bounds = array<i64: 3, 8, 16>}, {pipeline_mode = #tpu.pipeline_mode<synchronous>, transform_indices = @transform_9, window_bounds = array<i64: 8, 1>}, {pipeline_mode = #tpu.pipeline_mode<synchronous>, transform_indices = @transform_10, window_bounds = array<i64: 16, 8>}, {pipeline_mode = #tpu.pipeline_mode<synchronous>, transform_indices = @transform_11, window_bounds = array<i64: 16, 8>}, {pipeline_mode = #tpu.pipeline_mode<synchronous>, transform_indices = @transform_12, window_bounds = array<i64: 16, 1>}, {pipeline_mode = #tpu.pipeline_mode<synchronous>, transform_indices = @transform_13, window_bounds = array<i64: 4, 8, 16>}, {pipeline_mode = #tpu.pipeline_mode<synchronous>, transform_indices = @transform_14, window_bounds = array<i64: 8, 1>}, {pipeline_mode = #tpu.pipeline_mode<synchronous>, transform_indices = @transform_15, window_bounds = array<i64: 16, 8>}, {pipeline_mode = #tpu.pipeline_mode<synchronous>, transform_indices = @transform_16, window_bounds = array<i64: 16, 8>}, {pipeline_mode = #tpu.pipeline_mode<synchronous>, transform_indices = @transform_17, window_bounds = array<i64: 16, 1>}, {pipeline_mode = #tpu.pipeline_mode<synchronous>, transform_indices = @transform_18, window_bounds = array<i64: 5, 8, 16>}, {pipeline_mode = #tpu.pipeline_mode<synchronous>, transform_indices = @transform_19, window_bounds = array<i64: 8, 1>}, {pipeline_mode = #tpu.pipeline_mode<synchronous>, transform_indices = @transform_20, window_bounds = array<i64: 32, 8>}, {pipeline_mode = #tpu.pipeline_mode<synchronous>, transform_indices = @transform_21, window_bounds = array<i64: 32, 8>}, {pipeline_mode = #tpu.pipeline_mode<synchronous>, transform_indices = @transform_22, window_bounds = array<i64: 32, 1>}, {transform_indices = @transform_23, window_bounds = array<i64: 8, 32, 64>}, {transform_indices = @transform_24, window_bounds = array<i64: 1, 32, 1>}]} {
    %c0 = arith.constant 0 : index
    %c0_0 = arith.constant 0 : index
    %c0_1 = arith.constant 0 : index
    %0 = vector.load %arg1[%c0, %c0_0, %c0_1] : memref<8x32x64xf32, #tpu.memory_space<vmem>>, vector<1x32x64xf32>
    %1 = vector.shape_cast %0 : vector<1x32x64xf32> to vector<32x64xf32>
    %c1 = arith.constant 1 : index
    %c0_2 = arith.constant 0 : index
    %c0_3 = arith.constant 0 : index
    %2 = vector.load %arg1[%c1, %c0_2, %c0_3] : memref<8x32x64xf32, #tpu.memory_space<vmem>>, vector<1x32x64xf32>
    %3 = vector.shape_cast %2 : vector<1x32x64xf32> to vector<32x64xf32>
    %c2 = arith.constant 2 : index
    %c0_4 = arith.constant 0 : index
    %c0_5 = arith.constant 0 : index
    %4 = vector.load %arg1[%c2, %c0_4, %c0_5] : memref<8x32x64xf32, #tpu.memory_space<vmem>>, vector<1x32x64xf32>
    %5 = vector.shape_cast %4 : vector<1x32x64xf32> to vector<32x64xf32>
    %c3 = arith.constant 3 : index
    %c0_6 = arith.constant 0 : index
    %c0_7 = arith.constant 0 : index
    %6 = vector.load %arg1[%c3, %c0_6, %c0_7] : memref<8x32x64xf32, #tpu.memory_space<vmem>>, vector<1x32x64xf32>
    %7 = vector.shape_cast %6 : vector<1x32x64xf32> to vector<32x64xf32>
    %c4 = arith.constant 4 : index
    %c0_8 = arith.constant 0 : index
    %c0_9 = arith.constant 0 : index
    %8 = vector.load %arg1[%c4, %c0_8, %c0_9] : memref<8x32x64xf32, #tpu.memory_space<vmem>>, vector<1x32x64xf32>
    %9 = vector.shape_cast %8 : vector<1x32x64xf32> to vector<32x64xf32>
    %c5 = arith.constant 5 : index
    %c0_10 = arith.constant 0 : index
    %c0_11 = arith.constant 0 : index
    %10 = vector.load %arg1[%c5, %c0_10, %c0_11] : memref<8x32x64xf32, #tpu.memory_space<vmem>>, vector<1x32x64xf32>
    %11 = vector.shape_cast %10 : vector<1x32x64xf32> to vector<32x64xf32>
    %c6 = arith.constant 6 : index
    %c0_12 = arith.constant 0 : index
    %c0_13 = arith.constant 0 : index
    %12 = vector.load %arg1[%c6, %c0_12, %c0_13] : memref<8x32x64xf32, #tpu.memory_space<vmem>>, vector<1x32x64xf32>
    %13 = vector.shape_cast %12 : vector<1x32x64xf32> to vector<32x64xf32>
    %c7 = arith.constant 7 : index
    %c0_14 = arith.constant 0 : index
    %c0_15 = arith.constant 0 : index
    %14 = vector.load %arg1[%c7, %c0_14, %c0_15] : memref<8x32x64xf32, #tpu.memory_space<vmem>>, vector<1x32x64xf32>
    %15 = vector.shape_cast %14 : vector<1x32x64xf32> to vector<32x64xf32>
    %16 = tpu.concatenate %1, %3, %5, %7, %9, %11, %13, %15 in 1 : vector<32x64xf32>, vector<32x64xf32>, vector<32x64xf32>, vector<32x64xf32>, vector<32x64xf32>, vector<32x64xf32>, vector<32x64xf32>, vector<32x64xf32> -> vector<32x512xf32>
    %c0_16 = arith.constant 0 : index
    %c0_17 = arith.constant 0 : index
    %17 = vector.load %arg2[%c0_16, %c0_17] : memref<16x32xf32, #tpu.memory_space<vmem>>, vector<16x32xf32>
    %cst = arith.constant dense<0.000000e+00> : vector<16x512xf32>
    %18 = tpu.matmul %17, %16, %cst {dimension_numbers = #tpu.dot_dimension_numbers<[1], [0], [0], [1], [0, 0, 1, 1], [], []>} : vector<16x32xf32>, vector<32x512xf32>, vector<16x512xf32> -> vector<16x512xf32>
    %c0_18 = arith.constant 0 : index
    %c0_19 = arith.constant 0 : index
    %19 = vector.load %arg3[%c0_18, %c0_19] : memref<16x1xf32, #tpu.memory_space<vmem>>, vector<16x1xf32>
    %20 = vector.broadcast %19 : vector<16x1xf32> to vector<16x512xf32>
    %21 = arith.addf %18, %20 : vector<16x512xf32>
    %cst_20 = arith.constant 0.000000e+00 : f32
    %22 = vector.broadcast %cst_20 : f32 to vector<16x512xf32>
    %23 = arith.maximumf %21, %22 : vector<16x512xf32>
    %cst_21 = arith.constant 0.000000e+00 : f32
    %24 = vector.broadcast %cst_21 : f32 to vector<16x64xf32>
    %cst_22 = arith.constant 0.000000e+00 : f32
    %25 = vector.broadcast %cst_22 : f32 to vector<16x64xf32>
    %26 = tpu.concatenate %24, %23, %25 in 1 : vector<16x64xf32>, vector<16x512xf32>, vector<16x64xf32> -> vector<16x640xf32>
    %c0_23 = arith.constant 0 : index
    %c0_24 = arith.constant 0 : index
    %c0_25 = arith.constant 0 : index
    %27 = vector.load %arg4[%c0_23, %c0_24, %c0_25] : memref<3x8x16xf32, #tpu.memory_space<vmem>>, vector<1x8x16xf32>
    %28 = vector.shape_cast %27 : vector<1x8x16xf32> to vector<8x16xf32>
    %29 = vector.extract_strided_slice %26 {offsets = [0, 0], sizes = [16, 512], strides = [1, 1]} : vector<16x640xf32> to vector<16x512xf32>
    %cst_26 = arith.constant dense<0.000000e+00> : vector<8x512xf32>
    %30 = tpu.matmul %28, %29, %cst_26 {dimension_numbers = #tpu.dot_dimension_numbers<[1], [0], [0], [1], [0, 0, 1, 1], [], []>} : vector<8x16xf32>, vector<16x512xf32>, vector<8x512xf32> -> vector<8x512xf32>
    %c1_27 = arith.constant 1 : index
    %c0_28 = arith.constant 0 : index
    %c0_29 = arith.constant 0 : index
    %31 = vector.load %arg4[%c1_27, %c0_28, %c0_29] : memref<3x8x16xf32, #tpu.memory_space<vmem>>, vector<1x8x16xf32>
    %32 = vector.shape_cast %31 : vector<1x8x16xf32> to vector<8x16xf32>
    %33 = vector.extract_strided_slice %26 {offsets = [0, 64], sizes = [16, 512], strides = [1, 1]} : vector<16x640xf32> to vector<16x512xf32>
    %cst_30 = arith.constant dense<0.000000e+00> : vector<8x512xf32>
    %34 = tpu.matmul %32, %33, %cst_30 {dimension_numbers = #tpu.dot_dimension_numbers<[1], [0], [0], [1], [0, 0, 1, 1], [], []>} : vector<8x16xf32>, vector<16x512xf32>, vector<8x512xf32> -> vector<8x512xf32>
    %35 = arith.addf %30, %34 : vector<8x512xf32>
    %c2_31 = arith.constant 2 : index
    %c0_32 = arith.constant 0 : index
    %c0_33 = arith.constant 0 : index
    %36 = vector.load %arg4[%c2_31, %c0_32, %c0_33] : memref<3x8x16xf32, #tpu.memory_space<vmem>>, vector<1x8x16xf32>
    %37 = vector.shape_cast %36 : vector<1x8x16xf32> to vector<8x16xf32>
    %38 = vector.extract_strided_slice %26 {offsets = [0, 128], sizes = [16, 512], strides = [1, 1]} : vector<16x640xf32> to vector<16x512xf32>
    %cst_34 = arith.constant dense<0.000000e+00> : vector<8x512xf32>
    %39 = tpu.matmul %37, %38, %cst_34 {dimension_numbers = #tpu.dot_dimension_numbers<[1], [0], [0], [1], [0, 0, 1, 1], [], []>} : vector<8x16xf32>, vector<16x512xf32>, vector<8x512xf32> -> vector<8x512xf32>
    %40 = arith.addf %35, %39 : vector<8x512xf32>
    %c0_35 = arith.constant 0 : index
    %c0_36 = arith.constant 0 : index
    %41 = vector.load %arg5[%c0_35, %c0_36] : memref<8x1xf32, #tpu.memory_space<vmem>>, vector<8x1xf32>
    %42 = vector.broadcast %41 : vector<8x1xf32> to vector<8x512xf32>
    %43 = arith.addf %40, %42 : vector<8x512xf32>
    %cst_37 = arith.constant 0.000000e+00 : f32
    %44 = vector.broadcast %cst_37 : f32 to vector<8x512xf32>
    %45 = arith.maximumf %43, %44 : vector<8x512xf32>
    %c0_38 = arith.constant 0 : index
    %c0_39 = arith.constant 0 : index
    %46 = vector.load %arg6[%c0_38, %c0_39] : memref<16x32xf32, #tpu.memory_space<vmem>>, vector<16x32xf32>
    %cst_40 = arith.constant dense<0.000000e+00> : vector<16x512xf32>
    %47 = tpu.matmul %46, %16, %cst_40 {dimension_numbers = #tpu.dot_dimension_numbers<[1], [0], [0], [1], [0, 0, 1, 1], [], []>} : vector<16x32xf32>, vector<32x512xf32>, vector<16x512xf32> -> vector<16x512xf32>
    %c0_41 = arith.constant 0 : index
    %c0_42 = arith.constant 0 : index
    %48 = vector.load %arg7[%c0_41, %c0_42] : memref<16x8xf32, #tpu.memory_space<vmem>>, vector<16x8xf32>
    %cst_43 = arith.constant dense<0.000000e+00> : vector<16x512xf32>
    %49 = tpu.matmul %48, %45, %cst_43 {dimension_numbers = #tpu.dot_dimension_numbers<[1], [0], [0], [1], [0, 0, 1, 1], [], []>} : vector<16x8xf32>, vector<8x512xf32>, vector<16x512xf32> -> vector<16x512xf32>
    %50 = arith.addf %47, %49 : vector<16x512xf32>
    %c0_44 = arith.constant 0 : index
    %c0_45 = arith.constant 0 : index
    %51 = vector.load %arg8[%c0_44, %c0_45] : memref<16x1xf32, #tpu.memory_space<vmem>>, vector<16x1xf32>
    %52 = vector.broadcast %51 : vector<16x1xf32> to vector<16x512xf32>
    %53 = arith.addf %50, %52 : vector<16x512xf32>
    %cst_46 = arith.constant 0.000000e+00 : f32
    %54 = vector.broadcast %cst_46 : f32 to vector<16x512xf32>
    %55 = arith.maximumf %53, %54 : vector<16x512xf32>
    %cst_47 = arith.constant 0.000000e+00 : f32
    %56 = vector.broadcast %cst_47 : f32 to vector<16x128xf32>
    %cst_48 = arith.constant 0.000000e+00 : f32
    %57 = vector.broadcast %cst_48 : f32 to vector<16x128xf32>
    %58 = tpu.concatenate %56, %55, %57 in 1 : vector<16x128xf32>, vector<16x512xf32>, vector<16x128xf32> -> vector<16x768xf32>
    %c0_49 = arith.constant 0 : index
    %c0_50 = arith.constant 0 : index
    %c0_51 = arith.constant 0 : index
    %59 = vector.load %arg9[%c0_49, %c0_50, %c0_51] : memref<3x8x16xf32, #tpu.memory_space<vmem>>, vector<1x8x16xf32>
    %60 = vector.shape_cast %59 : vector<1x8x16xf32> to vector<8x16xf32>
    %61 = vector.extract_strided_slice %58 {offsets = [0, 0], sizes = [16, 512], strides = [1, 1]} : vector<16x768xf32> to vector<16x512xf32>
    %cst_52 = arith.constant dense<0.000000e+00> : vector<8x512xf32>
    %62 = tpu.matmul %60, %61, %cst_52 {dimension_numbers = #tpu.dot_dimension_numbers<[1], [0], [0], [1], [0, 0, 1, 1], [], []>} : vector<8x16xf32>, vector<16x512xf32>, vector<8x512xf32> -> vector<8x512xf32>
    %c1_53 = arith.constant 1 : index
    %c0_54 = arith.constant 0 : index
    %c0_55 = arith.constant 0 : index
    %63 = vector.load %arg9[%c1_53, %c0_54, %c0_55] : memref<3x8x16xf32, #tpu.memory_space<vmem>>, vector<1x8x16xf32>
    %64 = vector.shape_cast %63 : vector<1x8x16xf32> to vector<8x16xf32>
    %65 = vector.extract_strided_slice %58 {offsets = [0, 128], sizes = [16, 512], strides = [1, 1]} : vector<16x768xf32> to vector<16x512xf32>
    %cst_56 = arith.constant dense<0.000000e+00> : vector<8x512xf32>
    %66 = tpu.matmul %64, %65, %cst_56 {dimension_numbers = #tpu.dot_dimension_numbers<[1], [0], [0], [1], [0, 0, 1, 1], [], []>} : vector<8x16xf32>, vector<16x512xf32>, vector<8x512xf32> -> vector<8x512xf32>
    %67 = arith.addf %62, %66 : vector<8x512xf32>
    %c2_57 = arith.constant 2 : index
    %c0_58 = arith.constant 0 : index
    %c0_59 = arith.constant 0 : index
    %68 = vector.load %arg9[%c2_57, %c0_58, %c0_59] : memref<3x8x16xf32, #tpu.memory_space<vmem>>, vector<1x8x16xf32>
    %69 = vector.shape_cast %68 : vector<1x8x16xf32> to vector<8x16xf32>
    %70 = vector.extract_strided_slice %58 {offsets = [0, 256], sizes = [16, 512], strides = [1, 1]} : vector<16x768xf32> to vector<16x512xf32>
    %cst_60 = arith.constant dense<0.000000e+00> : vector<8x512xf32>
    %71 = tpu.matmul %69, %70, %cst_60 {dimension_numbers = #tpu.dot_dimension_numbers<[1], [0], [0], [1], [0, 0, 1, 1], [], []>} : vector<8x16xf32>, vector<16x512xf32>, vector<8x512xf32> -> vector<8x512xf32>
    %72 = arith.addf %67, %71 : vector<8x512xf32>
    %c0_61 = arith.constant 0 : index
    %c0_62 = arith.constant 0 : index
    %73 = vector.load %arg10[%c0_61, %c0_62] : memref<8x1xf32, #tpu.memory_space<vmem>>, vector<8x1xf32>
    %74 = vector.broadcast %73 : vector<8x1xf32> to vector<8x512xf32>
    %75 = arith.addf %72, %74 : vector<8x512xf32>
    %cst_63 = arith.constant 0.000000e+00 : f32
    %76 = vector.broadcast %cst_63 : f32 to vector<8x512xf32>
    %77 = arith.maximumf %75, %76 : vector<8x512xf32>
    %c0_64 = arith.constant 0 : index
    %c0_65 = arith.constant 0 : index
    %78 = vector.load %arg11[%c0_64, %c0_65] : memref<16x8xf32, #tpu.memory_space<vmem>>, vector<16x8xf32>
    %cst_66 = arith.constant dense<0.000000e+00> : vector<16x512xf32>
    %79 = tpu.matmul %78, %45, %cst_66 {dimension_numbers = #tpu.dot_dimension_numbers<[1], [0], [0], [1], [0, 0, 1, 1], [], []>} : vector<16x8xf32>, vector<8x512xf32>, vector<16x512xf32> -> vector<16x512xf32>
    %c0_67 = arith.constant 0 : index
    %c0_68 = arith.constant 0 : index
    %80 = vector.load %arg12[%c0_67, %c0_68] : memref<16x8xf32, #tpu.memory_space<vmem>>, vector<16x8xf32>
    %cst_69 = arith.constant dense<0.000000e+00> : vector<16x512xf32>
    %81 = tpu.matmul %80, %77, %cst_69 {dimension_numbers = #tpu.dot_dimension_numbers<[1], [0], [0], [1], [0, 0, 1, 1], [], []>} : vector<16x8xf32>, vector<8x512xf32>, vector<16x512xf32> -> vector<16x512xf32>
    %82 = arith.addf %79, %81 : vector<16x512xf32>
    %c0_70 = arith.constant 0 : index
    %c0_71 = arith.constant 0 : index
    %83 = vector.load %arg13[%c0_70, %c0_71] : memref<16x1xf32, #tpu.memory_space<vmem>>, vector<16x1xf32>
    %84 = vector.broadcast %83 : vector<16x1xf32> to vector<16x512xf32>
    %85 = arith.addf %82, %84 : vector<16x512xf32>
    %cst_72 = arith.constant 0.000000e+00 : f32
    %86 = vector.broadcast %cst_72 : f32 to vector<16x512xf32>
    %87 = arith.maximumf %85, %86 : vector<16x512xf32>
    %cst_73 = arith.constant 0.000000e+00 : f32
    %88 = vector.broadcast %cst_73 : f32 to vector<16x192xf32>
    %cst_74 = arith.constant 0.000000e+00 : f32
    %89 = vector.broadcast %cst_74 : f32 to vector<16x192xf32>
    %90 = tpu.concatenate %88, %87, %89 in 1 : vector<16x192xf32>, vector<16x512xf32>, vector<16x192xf32> -> vector<16x896xf32>
    %c0_75 = arith.constant 0 : index
    %c0_76 = arith.constant 0 : index
    %c0_77 = arith.constant 0 : index
    %91 = vector.load %arg14[%c0_75, %c0_76, %c0_77] : memref<4x8x16xf32, #tpu.memory_space<vmem>>, vector<1x8x16xf32>
    %92 = vector.shape_cast %91 : vector<1x8x16xf32> to vector<8x16xf32>
    %93 = vector.extract_strided_slice %90 {offsets = [0, 0], sizes = [16, 512], strides = [1, 1]} : vector<16x896xf32> to vector<16x512xf32>
    %cst_78 = arith.constant dense<0.000000e+00> : vector<8x512xf32>
    %94 = tpu.matmul %92, %93, %cst_78 {dimension_numbers = #tpu.dot_dimension_numbers<[1], [0], [0], [1], [0, 0, 1, 1], [], []>} : vector<8x16xf32>, vector<16x512xf32>, vector<8x512xf32> -> vector<8x512xf32>
    %c1_79 = arith.constant 1 : index
    %c0_80 = arith.constant 0 : index
    %c0_81 = arith.constant 0 : index
    %95 = vector.load %arg14[%c1_79, %c0_80, %c0_81] : memref<4x8x16xf32, #tpu.memory_space<vmem>>, vector<1x8x16xf32>
    %96 = vector.shape_cast %95 : vector<1x8x16xf32> to vector<8x16xf32>
    %97 = vector.extract_strided_slice %90 {offsets = [0, 128], sizes = [16, 512], strides = [1, 1]} : vector<16x896xf32> to vector<16x512xf32>
    %cst_82 = arith.constant dense<0.000000e+00> : vector<8x512xf32>
    %98 = tpu.matmul %96, %97, %cst_82 {dimension_numbers = #tpu.dot_dimension_numbers<[1], [0], [0], [1], [0, 0, 1, 1], [], []>} : vector<8x16xf32>, vector<16x512xf32>, vector<8x512xf32> -> vector<8x512xf32>
    %99 = arith.addf %94, %98 : vector<8x512xf32>
    %c2_83 = arith.constant 2 : index
    %c0_84 = arith.constant 0 : index
    %c0_85 = arith.constant 0 : index
    %100 = vector.load %arg14[%c2_83, %c0_84, %c0_85] : memref<4x8x16xf32, #tpu.memory_space<vmem>>, vector<1x8x16xf32>
    %101 = vector.shape_cast %100 : vector<1x8x16xf32> to vector<8x16xf32>
    %102 = vector.extract_strided_slice %90 {offsets = [0, 256], sizes = [16, 512], strides = [1, 1]} : vector<16x896xf32> to vector<16x512xf32>
    %cst_86 = arith.constant dense<0.000000e+00> : vector<8x512xf32>
    %103 = tpu.matmul %101, %102, %cst_86 {dimension_numbers = #tpu.dot_dimension_numbers<[1], [0], [0], [1], [0, 0, 1, 1], [], []>} : vector<8x16xf32>, vector<16x512xf32>, vector<8x512xf32> -> vector<8x512xf32>
    %104 = arith.addf %99, %103 : vector<8x512xf32>
    %c3_87 = arith.constant 3 : index
    %c0_88 = arith.constant 0 : index
    %c0_89 = arith.constant 0 : index
    %105 = vector.load %arg14[%c3_87, %c0_88, %c0_89] : memref<4x8x16xf32, #tpu.memory_space<vmem>>, vector<1x8x16xf32>
    %106 = vector.shape_cast %105 : vector<1x8x16xf32> to vector<8x16xf32>
    %107 = vector.extract_strided_slice %90 {offsets = [0, 384], sizes = [16, 512], strides = [1, 1]} : vector<16x896xf32> to vector<16x512xf32>
    %cst_90 = arith.constant dense<0.000000e+00> : vector<8x512xf32>
    %108 = tpu.matmul %106, %107, %cst_90 {dimension_numbers = #tpu.dot_dimension_numbers<[1], [0], [0], [1], [0, 0, 1, 1], [], []>} : vector<8x16xf32>, vector<16x512xf32>, vector<8x512xf32> -> vector<8x512xf32>
    %109 = arith.addf %104, %108 : vector<8x512xf32>
    %c0_91 = arith.constant 0 : index
    %c0_92 = arith.constant 0 : index
    %110 = vector.load %arg15[%c0_91, %c0_92] : memref<8x1xf32, #tpu.memory_space<vmem>>, vector<8x1xf32>
    %111 = vector.broadcast %110 : vector<8x1xf32> to vector<8x512xf32>
    %112 = arith.addf %109, %111 : vector<8x512xf32>
    %cst_93 = arith.constant 0.000000e+00 : f32
    %113 = vector.broadcast %cst_93 : f32 to vector<8x512xf32>
    %114 = arith.maximumf %112, %113 : vector<8x512xf32>
    %c0_94 = arith.constant 0 : index
    %c0_95 = arith.constant 0 : index
    %115 = vector.load %arg16[%c0_94, %c0_95] : memref<16x8xf32, #tpu.memory_space<vmem>>, vector<16x8xf32>
    %cst_96 = arith.constant dense<0.000000e+00> : vector<16x512xf32>
    %116 = tpu.matmul %115, %77, %cst_96 {dimension_numbers = #tpu.dot_dimension_numbers<[1], [0], [0], [1], [0, 0, 1, 1], [], []>} : vector<16x8xf32>, vector<8x512xf32>, vector<16x512xf32> -> vector<16x512xf32>
    %c0_97 = arith.constant 0 : index
    %c0_98 = arith.constant 0 : index
    %117 = vector.load %arg17[%c0_97, %c0_98] : memref<16x8xf32, #tpu.memory_space<vmem>>, vector<16x8xf32>
    %cst_99 = arith.constant dense<0.000000e+00> : vector<16x512xf32>
    %118 = tpu.matmul %117, %114, %cst_99 {dimension_numbers = #tpu.dot_dimension_numbers<[1], [0], [0], [1], [0, 0, 1, 1], [], []>} : vector<16x8xf32>, vector<8x512xf32>, vector<16x512xf32> -> vector<16x512xf32>
    %119 = arith.addf %116, %118 : vector<16x512xf32>
    %c0_100 = arith.constant 0 : index
    %c0_101 = arith.constant 0 : index
    %120 = vector.load %arg18[%c0_100, %c0_101] : memref<16x1xf32, #tpu.memory_space<vmem>>, vector<16x1xf32>
    %121 = vector.broadcast %120 : vector<16x1xf32> to vector<16x512xf32>
    %122 = arith.addf %119, %121 : vector<16x512xf32>
    %cst_102 = arith.constant 0.000000e+00 : f32
    %123 = vector.broadcast %cst_102 : f32 to vector<16x512xf32>
    %124 = arith.maximumf %122, %123 : vector<16x512xf32>
    %cst_103 = arith.constant 0.000000e+00 : f32
    %125 = vector.broadcast %cst_103 : f32 to vector<16x256xf32>
    %cst_104 = arith.constant 0.000000e+00 : f32
    %126 = vector.broadcast %cst_104 : f32 to vector<16x256xf32>
    %127 = tpu.concatenate %125, %124, %126 in 1 : vector<16x256xf32>, vector<16x512xf32>, vector<16x256xf32> -> vector<16x1024xf32>
    %c0_105 = arith.constant 0 : index
    %c0_106 = arith.constant 0 : index
    %c0_107 = arith.constant 0 : index
    %128 = vector.load %arg19[%c0_105, %c0_106, %c0_107] : memref<5x8x16xf32, #tpu.memory_space<vmem>>, vector<1x8x16xf32>
    %129 = vector.shape_cast %128 : vector<1x8x16xf32> to vector<8x16xf32>
    %130 = vector.extract_strided_slice %127 {offsets = [0, 0], sizes = [16, 512], strides = [1, 1]} : vector<16x1024xf32> to vector<16x512xf32>
    %cst_108 = arith.constant dense<0.000000e+00> : vector<8x512xf32>
    %131 = tpu.matmul %129, %130, %cst_108 {dimension_numbers = #tpu.dot_dimension_numbers<[1], [0], [0], [1], [0, 0, 1, 1], [], []>} : vector<8x16xf32>, vector<16x512xf32>, vector<8x512xf32> -> vector<8x512xf32>
    %c1_109 = arith.constant 1 : index
    %c0_110 = arith.constant 0 : index
    %c0_111 = arith.constant 0 : index
    %132 = vector.load %arg19[%c1_109, %c0_110, %c0_111] : memref<5x8x16xf32, #tpu.memory_space<vmem>>, vector<1x8x16xf32>
    %133 = vector.shape_cast %132 : vector<1x8x16xf32> to vector<8x16xf32>
    %134 = vector.extract_strided_slice %127 {offsets = [0, 128], sizes = [16, 512], strides = [1, 1]} : vector<16x1024xf32> to vector<16x512xf32>
    %cst_112 = arith.constant dense<0.000000e+00> : vector<8x512xf32>
    %135 = tpu.matmul %133, %134, %cst_112 {dimension_numbers = #tpu.dot_dimension_numbers<[1], [0], [0], [1], [0, 0, 1, 1], [], []>} : vector<8x16xf32>, vector<16x512xf32>, vector<8x512xf32> -> vector<8x512xf32>
    %136 = arith.addf %131, %135 : vector<8x512xf32>
    %c2_113 = arith.constant 2 : index
    %c0_114 = arith.constant 0 : index
    %c0_115 = arith.constant 0 : index
    %137 = vector.load %arg19[%c2_113, %c0_114, %c0_115] : memref<5x8x16xf32, #tpu.memory_space<vmem>>, vector<1x8x16xf32>
    %138 = vector.shape_cast %137 : vector<1x8x16xf32> to vector<8x16xf32>
    %139 = vector.extract_strided_slice %127 {offsets = [0, 256], sizes = [16, 512], strides = [1, 1]} : vector<16x1024xf32> to vector<16x512xf32>
    %cst_116 = arith.constant dense<0.000000e+00> : vector<8x512xf32>
    %140 = tpu.matmul %138, %139, %cst_116 {dimension_numbers = #tpu.dot_dimension_numbers<[1], [0], [0], [1], [0, 0, 1, 1], [], []>} : vector<8x16xf32>, vector<16x512xf32>, vector<8x512xf32> -> vector<8x512xf32>
    %141 = arith.addf %136, %140 : vector<8x512xf32>
    %c3_117 = arith.constant 3 : index
    %c0_118 = arith.constant 0 : index
    %c0_119 = arith.constant 0 : index
    %142 = vector.load %arg19[%c3_117, %c0_118, %c0_119] : memref<5x8x16xf32, #tpu.memory_space<vmem>>, vector<1x8x16xf32>
    %143 = vector.shape_cast %142 : vector<1x8x16xf32> to vector<8x16xf32>
    %144 = vector.extract_strided_slice %127 {offsets = [0, 384], sizes = [16, 512], strides = [1, 1]} : vector<16x1024xf32> to vector<16x512xf32>
    %cst_120 = arith.constant dense<0.000000e+00> : vector<8x512xf32>
    %145 = tpu.matmul %143, %144, %cst_120 {dimension_numbers = #tpu.dot_dimension_numbers<[1], [0], [0], [1], [0, 0, 1, 1], [], []>} : vector<8x16xf32>, vector<16x512xf32>, vector<8x512xf32> -> vector<8x512xf32>
    %146 = arith.addf %141, %145 : vector<8x512xf32>
    %c4_121 = arith.constant 4 : index
    %c0_122 = arith.constant 0 : index
    %c0_123 = arith.constant 0 : index
    %147 = vector.load %arg19[%c4_121, %c0_122, %c0_123] : memref<5x8x16xf32, #tpu.memory_space<vmem>>, vector<1x8x16xf32>
    %148 = vector.shape_cast %147 : vector<1x8x16xf32> to vector<8x16xf32>
    %149 = vector.extract_strided_slice %127 {offsets = [0, 512], sizes = [16, 512], strides = [1, 1]} : vector<16x1024xf32> to vector<16x512xf32>
    %cst_124 = arith.constant dense<0.000000e+00> : vector<8x512xf32>
    %150 = tpu.matmul %148, %149, %cst_124 {dimension_numbers = #tpu.dot_dimension_numbers<[1], [0], [0], [1], [0, 0, 1, 1], [], []>} : vector<8x16xf32>, vector<16x512xf32>, vector<8x512xf32> -> vector<8x512xf32>
    %151 = arith.addf %146, %150 : vector<8x512xf32>
    %c0_125 = arith.constant 0 : index
    %c0_126 = arith.constant 0 : index
    %152 = vector.load %arg20[%c0_125, %c0_126] : memref<8x1xf32, #tpu.memory_space<vmem>>, vector<8x1xf32>
    %153 = vector.broadcast %152 : vector<8x1xf32> to vector<8x512xf32>
    %154 = arith.addf %151, %153 : vector<8x512xf32>
    %cst_127 = arith.constant 0.000000e+00 : f32
    %155 = vector.broadcast %cst_127 : f32 to vector<8x512xf32>
    %156 = arith.maximumf %154, %155 : vector<8x512xf32>
    %c0_128 = arith.constant 0 : index
    %c0_129 = arith.constant 0 : index
    %157 = vector.load %arg21[%c0_128, %c0_129] : memref<32x8xf32, #tpu.memory_space<vmem>>, vector<32x8xf32>
    %cst_130 = arith.constant dense<0.000000e+00> : vector<32x512xf32>
    %158 = tpu.matmul %157, %114, %cst_130 {dimension_numbers = #tpu.dot_dimension_numbers<[1], [0], [0], [1], [0, 0, 1, 1], [], []>} : vector<32x8xf32>, vector<8x512xf32>, vector<32x512xf32> -> vector<32x512xf32>
    %c0_131 = arith.constant 0 : index
    %c0_132 = arith.constant 0 : index
    %159 = vector.load %arg22[%c0_131, %c0_132] : memref<32x8xf32, #tpu.memory_space<vmem>>, vector<32x8xf32>
    %cst_133 = arith.constant dense<0.000000e+00> : vector<32x512xf32>
    %160 = tpu.matmul %159, %156, %cst_133 {dimension_numbers = #tpu.dot_dimension_numbers<[1], [0], [0], [1], [0, 0, 1, 1], [], []>} : vector<32x8xf32>, vector<8x512xf32>, vector<32x512xf32> -> vector<32x512xf32>
    %161 = arith.addf %158, %160 : vector<32x512xf32>
    %c0_134 = arith.constant 0 : index
    %c0_135 = arith.constant 0 : index
    %162 = vector.load %arg23[%c0_134, %c0_135] : memref<32x1xf32, #tpu.memory_space<vmem>>, vector<32x1xf32>
    %163 = vector.broadcast %162 : vector<32x1xf32> to vector<32x512xf32>
    %164 = arith.addf %161, %163 : vector<32x512xf32>
    %cst_136 = arith.constant 0.000000e+00 : f32
    %165 = vector.broadcast %cst_136 : f32 to vector<32x512xf32>
    %166 = arith.maximumf %164, %165 : vector<32x512xf32>
    %167 = vector.extract_strided_slice %166 {offsets = [0, 0], sizes = [32, 64], strides = [1, 1]} : vector<32x512xf32> to vector<32x64xf32>
    %c0_137 = arith.constant 0 : index
    %c0_138 = arith.constant 0 : index
    %c0_139 = arith.constant 0 : index
    %168 = vector.load %arg24[%c0_137, %c0_138, %c0_139] : memref<8x32x64xf32, #tpu.memory_space<vmem>>, vector<1x32x64xf32>
    %169 = vector.shape_cast %168 : vector<1x32x64xf32> to vector<32x64xf32>
    %170 = vector.shape_cast %167 : vector<32x64xf32> to vector<1x32x64xf32>
    tpu.vector_store %arg24[%c0_137, %c0_138, %c0_139], %170 {strides = array<i32>} : memref<8x32x64xf32, #tpu.memory_space<vmem>>, vector<1x32x64xf32>,
    %171 = vector.extract_strided_slice %166 {offsets = [0, 64], sizes = [32, 64], strides = [1, 1]} : vector<32x512xf32> to vector<32x64xf32>
    %c1_140 = arith.constant 1 : index
    %c0_141 = arith.constant 0 : index
    %c0_142 = arith.constant 0 : index
    %172 = vector.load %arg24[%c1_140, %c0_141, %c0_142] : memref<8x32x64xf32, #tpu.memory_space<vmem>>, vector<1x32x64xf32>
    %173 = vector.shape_cast %172 : vector<1x32x64xf32> to vector<32x64xf32>
    %174 = vector.shape_cast %171 : vector<32x64xf32> to vector<1x32x64xf32>
    tpu.vector_store %arg24[%c1_140, %c0_141, %c0_142], %174 {strides = array<i32>} : memref<8x32x64xf32, #tpu.memory_space<vmem>>, vector<1x32x64xf32>,
    %175 = vector.extract_strided_slice %166 {offsets = [0, 128], sizes = [32, 64], strides = [1, 1]} : vector<32x512xf32> to vector<32x64xf32>
    %c2_143 = arith.constant 2 : index
    %c0_144 = arith.constant 0 : index
    %c0_145 = arith.constant 0 : index
    %176 = vector.load %arg24[%c2_143, %c0_144, %c0_145] : memref<8x32x64xf32, #tpu.memory_space<vmem>>, vector<1x32x64xf32>
    %177 = vector.shape_cast %176 : vector<1x32x64xf32> to vector<32x64xf32>
    %178 = vector.shape_cast %175 : vector<32x64xf32> to vector<1x32x64xf32>
    tpu.vector_store %arg24[%c2_143, %c0_144, %c0_145], %178 {strides = array<i32>} : memref<8x32x64xf32, #tpu.memory_space<vmem>>, vector<1x32x64xf32>,
    %179 = vector.extract_strided_slice %166 {offsets = [0, 192], sizes = [32, 64], strides = [1, 1]} : vector<32x512xf32> to vector<32x64xf32>
    %c3_146 = arith.constant 3 : index
    %c0_147 = arith.constant 0 : index
    %c0_148 = arith.constant 0 : index
    %180 = vector.load %arg24[%c3_146, %c0_147, %c0_148] : memref<8x32x64xf32, #tpu.memory_space<vmem>>, vector<1x32x64xf32>
    %181 = vector.shape_cast %180 : vector<1x32x64xf32> to vector<32x64xf32>
    %182 = vector.shape_cast %179 : vector<32x64xf32> to vector<1x32x64xf32>
    tpu.vector_store %arg24[%c3_146, %c0_147, %c0_148], %182 {strides = array<i32>} : memref<8x32x64xf32, #tpu.memory_space<vmem>>, vector<1x32x64xf32>,
    %183 = vector.extract_strided_slice %166 {offsets = [0, 256], sizes = [32, 64], strides = [1, 1]} : vector<32x512xf32> to vector<32x64xf32>
    %c4_149 = arith.constant 4 : index
    %c0_150 = arith.constant 0 : index
    %c0_151 = arith.constant 0 : index
    %184 = vector.load %arg24[%c4_149, %c0_150, %c0_151] : memref<8x32x64xf32, #tpu.memory_space<vmem>>, vector<1x32x64xf32>
    %185 = vector.shape_cast %184 : vector<1x32x64xf32> to vector<32x64xf32>
    %186 = vector.shape_cast %183 : vector<32x64xf32> to vector<1x32x64xf32>
    tpu.vector_store %arg24[%c4_149, %c0_150, %c0_151], %186 {strides = array<i32>} : memref<8x32x64xf32, #tpu.memory_space<vmem>>, vector<1x32x64xf32>,
    %187 = vector.extract_strided_slice %166 {offsets = [0, 320], sizes = [32, 64], strides = [1, 1]} : vector<32x512xf32> to vector<32x64xf32>
    %c5_152 = arith.constant 5 : index
    %c0_153 = arith.constant 0 : index
    %c0_154 = arith.constant 0 : index
    %188 = vector.load %arg24[%c5_152, %c0_153, %c0_154] : memref<8x32x64xf32, #tpu.memory_space<vmem>>, vector<1x32x64xf32>
    %189 = vector.shape_cast %188 : vector<1x32x64xf32> to vector<32x64xf32>
    %190 = vector.shape_cast %187 : vector<32x64xf32> to vector<1x32x64xf32>
    tpu.vector_store %arg24[%c5_152, %c0_153, %c0_154], %190 {strides = array<i32>} : memref<8x32x64xf32, #tpu.memory_space<vmem>>, vector<1x32x64xf32>,
    %191 = vector.extract_strided_slice %166 {offsets = [0, 384], sizes = [32, 64], strides = [1, 1]} : vector<32x512xf32> to vector<32x64xf32>
    %c6_155 = arith.constant 6 : index
    %c0_156 = arith.constant 0 : index
    %c0_157 = arith.constant 0 : index
    %192 = vector.load %arg24[%c6_155, %c0_156, %c0_157] : memref<8x32x64xf32, #tpu.memory_space<vmem>>, vector<1x32x64xf32>
    %193 = vector.shape_cast %192 : vector<1x32x64xf32> to vector<32x64xf32>
    %194 = vector.shape_cast %191 : vector<32x64xf32> to vector<1x32x64xf32>
    tpu.vector_store %arg24[%c6_155, %c0_156, %c0_157], %194 {strides = array<i32>} : memref<8x32x64xf32, #tpu.memory_space<vmem>>, vector<1x32x64xf32>,
    %195 = vector.extract_strided_slice %166 {offsets = [0, 448], sizes = [32, 64], strides = [1, 1]} : vector<32x512xf32> to vector<32x64xf32>
    %c7_158 = arith.constant 7 : index
    %c0_159 = arith.constant 0 : index
    %c0_160 = arith.constant 0 : index
    %196 = vector.load %arg24[%c7_158, %c0_159, %c0_160] : memref<8x32x64xf32, #tpu.memory_space<vmem>>, vector<1x32x64xf32>
    %197 = vector.shape_cast %196 : vector<1x32x64xf32> to vector<32x64xf32>
    %198 = vector.shape_cast %195 : vector<32x64xf32> to vector<1x32x64xf32>
    tpu.vector_store %arg24[%c7_158, %c0_159, %c0_160], %198 {strides = array<i32>} : memref<8x32x64xf32, #tpu.memory_space<vmem>>, vector<1x32x64xf32>,
    %cst_161 = arith.constant dense<0.000000e+00> : vector<32xf32>
    %199 = vector.multi_reduction <add>, %166, %cst_161 [1] : vector<32x512xf32> to vector<32xf32>
    %200 = vector.shape_cast %199 : vector<32xf32> to vector<32x1xf32>
    %c0_162 = arith.constant 0 : index
    %c0_163 = arith.constant 0 : index
    %c0_164 = arith.constant 0 : index
    %201 = vector.load %arg25[%c0_162, %c0_163, %c0_164] : memref<1x32x1xf32, #tpu.memory_space<vmem>>, vector<1x32x1xf32>
    %202 = vector.shape_cast %201 : vector<1x32x1xf32> to vector<32x1xf32>
    %203 = vector.shape_cast %200 : vector<32x1xf32> to vector<1x32x1xf32>
    tpu.vector_store %arg25[%c0_162, %c0_163, %c0_164], %203 {strides = array<i32>} : memref<1x32x1xf32, #tpu.memory_space<vmem>>, vector<1x32x1xf32>,
    return
  }
  func.func @transform_0(%arg0: i32) -> (i32, i32, i32) {
    %c0_i32 = arith.constant 0 : i32
    %c0_i32_0 = arith.constant 0 : i32
    %c0_i32_1 = arith.constant 0 : i32
    return %c0_i32, %c0_i32_0, %arg0 : i32, i32, i32
  }
  func.func @transform_1(%arg0: i32) -> (i32, i32) {
    %c0_i32 = arith.constant 0 : i32
    %c0_i32_0 = arith.constant 0 : i32
    %c0_i32_1 = arith.constant 0 : i32
    return %c0_i32, %c0_i32_0 : i32, i32
  }
  func.func @transform_2(%arg0: i32) -> (i32, i32) {
    %c0_i32 = arith.constant 0 : i32
    %c0_i32_0 = arith.constant 0 : i32
    %c0_i32_1 = arith.constant 0 : i32
    return %c0_i32, %c0_i32_0 : i32, i32
  }
  func.func @transform_3(%arg0: i32) -> (i32, i32, i32) {
    %c0_i32 = arith.constant 0 : i32
    %c0_i32_0 = arith.constant 0 : i32
    %c0_i32_1 = arith.constant 0 : i32
    %c0_i32_2 = arith.constant 0 : i32
    return %c0_i32, %c0_i32_0, %c0_i32_1 : i32, i32, i32
  }
  func.func @transform_4(%arg0: i32) -> (i32, i32) {
    %c0_i32 = arith.constant 0 : i32
    %c0_i32_0 = arith.constant 0 : i32
    %c0_i32_1 = arith.constant 0 : i32
    return %c0_i32, %c0_i32_0 : i32, i32
  }
  func.func @transform_5(%arg0: i32) -> (i32, i32) {
    %c0_i32 = arith.constant 0 : i32
    %c0_i32_0 = arith.constant 0 : i32
    %c0_i32_1 = arith.constant 0 : i32
    return %c0_i32, %c0_i32_0 : i32, i32
  }
  func.func @transform_6(%arg0: i32) -> (i32, i32) {
    %c0_i32 = arith.constant 0 : i32
    %c0_i32_0 = arith.constant 0 : i32
    %c0_i32_1 = arith.constant 0 : i32
    return %c0_i32, %c0_i32_0 : i32, i32
  }
  func.func @transform_7(%arg0: i32) -> (i32, i32) {
    %c0_i32 = arith.constant 0 : i32
    %c0_i32_0 = arith.constant 0 : i32
    %c0_i32_1 = arith.constant 0 : i32
    return %c0_i32, %c0_i32_0 : i32, i32
  }
  func.func @transform_8(%arg0: i32) -> (i32, i32, i32) {
    %c0_i32 = arith.constant 0 : i32
    %c0_i32_0 = arith.constant 0 : i32
    %c0_i32_1 = arith.constant 0 : i32
    %c0_i32_2 = arith.constant 0 : i32
    return %c0_i32, %c0_i32_0, %c0_i32_1 : i32, i32, i32
  }
  func.func @transform_9(%arg0: i32) -> (i32, i32) {
    %c0_i32 = arith.constant 0 : i32
    %c0_i32_0 = arith.constant 0 : i32
    %c0_i32_1 = arith.constant 0 : i32
    return %c0_i32, %c0_i32_0 : i32, i32
  }
  func.func @transform_10(%arg0: i32) -> (i32, i32) {
    %c0_i32 = arith.constant 0 : i32
    %c0_i32_0 = arith.constant 0 : i32
    %c0_i32_1 = arith.constant 0 : i32
    return %c0_i32, %c0_i32_0 : i32, i32
  }
  func.func @transform_11(%arg0: i32) -> (i32, i32) {
    %c0_i32 = arith.constant 0 : i32
    %c0_i32_0 = arith.constant 0 : i32
    %c0_i32_1 = arith.constant 0 : i32
    return %c0_i32, %c0_i32_0 : i32, i32
  }
  func.func @transform_12(%arg0: i32) -> (i32, i32) {
    %c0_i32 = arith.constant 0 : i32
    %c0_i32_0 = arith.constant 0 : i32
    %c0_i32_1 = arith.constant 0 : i32
    return %c0_i32, %c0_i32_0 : i32, i32
  }
  func.func @transform_13(%arg0: i32) -> (i32, i32, i32) {
    %c0_i32 = arith.constant 0 : i32
    %c0_i32_0 = arith.constant 0 : i32
    %c0_i32_1 = arith.constant 0 : i32
    %c0_i32_2 = arith.constant 0 : i32
    return %c0_i32, %c0_i32_0, %c0_i32_1 : i32, i32, i32
  }
  func.func @transform_14(%arg0: i32) -> (i32, i32) {
    %c0_i32 = arith.constant 0 : i32
    %c0_i32_0 = arith.constant 0 : i32
    %c0_i32_1 = arith.constant 0 : i32
    return %c0_i32, %c0_i32_0 : i32, i32
  }
  func.func @transform_15(%arg0: i32) -> (i32, i32) {
    %c0_i32 = arith.constant 0 : i32
    %c0_i32_0 = arith.constant 0 : i32
    %c0_i32_1 = arith.constant 0 : i32
    return %c0_i32, %c0_i32_0 : i32, i32
  }
  func.func @transform_16(%arg0: i32) -> (i32, i32) {
    %c0_i32 = arith.constant 0 : i32
    %c0_i32_0 = arith.constant 0 : i32
    %c0_i32_1 = arith.constant 0 : i32
    return %c0_i32, %c0_i32_0 : i32, i32
  }
  func.func @transform_17(%arg0: i32) -> (i32, i32) {
    %c0_i32 = arith.constant 0 : i32
    %c0_i32_0 = arith.constant 0 : i32
    %c0_i32_1 = arith.constant 0 : i32
    return %c0_i32, %c0_i32_0 : i32, i32
  }
  func.func @transform_18(%arg0: i32) -> (i32, i32, i32) {
    %c0_i32 = arith.constant 0 : i32
    %c0_i32_0 = arith.constant 0 : i32
    %c0_i32_1 = arith.constant 0 : i32
    %c0_i32_2 = arith.constant 0 : i32
    return %c0_i32, %c0_i32_0, %c0_i32_1 : i32, i32, i32
  }
  func.func @transform_19(%arg0: i32) -> (i32, i32) {
    %c0_i32 = arith.constant 0 : i32
    %c0_i32_0 = arith.constant 0 : i32
    %c0_i32_1 = arith.constant 0 : i32
    return %c0_i32, %c0_i32_0 : i32, i32
  }
  func.func @transform_20(%arg0: i32) -> (i32, i32) {
    %c0_i32 = arith.constant 0 : i32
    %c0_i32_0 = arith.constant 0 : i32
    %c0_i32_1 = arith.constant 0 : i32
    return %c0_i32, %c0_i32_0 : i32, i32
  }
  func.func @transform_21(%arg0: i32) -> (i32, i32) {
    %c0_i32 = arith.constant 0 : i32
    %c0_i32_0 = arith.constant 0 : i32
    %c0_i32_1 = arith.constant 0 : i32
    return %c0_i32, %c0_i32_0 : i32, i32
  }
  func.func @transform_22(%arg0: i32) -> (i32, i32) {
    %c0_i32 = arith.constant 0 : i32
    %c0_i32_0 = arith.constant 0 : i32
    %c0_i32_1 = arith.constant 0 : i32
    return %c0_i32, %c0_i32_0 : i32, i32
  }
  func.func @transform_23(%arg0: i32) -> (i32, i32, i32) {
    %c0_i32 = arith.constant 0 : i32
    %c0_i32_0 = arith.constant 0 : i32
    %c0_i32_1 = arith.constant 0 : i32
    return %c0_i32, %c0_i32_0, %arg0 : i32, i32, i32
  }
  func.func @transform_24(%arg0: i32) -> (i32, i32, i32) {
    %c0_i32 = arith.constant 0 : i32
    %c0_i32_0 = arith.constant 0 : i32
    %c0_i32_1 = arith.constant 0 : i32
    return %arg0, %c0_i32, %c0_i32_0 : i32, i32, i32
  }
}

</mosaic_0001>

<llo_original>
// kernel: dense_tblock_forward.3
$region0: #{dense_tblock_forward.3}
  #allocation0 [shape = 'u32[]', space=smem, size = 0x4, offset = 0x4, fixed_abs, tag = 'smem constant byte address 0x4 - core index']
  #allocation1 [shape = 'u32[144,128]{1,0:T(1,128)}', space=vmem, size = 0x12000, scoped, tag = 'internal scratch']
  %s0 = inlined_call_operand.vmem [shape: f32[1,32,1], index: 0, kind: input, shape index: {}]
  %s1 = inlined_call_operand.vmem [shape: f32[2,32], index: 1, kind: input, shape index: {}]
  %s2 = inlined_call_operand.vmem [shape: f32[32,2], index: 2, kind: input, shape index: {}]
  %s3 = inlined_call_operand.vmem [shape: f32[8,32,64], index: 3, kind: input, shape index: {}]
  %s4 = inlined_call_operand.vmem [shape: f32[8,32,64], index: 4, kind: output, shape index: {}]
  %s5 = sld [smem:[#allocation0]]
  $region26: #{dense_tblock_forward.3} parent=0
    _
  %s7 = ssub.s32 1, %s5
  %s8 = scalar_select 0, %s7, %s5
  // Predicated region
  $region2: #{dense_tblock_forward.3} parent=0 // pred_check
    _
  $region3: #{dense_tblock_forward.3} parent=0 // pred_check_branch
    %10 = sbr.rel (0) target = $region5
  $region4: #{dense_tblock_forward.3} parent=0 // pred_region
    _
  $region5: #{dense_tblock_forward.3} parent=0 // pred_fallthru
    _
  // Predicated region
  $region6: #{dense_tblock_forward.3} parent=0 // pred_check
    _
  $region7: #{dense_tblock_forward.3} parent=0 // pred_check_branch
    %12 = sbr.rel (0) target = $region9
  $region8: #{dense_tblock_forward.3} parent=0 // pred_region
    _
  $region9: #{dense_tblock_forward.3} parent=0 // pred_fallthru
    _
  // Predicated region
  $region10: #{dense_tblock_forward.3} parent=0 // pred_check
    _
  $region11: #{dense_tblock_forward.3} parent=0 // pred_check_branch
    %14 = sbr.rel (0) target = $region13
  $region12: #{dense_tblock_forward.3} parent=0 // pred_region
    _
  $region13: #{dense_tblock_forward.3} parent=0 // pred_fallthru
    _
  // Predicated region
  $region14: #{dense_tblock_forward.3} parent=0 // pred_check
    _
  $region15: #{dense_tblock_forward.3} parent=0 // pred_check_branch
    %16 = sbr.rel (0) target = $region17
  $region16: #{dense_tblock_forward.3} parent=0 // pred_region
    _
  $region17: #{dense_tblock_forward.3} parent=0 // pred_fallthru
    _
  %v17 = vld [vmem:[%s0] sm:$0xff]
  %v18 = vld [vmem:[%s0 + $0x8] sm:$0xff]
  %v19 = vld [vmem:[%s0 + $0x10] sm:$0xff]
  %v20 = vld [vmem:[%s0 + $0x18] sm:$0xff]
  %v21 = vadd.f32 %v17, 0.0
  %v22 = vadd.f32 %v18, 0.0
  %v23 = vadd.f32 %v19, 0.0
  %v24 = vadd.f32 %v20, 0.0
  %v25 = vmul.f32 %v21, 0.001953125
  %v26 = vmul.f32 %v22, 0.001953125
  %v27 = vmul.f32 %v23, 0.001953125
  %v28 = vmul.f32 %v24, 0.001953125
  %v29 = vld [vmem:[%s1] sm:$0x3]
  %vm30 = vcmask 261120
  %v32 = vsel %vm30, %v29, 0
  %34 = vmatprep.subr.mxu0 0.0
  %35 = vmatpush1.msra.mxu0 0.0
  %36 = vmatprep.subr.mxu0 0.0
  %37 = vmatpush1.msra.mxu0 0.0
  %38 = vmatprep.subr.mxu0 0.0
  %39 = vmatpush1.msra.mxu0 0.0
  %40 = vmatprep.subr.mxu0 0.0
  %41 = vmatpush1.msra.mxu0 0.0
  %42 = vmatprep.subr.mxu0 0.0
  %43 = vmatpush1.msra.mxu0 0.0
  %44 = vmatprep.subr.mxu0 0.0
  %45 = vmatpush1.msra.mxu0 0.0
  %46 = vmatprep.subr.mxu0 0.0
  %47 = vmatpush1.msra.mxu0 0.0
  %48 = vmatprep.subr.mxu0 0.0
  %49 = vmatpush1.msra.mxu0 0.0
  %50 = vmatprep.subr.mxu0 0.0
  %51 = vmatpush1.msra.mxu0 0.0
  %52 = vmatprep.subr.mxu0 0.0
  %53 = vmatpush1.msra.mxu0 0.0
  %54 = vmatprep.subr.mxu0 0.0
  %55 = vmatpush1.msra.mxu0 0.0
  %56 = vmatprep.subr.mxu0 0.0
  %57 = vmatpush1.msra.mxu0 0.0
  %58 = vmatprep.subr.mxu0 0.0
  %59 = vmatpush1.msra.mxu0 %v28
  %60 = vmatprep.subr.mxu0 0.0
  %61 = vmatpush1.msra.mxu0 %v27
  %62 = vmatprep.subr.mxu0 0.0
  %63 = vmatpush1.msra.mxu0 %v26
  %64 = vmatprep.subr.mxu0 0.0
  %65 = vmatpush1.msra.mxu0 %v25
  %66 = vmatprep.subr.mxu0 0.0
  %67 = vmatpush2.msra.mxu0 0.0
  %68 = vmatprep.subr.mxu0 0.0
  %69 = vmatpush2.msra.mxu0 0.0
  %70 = vmatprep.subr.mxu0 0.0
  %71 = vmatpush2.msra.mxu0 0.0
  %72 = vmatprep.subr.mxu0 0.0
  %73 = vmatpush2.msra.mxu0 0.0
  %74 = vmatprep.subr.mxu0 0.0
  %75 = vmatpush2.msra.mxu0 0.0
  %76 = vmatprep.subr.mxu0 0.0
  %77 = vmatpush2.msra.mxu0 0.0
  %78 = vmatprep.subr.mxu0 0.0
  %79 = vmatpush2.msra.mxu0 0.0
  %80 = vmatprep.subr.mxu0 0.0
  %81 = vmatpush2.msra.mxu0 0.0
  %82 = vmatprep.subr.mxu0 0.0
  %83 = vmatpush2.msra.mxu0 0.0
  %84 = vmatprep.subr.mxu0 0.0
  %85 = vmatpush2.msra.mxu0 0.0
  %86 = vmatprep.subr.mxu0 0.0
  %87 = vmatpush2.msra.mxu0 0.0
  %88 = vmatprep.subr.mxu0 0.0
  %89 = vmatpush2.msra.mxu0 0.0
  %90 = vmatprep.subr.mxu0 0.0
  %91 = vmatpush2.msra.mxu0 0.0
  %92 = vmatprep.subr.mxu0 0.0
  %93 = vmatpush2.msra.mxu0 0.0
  %94 = vmatprep.subr.mxu0 0.0
  %95 = vmatpush2.msra.mxu0 0.0
  %96 = vmatprep.subr.mxu0 0.0
  %97 = vmatpush2.msra.mxu0 0.0
  %98 = vmatprep.mubr.f32.mxu0 0.0
  %99 = vmatmul.mubr.f32.gmra.mxu0 %v32
  %v100 = vpop.f32.mrf.mxu0
  %v101 = vadd.f32 0.0, %v100
  %v102 = vpop.f32.mrf.mxu0
  %103 = vdwg.mxu0
  %v104 = vmax.f32 %v101, 0.0
  %v105 = vld [vmem:[%s2] sm:$0xff]
  %v106 = vld [vmem:[%s2 + $0x8] sm:$0xff]
  %v107 = vld [vmem:[%s2 + $0x10] sm:$0xff]
  %v108 = vld [vmem:[%s2 + $0x18] sm:$0xff]
  %vm109 = vcmask 15360
  %v111 = vsel %vm109, %v105, 0
  %v114 = vsel %vm109, %v106, 0
  %v117 = vsel %vm109, %v107, 0
  %v120 = vsel %vm109, %v108, 0
  %vm122 = vcmask 1041408
  %v124 = vsel %vm122, %v104, 0
  %126 = vmatprep.subr.mxu0 0.0
  %127 = vmatpush1.msra.mxu0 0.0
  %128 = vmatprep.subr.mxu0 0.0
  %129 = vmatpush1.msra.mxu0 0.0
  %130 = vmatprep.subr.mxu0 0.0
  %131 = vmatpush1.msra.mxu0 0.0
  %132 = vmatprep.subr.mxu0 0.0
  %133 = vmatpush1.msra.mxu0 0.0
  %134 = vmatprep.subr.mxu0 0.0
  %135 = vmatpush1.msra.mxu0 0.0
  %136 = vmatprep.subr.mxu0 0.0
  %137 = vmatpush1.msra.mxu0 0.0
  %138 = vmatprep.subr.mxu0 0.0
  %139 = vmatpush1.msra.mxu0 0.0
  %140 = vmatprep.subr.mxu0 0.0
  %141 = vmatpush1.msra.mxu0 0.0
  %142 = vmatprep.subr.mxu0 0.0
  %143 = vmatpush1.msra.mxu0 0.0
  %144 = vmatprep.subr.mxu0 0.0
  %145 = vmatpush1.msra.mxu0 0.0
  %146 = vmatprep.subr.mxu0 0.0
  %147 = vmatpush1.msra.mxu0 0.0
  %148 = vmatprep.subr.mxu0 0.0
  %149 = vmatpush1.msra.mxu0 0.0
  %150 = vmatprep.subr.mxu0 0.0
  %151 = vmatpush1.msra.mxu0 0.0
  %152 = vmatprep.subr.mxu0 0.0
  %153 = vmatpush1.msra.mxu0 0.0
  %154 = vmatprep.subr.mxu0 0.0
  %155 = vmatpush1.msra.mxu0 0.0
  %156 = vmatprep.subr.mxu0 0.0
  %157 = vmatpush1.msra.mxu0 %v124
  %158 = vmatprep.subr.mxu0 0.0
  %159 = vmatpush2.msra.mxu0 0.0
  %160 = vmatprep.subr.mxu0 0.0
  %161 = vmatpush2.msra.mxu0 0.0
  %162 = vmatprep.subr.mxu0 0.0
  %163 = vmatpush2.msra.mxu0 0.0
  %164 = vmatprep.subr.mxu0 0.0
  %165 = vmatpush2.msra.mxu0 0.0
  %166 = vmatprep.subr.mxu0 0.0
  %167 = vmatpush2.msra.mxu0 0.0
  %168 = vmatprep.subr.mxu0 0.0
  %169 = vmatpush2.msra.mxu0 0.0
  %170 = vmatprep.subr.mxu0 0.0
  %171 = vmatpush2.msra.mxu0 0.0
  %172 = vmatprep.subr.mxu0 0.0
  %173 = vmatpush2.msra.mxu0 0.0
  %174 = vmatprep.subr.mxu0 0.0
  %175 = vmatpush2.msra.mxu0 0.0
  %176 = vmatprep.subr.mxu0 0.0
  %177 = vmatpush2.msra.mxu0 0.0
  %178 = vmatprep.subr.mxu0 0.0
  %179 = vmatpush2.msra.mxu0 0.0
  %180 = vmatprep.subr.mxu0 0.0
  %181 = vmatpush2.msra.mxu0 0.0
  %182 = vmatprep.subr.mxu0 0.0
  %183 = vmatpush2.msra.mxu0 0.0
  %184 = vmatprep.subr.mxu0 0.0
  %185 = vmatpush2.msra.mxu0 0.0
  %186 = vmatprep.subr.mxu0 0.0
  %187 = vmatpush2.msra.mxu0 0.0
  %188 = vmatprep.subr.mxu0 0.0
  %189 = vmatpush2.msra.mxu0 0.0
  %190 = vmatprep.mubr.f32.mxu0 0.0
  %191 = vmatmul.mubr.f32.gmra.mxu0 %v111
  %v192 = vpop.f32.mrf.mxu0
  %v193 = vadd.f32 0.0, %v192
  %v194 = vpop.f32.mrf.mxu0
  %195 = vmatprep.mubr.f32.mxu0 0.0
  %196 = vmatmul.mubr.f32.gmra.mxu0 %v114
  %v197 = vpop.f32.mrf.mxu0
  %v198 = vadd.f32 0.0, %v197
  %v199 = vpop.f32.mrf.mxu0
  %200 = vmatprep.mubr.f32.mxu0 0.0
  %201 = vmatmul.mubr.f32.gmra.mxu0 %v117
  %v202 = vpop.f32.mrf.mxu0
  %v203 = vadd.f32 0.0, %v202
  %v204 = vpop.f32.mrf.mxu0
  %205 = vmatprep.mubr.f32.mxu0 0.0
  %206 = vmatmul.mubr.f32.gmra.mxu0 %v120
  %v207 = vpop.f32.mrf.mxu0
  %v208 = vadd.f32 0.0, %v207
  %v209 = vpop.f32.mrf.mxu0
  %210 = vdwg.mxu0
  %v211 = vsub.f32 0.0, %v193
  %v212 = vsub.f32 0.0, %v198
  %v213 = vsub.f32 0.0, %v203
  %v214 = vsub.f32 0.0, %v208
  %v215 = vmul.f32 %v211, 1.442695
  %v216 = vpow.pop %v215
  %v217 = vmul.f32 %v212, 1.442695
  %v218 = vpow.pop %v217
  %v219 = vmul.f32 %v213, 1.442695
  %v220 = vpow.pop %v219
  %v221 = vmul.f32 %v214, 1.442695
  %v222 = vpow.pop %v221
  %v223 = vadd.f32 %v216, 1.0
  %v224 = vadd.f32 %v218, 1.0
  %v225 = vadd.f32 %v220, 1.0
  %v226 = vadd.f32 %v222, 1.0
  %v227 = vrcp.pop %v223
  %v228 = vmul.f32 1.0, %v227
  %v229 = vrcp.pop %v224
  %v230 = vmul.f32 1.0, %v229
  %v231 = vrcp.pop %v225
  %v232 = vmul.f32 1.0, %v231
  %v233 = vrcp.pop %v226
  %v234 = vmul.f32 1.0, %v233
  %v235 = vld [vmem:[%s3] sm:$0xff]
  %v236 = vld [vmem:[%s3 + $0x8] sm:$0xff]
  %v237 = vld [vmem:[%s3 + $0x10] sm:$0xff]
  %v238 = vld [vmem:[%s3 + $0x18] sm:$0xff]
  %240 = vset.pattern.permute.xlu0 0
  %241 = vperm.xlu0 %240, %v228
  %v242 = vpop.permute.xlu0 %241
  %245 = vset.pattern.permute.xlu0 0
  %246 = vperm.xlu0 %245, %v230
  %v247 = vpop.permute.xlu0 %246
  %250 = vset.pattern.permute.xlu0 0
  %251 = vperm.xlu0 %250, %v232
  %v252 = vpop.permute.xlu0 %251
  %255 = vset.pattern.permute.xlu0 0
  %256 = vperm.xlu0 %255, %v234
  %v257 = vpop.permute.xlu0 %256
  %v259 = vmul.f32 %v235, %v242
  %v260 = vmul.f32 %v236, %v247
  %v261 = vmul.f32 %v237, %v252
  %v262 = vmul.f32 %v238, %v257
  %vm263 = vcmask 523264
  %264 = vst.msk [vmem:[%s4] sm:$0xff] %vm263, %v259
  %265 = vst.msk [vmem:[%s4 + $0x8] sm:$0xff] %vm263, %v260
  %266 = vst.msk [vmem:[%s4 + $0x10] sm:$0xff] %vm263, %v261
  %267 = vst.msk [vmem:[%s4 + $0x18] sm:$0xff] %vm263, %v262
  %s268 = scalar_lea.vmem %s3, 32
  %v269 = vld [vmem:[%s268] sm:$0xff]
  %v270 = vld [vmem:[%s268 + $0x8] sm:$0xff]
  %v271 = vld [vmem:[%s268 + $0x10] sm:$0xff]
  %v272 = vld [vmem:[%s268 + $0x18] sm:$0xff]
  %v273 = vmul.f32 %v269, %v242
  %v274 = vmul.f32 %v270, %v247
  %v275 = vmul.f32 %v271, %v252
  %v276 = vmul.f32 %v272, %v257
  %s277 = scalar_lea.vmem %s4, 32
  %278 = vst.msk [vmem:[%s277] sm:$0xff] %vm263, %v273
  %279 = vst.msk [vmem:[%s277 + $0x8] sm:$0xff] %vm263, %v274
  %280 = vst.msk [vmem:[%s277 + $0x10] sm:$0xff] %vm263, %v275
  %281 = vst.msk [vmem:[%s277 + $0x18] sm:$0xff] %vm263, %v276
  %s282 = scalar_lea.vmem %s3, 64
  %v283 = vld [vmem:[%s282] sm:$0xff]
  %v284 = vld [vmem:[%s282 + $0x8] sm:$0xff]
  %v285 = vld [vmem:[%s282 + $0x10] sm:$0xff]
  %v286 = vld [vmem:[%s282 + $0x18] sm:$0xff]
  %v287 = vmul.f32 %v283, %v242
  %v288 = vmul.f32 %v284, %v247
  %v289 = vmul.f32 %v285, %v252
  %v290 = vmul.f32 %v286, %v257
  %s291 = scalar_lea.vmem %s4, 64
  %292 = vst.msk [vmem:[%s291] sm:$0xff] %vm263, %v287
  %293 = vst.msk [vmem:[%s291 + $0x8] sm:$0xff] %vm263, %v288
  %294 = vst.msk [vmem:[%s291 + $0x10] sm:$0xff] %vm263, %v289
  %295 = vst.msk [vmem:[%s291 + $0x18] sm:$0xff] %vm263, %v290
  %s296 = scalar_lea.vmem %s3, 96
  %v297 = vld [vmem:[%s296] sm:$0xff]
  %v298 = vld [vmem:[%s296 + $0x8] sm:$0xff]
  %v299 = vld [vmem:[%s296 + $0x10] sm:$0xff]
  %v300 = vld [vmem:[%s296 + $0x18] sm:$0xff]
  %v301 = vmul.f32 %v297, %v242
  %v302 = vmul.f32 %v298, %v247
  %v303 = vmul.f32 %v299, %v252
  %v304 = vmul.f32 %v300, %v257
  %s305 = scalar_lea.vmem %s4, 96
  %306 = vst.msk [vmem:[%s305] sm:$0xff] %vm263, %v301
  %307 = vst.msk [vmem:[%s305 + $0x8] sm:$0xff] %vm263, %v302
  %308 = vst.msk [vmem:[%s305 + $0x10] sm:$0xff] %vm263, %v303
  %309 = vst.msk [vmem:[%s305 + $0x18] sm:$0xff] %vm263, %v304
  %s310 = scalar_lea.vmem %s3, 128
  %v311 = vld [vmem:[%s310] sm:$0xff]
  %v312 = vld [vmem:[%s310 + $0x8] sm:$0xff]
  %v313 = vld [vmem:[%s310 + $0x10] sm:$0xff]
  %v314 = vld [vmem:[%s310 + $0x18] sm:$0xff]
  %v315 = vmul.f32 %v311, %v242
  %v316 = vmul.f32 %v312, %v247
  %v317 = vmul.f32 %v313, %v252
  %v318 = vmul.f32 %v314, %v257
  %s319 = scalar_lea.vmem %s4, 128
  %320 = vst.msk [vmem:[%s319] sm:$0xff] %vm263, %v315
  %321 = vst.msk [vmem:[%s319 + $0x8] sm:$0xff] %vm263, %v316
  %322 = vst.msk [vmem:[%s319 + $0x10] sm:$0xff] %vm263, %v317
  %323 = vst.msk [vmem:[%s319 + $0x18] sm:$0xff] %vm263, %v318
  %s324 = scalar_lea.vmem %s3, 160
  %v325 = vld [vmem:[%s324] sm:$0xff]
  %v326 = vld [vmem:[%s324 + $0x8] sm:$0xff]
  %v327 = vld [vmem:[%s324 + $0x10] sm:$0xff]
  %v328 = vld [vmem:[%s324 + $0x18] sm:$0xff]
  %v329 = vmul.f32 %v325, %v242
  %v330 = vmul.f32 %v326, %v247
  %v331 = vmul.f32 %v327, %v252
  %v332 = vmul.f32 %v328, %v257
  %s333 = scalar_lea.vmem %s4, 160
  %334 = vst.msk [vmem:[%s333] sm:$0xff] %vm263, %v329
  %335 = vst.msk [vmem:[%s333 + $0x8] sm:$0xff] %vm263, %v330
  %336 = vst.msk [vmem:[%s333 + $0x10] sm:$0xff] %vm263, %v331
  %337 = vst.msk [vmem:[%s333 + $0x18] sm:$0xff] %vm263, %v332
  %s338 = scalar_lea.vmem %s3, 192
  %v339 = vld [vmem:[%s338] sm:$0xff]
  %v340 = vld [vmem:[%s338 + $0x8] sm:$0xff]
  %v341 = vld [vmem:[%s338 + $0x10] sm:$0xff]
  %v342 = vld [vmem:[%s338 + $0x18] sm:$0xff]
  %v343 = vmul.f32 %v339, %v242
  %v344 = vmul.f32 %v340, %v247
  %v345 = vmul.f32 %v341, %v252
  %v346 = vmul.f32 %v342, %v257
  %s347 = scalar_lea.vmem %s4, 192
  %348 = vst.msk [vmem:[%s347] sm:$0xff] %vm263, %v343
  %349 = vst.msk [vmem:[%s347 + $0x8] sm:$0xff] %vm263, %v344
  %350 = vst.msk [vmem:[%s347 + $0x10] sm:$0xff] %vm263, %v345
  %351 = vst.msk [vmem:[%s347 + $0x18] sm:$0xff] %vm263, %v346
  %s352 = scalar_lea.vmem %s3, 224
  %v353 = vld [vmem:[%s352] sm:$0xff]
  %v354 = vld [vmem:[%s352 + $0x8] sm:$0xff]
  %v355 = vld [vmem:[%s352 + $0x10] sm:$0xff]
  %v356 = vld [vmem:[%s352 + $0x18] sm:$0xff]
  %v357 = vmul.f32 %v353, %v242
  %v358 = vmul.f32 %v354, %v247
  %v359 = vmul.f32 %v355, %v252
  %v360 = vmul.f32 %v356, %v257
  %s361 = scalar_lea.vmem %s4, 224
  %362 = vst.msk [vmem:[%s361] sm:$0xff] %vm263, %v357
  %363 = vst.msk [vmem:[%s361 + $0x8] sm:$0xff] %vm263, %v358
  %364 = vst.msk [vmem:[%s361 + $0x10] sm:$0xff] %vm263, %v359
  %365 = vst.msk [vmem:[%s361 + $0x18] sm:$0xff] %vm263, %v360
  // Predicated region
  $region18: #{dense_tblock_forward.3} parent=0 // pred_check
    _
  $region19: #{dense_tblock_forward.3} parent=0 // pred_check_branch
    %367 = sbr.rel (0) target = $region21
  $region20: #{dense_tblock_forward.3} parent=0 // pred_region
    _
  $region21: #{dense_tblock_forward.3} parent=0 // pred_fallthru
    _
  // Predicated region
  $region22: #{dense_tblock_forward.3} parent=0 // pred_check
    _
  $region23: #{dense_tblock_forward.3} parent=0 // pred_check_branch
    %369 = sbr.rel (0) target = $region25
  $region24: #{dense_tblock_forward.3} parent=0 // pred_region
    _
  $region25: #{dense_tblock_forward.3} parent=0 // pred_fallthru
    _

// kernel: dense_tblock_forward.2
$region0: #{dense_tblock_forward.2}
  #allocation0 [shape = 'u32[]', space=smem, size = 0x4, offset = 0x4, fixed_abs, tag = 'smem constant byte address 0x4 - core index']
  #allocation1 [shape = 'u32[144,128]{1,0:T(1,128)}', space=vmem, size = 0x12000, scoped, tag = 'internal scratch']
  %s0 = inlined_call_operand.vmem [shape: f32[8,32,64], index: 0, kind: input, shape index: {}]
  %s1 = inlined_call_operand.vmem [shape: f32[16,32], index: 1, kind: input, shape index: {}]
  %s2 = inlined_call_operand.vmem [shape: f32[16,1], index: 2, kind: input, shape index: {}]
  %s3 = inlined_call_operand.vmem [shape: f32[3,8,16], index: 3, kind: input, shape index: {}]
  %s4 = inlined_call_operand.vmem [shape: f32[8,1], index: 4, kind: input, shape index: {}]
  %s5 = inlined_call_operand.vmem [shape: f32[16,32], index: 5, kind: input, shape index: {}]
  %s6 = inlined_call_operand.vmem [shape: f32[16,8], index: 6, kind: input, shape index: {}]
  %s7 = inlined_call_operand.vmem [shape: f32[16,1], index: 7, kind: input, shape index: {}]
  %s8 = inlined_call_operand.vmem [shape: f32[3,8,16], index: 8, kind: input, shape index: {}]
  %s9 = inlined_call_operand.vmem [shape: f32[8,1], index: 9, kind: input, shape index: {}]
  %s10 = inlined_call_operand.vmem [shape: f32[16,8], index: 10, kind: input, shape index: {}]
  %s11 = inlined_call_operand.vmem [shape: f32[16,8], index: 11, kind: input, shape index: {}]
  %s12 = inlined_call_operand.vmem [shape: f32[16,1], index: 12, kind: input, shape index: {}]
  %s13 = inlined_call_operand.vmem [shape: f32[4,8,16], index: 13, kind: input, shape index: {}]
  %s14 = inlined_call_operand.vmem [shape: f32[8,1], index: 14, kind: input, shape index: {}]
  %s15 = inlined_call_operand.vmem [shape: f32[16,8], index: 15, kind: input, shape index: {}]
  %s16 = inlined_call_operand.vmem [shape: f32[16,8], index: 16, kind: input, shape index: {}]
  %s17 = inlined_call_operand.vmem [shape: f32[16,1], index: 17, kind: input, shape index: {}]
  %s18 = inlined_call_operand.vmem [shape: f32[5,8,16], index: 18, kind: input, shape index: {}]
  %s19 = inlined_call_operand.vmem [shape: f32[8,1], index: 19, kind: input, shape index: {}]
  %s20 = inlined_call_operand.vmem [shape: f32[32,8], index: 20, kind: input, shape index: {}]
  %s21 = inlined_call_operand.vmem [shape: f32[32,8], index: 21, kind: input, shape index: {}]
  %s22 = inlined_call_operand.vmem [shape: f32[32,1], index: 22, kind: input, shape index: {}]
  %s23 = inlined_call_operand.vmem [shape: f32[8,32,64], index: 23, kind: output, shape index: {0}]
  %s24 = inlined_call_operand.vmem [shape: f32[1,32,1], index: 24, kind: output, shape index: {1}]
  %25 = xla_tuple %s23, %s24
  %s26 = sld [smem:[#allocation0]]
  $region110: #{dense_tblock_forward.2} parent=0
    _
  %s28 = ssub.s32 1, %s26
  %s29 = scalar_select 0, %s28, %s26
  // Predicated region
  $region2: #{dense_tblock_forward.2} parent=0 // pred_check
    _
  $region3: #{dense_tblock_forward.2} parent=0 // pred_check_branch
    %31 = sbr.rel (0) target = $region5
  $region4: #{dense_tblock_forward.2} parent=0 // pred_region
    _
  $region5: #{dense_tblock_forward.2} parent=0 // pred_fallthru
    _
  // Predicated region
  $region6: #{dense_tblock_forward.2} parent=0 // pred_check
    _
  $region7: #{dense_tblock_forward.2} parent=0 // pred_check_branch
    %33 = sbr.rel (0) target = $region9
  $region8: #{dense_tblock_forward.2} parent=0 // pred_region
    _
  $region9: #{dense_tblock_forward.2} parent=0 // pred_fallthru
    _
  // Predicated region
  $region10: #{dense_tblock_forward.2} parent=0 // pred_check
    _
  $region11: #{dense_tblock_forward.2} parent=0 // pred_check_branch
    %35 = sbr.rel (0) target = $region13
  $region12: #{dense_tblock_forward.2} parent=0 // pred_region
    _
  $region13: #{dense_tblock_forward.2} parent=0 // pred_fallthru
    _
  // Predicated region
  $region14: #{dense_tblock_forward.2} parent=0 // pred_check
    _
  $region15: #{dense_tblock_forward.2} parent=0 // pred_check_branch
    %37 = sbr.rel (0) target = $region17
  $region16: #{dense_tblock_forward.2} parent=0 // pred_region
    _
  $region17: #{dense_tblock_forward.2} parent=0 // pred_fallthru
    _
  // Predicated region
  $region18: #{dense_tblock_forward.2} parent=0 // pred_check
    _
  $region19: #{dense_tblock_forward.2} parent=0 // pred_check_branch
    %39 = sbr.rel (0) target = $region21
  $region20: #{dense_tblock_forward.2} parent=0 // pred_region
    _
  $region21: #{dense_tblock_forward.2} parent=0 // pred_fallthru
    _
  // Predicated region
  $region22: #{dense_tblock_forward.2} parent=0 // pred_check
    _
  $region23: #{dense_tblock_forward.2} parent=0 // pred_check_branch
    %41 = sbr.rel (0) target = $region25
  $region24: #{dense_tblock_forward.2} parent=0 // pred_region
    _
  $region25: #{dense_tblock_forward.2} parent=0 // pred_fallthru
    _
  // Predicated region
  $region26: #{dense_tblock_forward.2} parent=0 // pred_check
    _
  $region27: #{dense_tblock_forward.2} parent=0 // pred_check_branch
    %43 = sbr.rel (0) target = $region29
  $region28: #{dense_tblock_forward.2} parent=0 // pred_region
    _
  $region29: #{dense_tblock_forward.2} parent=0 // pred_fallthru
    _
  // Predicated region
  $region30: #{dense_tblock_forward.2} parent=0 // pred_check
    _
  $region31: #{dense_tblock_forward.2} parent=0 // pred_check_branch
    %45 = sbr.rel (0) target = $region33
  $region32: #{dense_tblock_forward.2} parent=0 // pred_region
    _
  $region33: #{dense_tblock_forward.2} parent=0 // pred_fallthru
    _
  // Predicated region
  $region34: #{dense_tblock_forward.2} parent=0 // pred_check
    _
  $region35: #{dense_tblock_forward.2} parent=0 // pred_check_branch
    %47 = sbr.rel (0) target = $region37
  $region36: #{dense_tblock_forward.2} parent=0 // pred_region
    _
  $region37: #{dense_tblock_forward.2} parent=0 // pred_fallthru
    _
  // Predicated region
  $region38: #{dense_tblock_forward.2} parent=0 // pred_check
    _
  $region39: #{dense_tblock_forward.2} parent=0 // pred_check_branch
    %49 = sbr.rel (0) target = $region41
  $region40: #{dense_tblock_forward.2} parent=0 // pred_region
    _
  $region41: #{dense_tblock_forward.2} parent=0 // pred_fallthru
    _
  // Predicated region
  $region42: #{dense_tblock_forward.2} parent=0 // pred_check
    _
  $region43: #{dense_tblock_forward.2} parent=0 // pred_check_branch
    %51 = sbr.rel (0) target = $region45
  $region44: #{dense_tblock_forward.2} parent=0 // pred_region
    _
  $region45: #{dense_tblock_forward.2} parent=0 // pred_fallthru
    _
  // Predicated region
  $region46: #{dense_tblock_forward.2} parent=0 // pred_check
    _
  $region47: #{dense_tblock_forward.2} parent=0 // pred_check_branch
    %53 = sbr.rel (0) target = $region49
  $region48: #{dense_tblock_forward.2} parent=0 // pred_region
    _
  $region49: #{dense_tblock_forward.2} parent=0 // pred_fallthru
    _
  // Predicated region
  $region50: #{dense_tblock_forward.2} parent=0 // pred_check
    _
  $region51: #{dense_tblock_forward.2} parent=0 // pred_check_branch
    %55 = sbr.rel (0) target = $region53
  $region52: #{dense_tblock_forward.2} parent=0 // pred_region
    _
  $region53: #{dense_tblock_forward.2} parent=0 // pred_fallthru
    _
  // Predicated region
  $region54: #{dense_tblock_forward.2} parent=0 // pred_check
    _
  $region55: #{dense_tblock_forward.2} parent=0 // pred_check_branch
    %57 = sbr.rel (0) target = $region57
  $region56: #{dense_tblock_forward.2} parent=0 // pred_region
    _
  $region57: #{dense_tblock_forward.2} parent=0 // pred_fallthru
    _
  // Predicated region
  $region58: #{dense_tblock_forward.2} parent=0 // pred_check
    _
  $region59: #{dense_tblock_forward.2} parent=0 // pred_check_branch
    %59 = sbr.rel (0) target = $region61
  $region60: #{dense_tblock_forward.2} parent=0 // pred_region
    _
  $region61: #{dense_tblock_forward.2} parent=0 // pred_fallthru
    _
  // Predicated region
  $region62: #{dense_tblock_forward.2} parent=0 // pred_check
    _
  $region63: #{dense_tblock_forward.2} parent=0 // pred_check_branch
    %61 = sbr.rel (0) target = $region65
  $region64: #{dense_tblock_forward.2} parent=0 // pred_region
    _
  $region65: #{dense_tblock_forward.2} parent=0 // pred_fallthru
    _
  // Predicated region
  $region66: #{dense_tblock_forward.2} parent=0 // pred_check
    _
  $region67: #{dense_tblock_forward.2} parent=0 // pred_check_branch
    %63 = sbr.rel (0) target = $region69
  $region68: #{dense_tblock_forward.2} parent=0 // pred_region
    _
  $region69: #{dense_tblock_forward.2} parent=0 // pred_fallthru
    _
  // Predicated region
  $region70: #{dense_tblock_forward.2} parent=0 // pred_check
    _
  $region71: #{dense_tblock_forward.2} parent=0 // pred_check_branch
    %65 = sbr.rel (0) target = $region73
  $region72: #{dense_tblock_forward.2} parent=0 // pred_region
    _
  $region73: #{dense_tblock_forward.2} parent=0 // pred_fallthru
    _
  // Predicated region
  $region74: #{dense_tblock_forward.2} parent=0 // pred_check
    _
  $region75: #{dense_tblock_forward.2} parent=0 // pred_check_branch
    %67 = sbr.rel (0) target = $region77
  $region76: #{dense_tblock_forward.2} parent=0 // pred_region
    _
  $region77: #{dense_tblock_forward.2} parent=0 // pred_fallthru
    _
  // Predicated region
  $region78: #{dense_tblock_forward.2} parent=0 // pred_check
    _
  $region79: #{dense_tblock_forward.2} parent=0 // pred_check_branch
    %69 = sbr.rel (0) target = $region81
  $region80: #{dense_tblock_forward.2} parent=0 // pred_region
    _
  $region81: #{dense_tblock_forward.2} parent=0 // pred_fallthru
    _
  // Predicated region
  $region82: #{dense_tblock_forward.2} parent=0 // pred_check
    _
  $region83: #{dense_tblock_forward.2} parent=0 // pred_check_branch
    %71 = sbr.rel (0) target = $region85
  $region84: #{dense_tblock_forward.2} parent=0 // pred_region
    _
  $region85: #{dense_tblock_forward.2} parent=0 // pred_fallthru
    _
  // Predicated region
  $region86: #{dense_tblock_forward.2} parent=0 // pred_check
    _
  $region87: #{dense_tblock_forward.2} parent=0 // pred_check_branch
    %73 = sbr.rel (0) target = $region89
  $region88: #{dense_tblock_forward.2} parent=0 // pred_region
    _
  $region89: #{dense_tblock_forward.2} parent=0 // pred_fallthru
    _
  // Predicated region
  $region90: #{dense_tblock_forward.2} parent=0 // pred_check
    _
  $region91: #{dense_tblock_forward.2} parent=0 // pred_check_branch
    %75 = sbr.rel (0) target = $region93
  $region92: #{dense_tblock_forward.2} parent=0 // pred_region
    _
  $region93: #{dense_tblock_forward.2} parent=0 // pred_fallthru
    _
  %v76 = vld [vmem:[%s0] sm:$0xff]
  %v77 = vld [vmem:[%s0 + $0x8] sm:$0xff]
  %v78 = vld [vmem:[%s0 + $0x10] sm:$0xff]
  %v79 = vld [vmem:[%s0 + $0x18] sm:$0xff]
  %s80 = scalar_lea.vmem %s0, 32
  %v81 = vld [vmem:[%s80] sm:$0xff]
  %v82 = vld [vmem:[%s80 + $0x8] sm:$0xff]
  %v83 = vld [vmem:[%s80 + $0x10] sm:$0xff]
  %v84 = vld [vmem:[%s80 + $0x18] sm:$0xff]
  %s85 = scalar_lea.vmem %s0, 64
  %v86 = vld [vmem:[%s85] sm:$0xff]
  %v87 = vld [vmem:[%s85 + $0x8] sm:$0xff]
  %v88 = vld [vmem:[%s85 + $0x10] sm:$0xff]
  %v89 = vld [vmem:[%s85 + $0x18] sm:$0xff]
  %s90 = scalar_lea.vmem %s0, 96
  %v91 = vld [vmem:[%s90] sm:$0xff]
  %v92 = vld [vmem:[%s90 + $0x8] sm:$0xff]
  %v93 = vld [vmem:[%s90 + $0x10] sm:$0xff]
  %v94 = vld [vmem:[%s90 + $0x18] sm:$0xff]
  %s95 = scalar_lea.vmem %s0, 128
  %v96 = vld [vmem:[%s95] sm:$0xff]
  %v97 = vld [vmem:[%s95 + $0x8] sm:$0xff]
  %v98 = vld [vmem:[%s95 + $0x10] sm:$0xff]
  %v99 = vld [vmem:[%s95 + $0x18] sm:$0xff]
  %s100 = scalar_lea.vmem %s0, 160
  %v101 = vld [vmem:[%s100] sm:$0xff]
  %v102 = vld [vmem:[%s100 + $0x8] sm:$0xff]
  %v103 = vld [vmem:[%s100 + $0x10] sm:$0xff]
  %v104 = vld [vmem:[%s100 + $0x18] sm:$0xff]
  %s105 = scalar_lea.vmem %s0, 192
  %v106 = vld [vmem:[%s105] sm:$0xff]
  %v107 = vld [vmem:[%s105 + $0x8] sm:$0xff]
  %v108 = vld [vmem:[%s105 + $0x10] sm:$0xff]
  %v109 = vld [vmem:[%s105 + $0x18] sm:$0xff]
  %s110 = scalar_lea.vmem %s0, 224
  %v111 = vld [vmem:[%s110] sm:$0xff]
  %v112 = vld [vmem:[%s110 + $0x8] sm:$0xff]
  %v113 = vld [vmem:[%s110 + $0x10] sm:$0xff]
  %v114 = vld [vmem:[%s110 + $0x18] sm:$0xff]
  %119 = vrot.lane.b32.xlu0 %v81, 64
  %v120 = vpop.permute.xlu0 %119
  %121 = vrot.lane.b32.xlu0 %v82, 64
  %v122 = vpop.permute.xlu0 %121
  %123 = vrot.lane.b32.xlu0 %v83, 64
  %v124 = vpop.permute.xlu0 %123
  %125 = vrot.lane.b32.xlu0 %v84, 64
  %v126 = vpop.permute.xlu0 %125
  %135 = vrot.lane.b32.xlu0 %v91, 64
  %v136 = vpop.permute.xlu0 %135
  %137 = vrot.lane.b32.xlu0 %v92, 64
  %v138 = vpop.permute.xlu0 %137
  %139 = vrot.lane.b32.xlu0 %v93, 64
  %v140 = vpop.permute.xlu0 %139
  %141 = vrot.lane.b32.xlu0 %v94, 64
  %v142 = vpop.permute.xlu0 %141
  %151 = vrot.lane.b32.xlu0 %v101, 64
  %v152 = vpop.permute.xlu0 %151
  %153 = vrot.lane.b32.xlu0 %v102, 64
  %v154 = vpop.permute.xlu0 %153
  %155 = vrot.lane.b32.xlu0 %v103, 64
  %v156 = vpop.permute.xlu0 %155
  %157 = vrot.lane.b32.xlu0 %v104, 64
  %v158 = vpop.permute.xlu0 %157
  %167 = vrot.lane.b32.xlu0 %v111, 64
  %v168 = vpop.permute.xlu0 %167
  %169 = vrot.lane.b32.xlu0 %v112, 64
  %v170 = vpop.permute.xlu0 %169
  %171 = vrot.lane.b32.xlu0 %v113, 64
  %v172 = vpop.permute.xlu0 %171
  %173 = vrot.lane.b32.xlu0 %v114, 64
  %v174 = vpop.permute.xlu0 %173
  %vm179 = vcmask 523264
  %v180 = vsel %vm179, %v76, %v120
  %v181 = vsel %vm179, %v77, %v122
  %v182 = vsel %vm179, %v78, %v124
  %v183 = vsel %vm179, %v79, %v126
  %v184 = vsel %vm179, %v86, %v136
  %v185 = vsel %vm179, %v87, %v138
  %v186 = vsel %vm179, %v88, %v140
  %v187 = vsel %vm179, %v89, %v142
  %v188 = vsel %vm179, %v96, %v152
  %v189 = vsel %vm179, %v97, %v154
  %v190 = vsel %vm179, %v98, %v156
  %v191 = vsel %vm179, %v99, %v158
  %v192 = vsel %vm179, %v106, %v168
  %v193 = vsel %vm179, %v107, %v170
  %v194 = vsel %vm179, %v108, %v172
  %v195 = vsel %vm179, %v109, %v174
  %v196 = vld [vmem:[%s1] sm:$0xff]
  %v197 = vld [vmem:[%s1 + $0x8] sm:$0xff]
  %v198 = vld [vmem:[%s2] sm:$0xff]
  %v199 = vld [vmem:[%s2 + $0x8] sm:$0xff]
  %201 = vset.pattern.permute.xlu0 0
  %202 = vperm.xlu0 %201, %v198
  %v203 = vpop.permute.xlu0 %202
  %206 = vset.pattern.permute.xlu0 0
  %207 = vperm.xlu0 %206, %v199
  %v208 = vpop.permute.xlu0 %207
  %vm210 = vcmask 261120
  %v212 = vsel %vm210, %v196, 0
  %v215 = vsel %vm210, %v197, 0
  %217 = vmatprep.subr.mxu0 0.0
  %218 = vmatpush1.msra.mxu0 0.0
  %219 = vmatprep.subr.mxu0 0.0
  %220 = vmatpush1.msra.mxu0 0.0
  %221 = vmatprep.subr.mxu0 0.0
  %222 = vmatpush1.msra.mxu0 0.0
  %223 = vmatprep.subr.mxu0 0.0
  %224 = vmatpush1.msra.mxu0 0.0
  %225 = vmatprep.subr.mxu0 0.0
  %226 = vmatpush1.msra.mxu0 0.0
  %227 = vmatprep.subr.mxu0 0.0
  %228 = vmatpush1.msra.mxu0 0.0
  %229 = vmatprep.subr.mxu0 0.0
  %230 = vmatpush1.msra.mxu0 0.0
  %231 = vmatprep.subr.mxu0 0.0
  %232 = vmatpush1.msra.mxu0 0.0
  %233 = vmatprep.subr.mxu0 0.0
  %234 = vmatpush1.msra.mxu0 0.0
  %235 = vmatprep.subr.mxu0 0.0
  %236 = vmatpush1.msra.mxu0 0.0
  %237 = vmatprep.subr.mxu0 0.0
  %238 = vmatpush1.msra.mxu0 0.0
  %239 = vmatprep.subr.mxu0 0.0
  %240 = vmatpush1.msra.mxu0 0.0
  %241 = vmatprep.subr.mxu0 %v187
  %242 = vmatpush1.msra.mxu0 %v183
  %243 = vmatprep.subr.mxu0 %v186
  %244 = vmatpush1.msra.mxu0 %v182
  %245 = vmatprep.subr.mxu0 %v185
  %246 = vmatpush1.msra.mxu0 %v181
  %247 = vmatprep.subr.mxu0 %v184
  %248 = vmatpush1.msra.mxu0 %v180
  %249 = vmatprep.subr.mxu0 0.0
  %250 = vmatpush2.msra.mxu0 0.0
  %251 = vmatprep.subr.mxu0 0.0
  %252 = vmatpush2.msra.mxu0 0.0
  %253 = vmatprep.subr.mxu0 0.0
  %254 = vmatpush2.msra.mxu0 0.0
  %255 = vmatprep.subr.mxu0 0.0
  %256 = vmatpush2.msra.mxu0 0.0
  %257 = vmatprep.subr.mxu0 0.0
  %258 = vmatpush2.msra.mxu0 0.0
  %259 = vmatprep.subr.mxu0 0.0
  %260 = vmatpush2.msra.mxu0 0.0
  %261 = vmatprep.subr.mxu0 0.0
  %262 = vmatpush2.msra.mxu0 0.0
  %263 = vmatprep.subr.mxu0 0.0
  %264 = vmatpush2.msra.mxu0 0.0
  %265 = vmatprep.subr.mxu0 0.0
  %266 = vmatpush2.msra.mxu0 0.0
  %267 = vmatprep.subr.mxu0 0.0
  %268 = vmatpush2.msra.mxu0 0.0
  %269 = vmatprep.subr.mxu0 0.0
  %270 = vmatpush2.msra.mxu0 0.0
  %271 = vmatprep.subr.mxu0 0.0
  %272 = vmatpush2.msra.mxu0 0.0
  %273 = vmatprep.subr.mxu0 0.0
  %274 = vmatpush2.msra.mxu0 0.0
  %275 = vmatprep.subr.mxu0 0.0
  %276 = vmatpush2.msra.mxu0 0.0
  %277 = vmatprep.subr.mxu0 0.0
  %278 = vmatpush2.msra.mxu0 0.0
  %279 = vmatprep.subr.mxu0 0.0
  %280 = vmatpush2.msra.mxu0 0.0
  %281 = vmatprep.mubr.f32.mxu0 0.0
  %282 = vmatmul.mubr.f32.gmra.mxu0 %v212
  %v283 = vpop.f32.mrf.mxu0
  %v284 = vadd.f32 %v203, %v283
  %v285 = vpop.f32.mrf.mxu0
  %v286 = vadd.f32 %v203, %v285
  %287 = vmatprep.mubr.f32.mxu0 0.0
  %288 = vmatmul.mubr.f32.gmra.mxu0 %v215
  %v289 = vpop.f32.mrf.mxu0
  %v290 = vadd.f32 %v208, %v289
  %v291 = vpop.f32.mrf.mxu0
  %v292 = vadd.f32 %v208, %v291
  %293 = vdwg.mxu0
  %294 = vmatprep.subr.mxu0 0.0
  %295 = vmatpush1.msra.mxu0 0.0
  %296 = vmatprep.subr.mxu0 0.0
  %297 = vmatpush1.msra.mxu0 0.0
  %298 = vmatprep.subr.mxu0 0.0
  %299 = vmatpush1.msra.mxu0 0.0
  %300 = vmatprep.subr.mxu0 0.0
  %301 = vmatpush1.msra.mxu0 0.0
  %302 = vmatprep.subr.mxu0 0.0
  %303 = vmatpush1.msra.mxu0 0.0
  %304 = vmatprep.subr.mxu0 0.0
  %305 = vmatpush1.msra.mxu0 0.0
  %306 = vmatprep.subr.mxu0 0.0
  %307 = vmatpush1.msra.mxu0 0.0
  %308 = vmatprep.subr.mxu0 0.0
  %309 = vmatpush1.msra.mxu0 0.0
  %310 = vmatprep.subr.mxu0 0.0
  %311 = vmatpush1.msra.mxu0 0.0
  %312 = vmatprep.subr.mxu0 0.0
  %313 = vmatpush1.msra.mxu0 0.0
  %314 = vmatprep.subr.mxu0 0.0
  %315 = vmatpush1.msra.mxu0 0.0
  %316 = vmatprep.subr.mxu0 0.0
  %317 = vmatpush1.msra.mxu0 0.0
  %318 = vmatprep.subr.mxu0 %v195
  %319 = vmatpush1.msra.mxu0 %v191
  %320 = vmatprep.subr.mxu0 %v194
  %321 = vmatpush1.msra.mxu0 %v190
  %322 = vmatprep.subr.mxu0 %v193
  %323 = vmatpush1.msra.mxu0 %v189
  %324 = vmatprep.subr.mxu0 %v192
  %325 = vmatpush1.msra.mxu0 %v188
  %326 = vmatprep.subr.mxu0 0.0
  %327 = vmatpush2.msra.mxu0 0.0
  %328 = vmatprep.subr.mxu0 0.0
  %329 = vmatpush2.msra.mxu0 0.0
  %330 = vmatprep.subr.mxu0 0.0
  %331 = vmatpush2.msra.mxu0 0.0
  %332 = vmatprep.subr.mxu0 0.0
  %333 = vmatpush2.msra.mxu0 0.0
  %334 = vmatprep.subr.mxu0 0.0
  %335 = vmatpush2.msra.mxu0 0.0
  %336 = vmatprep.subr.mxu0 0.0
  %337 = vmatpush2.msra.mxu0 0.0
  %338 = vmatprep.subr.mxu0 0.0
  %339 = vmatpush2.msra.mxu0 0.0
  %340 = vmatprep.subr.mxu0 0.0
  %341 = vmatpush2.msra.mxu0 0.0
  %342 = vmatprep.subr.mxu0 0.0
  %343 = vmatpush2.msra.mxu0 0.0
  %344 = vmatprep.subr.mxu0 0.0
  %345 = vmatpush2.msra.mxu0 0.0
  %346 = vmatprep.subr.mxu0 0.0
  %347 = vmatpush2.msra.mxu0 0.0
  %348 = vmatprep.subr.mxu0 0.0
  %349 = vmatpush2.msra.mxu0 0.0
  %350 = vmatprep.subr.mxu0 0.0
  %351 = vmatpush2.msra.mxu0 0.0
  %352 = vmatprep.subr.mxu0 0.0
  %353 = vmatpush2.msra.mxu0 0.0
  %354 = vmatprep.subr.mxu0 0.0
  %355 = vmatpush2.msra.mxu0 0.0
  %356 = vmatprep.subr.mxu0 0.0
  %357 = vmatpush2.msra.mxu0 0.0
  %358 = vmatprep.mubr.f32.mxu0 0.0
  %359 = vmatmul.mubr.f32.gmra.mxu0 %v212
  %v360 = vpop.f32.mrf.mxu0
  %v361 = vadd.f32 %v203, %v360
  %v362 = vpop.f32.mrf.mxu0
  %v363 = vadd.f32 %v203, %v362
  %364 = vmatprep.mubr.f32.mxu0 0.0
  %365 = vmatmul.mubr.f32.gmra.mxu0 %v215
  %v366 = vpop.f32.mrf.mxu0
  %v367 = vadd.f32 %v208, %v366
  %v368 = vpop.f32.mrf.mxu0
  %v369 = vadd.f32 %v208, %v368
  %370 = vdwg.mxu0
  %v371 = vmax.f32 %v284, 0.0
  %v372 = vmax.f32 %v286, 0.0
  %v373 = vmax.f32 %v361, 0.0
  %v374 = vmax.f32 %v363, 0.0
  %v375 = vmax.f32 %v290, 0.0
  %v376 = vmax.f32 %v292, 0.0
  %v377 = vmax.f32 %v367, 0.0
  %v378 = vmax.f32 %v369, 0.0
  %387 = vrot.lane.b32.xlu0 %v371, 64
  %v388 = vpop.permute.xlu0 %387
  %389 = vrot.lane.b32.xlu0 %v372, 64
  %v390 = vpop.permute.xlu0 %389
  %391 = vrot.lane.b32.xlu0 %v373, 64
  %v392 = vpop.permute.xlu0 %391
  %393 = vrot.lane.b32.xlu0 %v374, 64
  %v394 = vpop.permute.xlu0 %393
  %395 = vrot.lane.b32.xlu0 %v375, 64
  %v396 = vpop.permute.xlu0 %395
  %397 = vrot.lane.b32.xlu0 %v376, 64
  %v398 = vpop.permute.xlu0 %397
  %399 = vrot.lane.b32.xlu0 %v377, 64
  %v400 = vpop.permute.xlu0 %399
  %401 = vrot.lane.b32.xlu0 %v378, 64
  %v402 = vpop.permute.xlu0 %401
  %v403 = vsel %vm179, %v388, %v390
  %v404 = vsel %vm179, %v390, %v392
  %v405 = vsel %vm179, %v392, %v394
  %v406 = vsel %vm179, %v396, %v398
  %v407 = vsel %vm179, %v398, %v400
  %v408 = vsel %vm179, %v400, %v402
  %v419 = vsel %vm179, 0.0, %v388
  %v420 = vsel %vm179, 0.0, %v396
  %v421 = vsel %vm179, %v394, 0.0
  %v422 = vsel %vm179, %v402, 0.0
  %v423 = vld [vmem:[%s3] sm:$0xff]
  %s424 = scalar_lea.vmem %s3, 8
  %v425 = vld [vmem:[%s424] sm:$0xff]
  %430 = vrot.lane.b32.xlu0 %v419, 64
  %v431 = vpop.permute.xlu0 %430
  %432 = vrot.lane.b32.xlu0 %v403, 64
  %v433 = vpop.permute.xlu0 %432
  %434 = vrot.lane.b32.xlu0 %v404, 64
  %v435 = vpop.permute.xlu0 %434
  %436 = vrot.lane.b32.xlu0 %v405, 64
  %v437 = vpop.permute.xlu0 %436
  %438 = vrot.lane.b32.xlu0 %v421, 64
  %v439 = vpop.permute.xlu0 %438
  %440 = vrot.lane.b32.xlu0 %v420, 64
  %v441 = vpop.permute.xlu0 %440
  %442 = vrot.lane.b32.xlu0 %v406, 64
  %v443 = vpop.permute.xlu0 %442
  %444 = vrot.lane.b32.xlu0 %v407, 64
  %v445 = vpop.permute.xlu0 %444
  %446 = vrot.lane.b32.xlu0 %v408, 64
  %v447 = vpop.permute.xlu0 %446
  %448 = vrot.lane.b32.xlu0 %v422, 64
  %v449 = vpop.permute.xlu0 %448
  %v450 = vsel %vm179, %v431, %v433
  %v451 = vsel %vm179, %v433, %v435
  %v452 = vsel %vm179, %v435, %v437
  %v453 = vsel %vm179, %v437, %v439
  %v454 = vsel %vm179, %v441, %v443
  %v455 = vsel %vm179, %v443, %v445
  %v456 = vsel %vm179, %v445, %v447
  %v457 = vsel %vm179, %v447, %v449
  %vm466 = vcmask 130048
  %v468 = vsel %vm466, %v425, 0
  %470 = vmatprep.subr.mxu0 0.0
  %471 = vmatpush1.msra.mxu0 0.0
  %472 = vmatprep.subr.mxu0 0.0
  %473 = vmatpush1.msra.mxu0 0.0
  %474 = vmatprep.subr.mxu0 0.0
  %475 = vmatpush1.msra.mxu0 0.0
  %476 = vmatprep.subr.mxu0 0.0
  %477 = vmatpush1.msra.mxu0 0.0
  %478 = vmatprep.subr.mxu0 0.0
  %479 = vmatpush1.msra.mxu0 0.0
  %480 = vmatprep.subr.mxu0 0.0
  %481 = vmatpush1.msra.mxu0 0.0
  %482 = vmatprep.subr.mxu0 0.0
  %483 = vmatpush1.msra.mxu0 0.0
  %484 = vmatprep.subr.mxu0 0.0
  %485 = vmatpush1.msra.mxu0 0.0
  %486 = vmatprep.subr.mxu0 0.0
  %487 = vmatpush1.msra.mxu0 0.0
  %488 = vmatprep.subr.mxu0 0.0
  %489 = vmatpush1.msra.mxu0 0.0
  %490 = vmatprep.subr.mxu0 0.0
  %491 = vmatpush1.msra.mxu0 0.0
  %492 = vmatprep.subr.mxu0 0.0
  %493 = vmatpush1.msra.mxu0 0.0
  %494 = vmatprep.subr.mxu0 0.0
  %495 = vmatpush1.msra.mxu0 0.0
  %496 = vmatprep.subr.mxu0 0.0
  %497 = vmatpush1.msra.mxu0 0.0
  %498 = vmatprep.subr.mxu0 %v455
  %499 = vmatpush1.msra.mxu0 %v454
  %500 = vmatprep.subr.mxu0 %v451
  %501 = vmatpush1.msra.mxu0 %v450
  %502 = vmatprep.subr.mxu0 0.0
  %503 = vmatpush2.msra.mxu0 0.0
  %504 = vmatprep.subr.mxu0 0.0
  %505 = vmatpush2.msra.mxu0 0.0
  %506 = vmatprep.subr.mxu0 0.0
  %507 = vmatpush2.msra.mxu0 0.0
  %508 = vmatprep.subr.mxu0 0.0
  %509 = vmatpush2.msra.mxu0 0.0
  %510 = vmatprep.subr.mxu0 0.0
  %511 = vmatpush2.msra.mxu0 0.0
  %512 = vmatprep.subr.mxu0 0.0
  %513 = vmatpush2.msra.mxu0 0.0
  %514 = vmatprep.subr.mxu0 0.0
  %515 = vmatpush2.msra.mxu0 0.0
  %516 = vmatprep.subr.mxu0 0.0
  %517 = vmatpush2.msra.mxu0 0.0
  %518 = vmatprep.subr.mxu0 0.0
  %519 = vmatpush2.msra.mxu0 0.0
  %520 = vmatprep.subr.mxu0 0.0
  %521 = vmatpush2.msra.mxu0 0.0
  %522 = vmatprep.subr.mxu0 0.0
  %523 = vmatpush2.msra.mxu0 0.0
  %524 = vmatprep.subr.mxu0 0.0
  %525 = vmatpush2.msra.mxu0 0.0
  %526 = vmatprep.subr.mxu0 0.0
  %527 = vmatpush2.msra.mxu0 0.0
  %528 = vmatprep.subr.mxu0 0.0
  %529 = vmatpush2.msra.mxu0 0.0
  %530 = vmatprep.subr.mxu0 0.0
  %531 = vmatpush2.msra.mxu0 0.0
  %532 = vmatprep.subr.mxu0 0.0
  %533 = vmatpush2.msra.mxu0 0.0
  %534 = vmatprep.mubr.f32.mxu0 0.0
  %535 = vmatmul.mubr.f32.gmra.mxu0 %v468
  %v536 = vpop.f32.mrf.mxu0
  %v537 = vadd.f32 0.0, %v536
  %v538 = vpop.f32.mrf.mxu0
  %v539 = vadd.f32 0.0, %v538
  %540 = vdwg.mxu0
  %541 = vmatprep.subr.mxu0 0.0
  %542 = vmatpush1.msra.mxu0 0.0
  %543 = vmatprep.subr.mxu0 0.0
  %544 = vmatpush1.msra.mxu0 0.0
  %545 = vmatprep.subr.mxu0 0.0
  %546 = vmatpush1.msra.mxu0 0.0
  %547 = vmatprep.subr.mxu0 0.0
  %548 = vmatpush1.msra.mxu0 0.0
  %549 = vmatprep.subr.mxu0 0.0
  %550 = vmatpush1.msra.mxu0 0.0
  %551 = vmatprep.subr.mxu0 0.0
  %552 = vmatpush1.msra.mxu0 0.0
  %553 = vmatprep.subr.mxu0 0.0
  %554 = vmatpush1.msra.mxu0 0.0
  %555 = vmatprep.subr.mxu0 0.0
  %556 = vmatpush1.msra.mxu0 0.0
  %557 = vmatprep.subr.mxu0 0.0
  %558 = vmatpush1.msra.mxu0 0.0
  %559 = vmatprep.subr.mxu0 0.0
  %560 = vmatpush1.msra.mxu0 0.0
  %561 = vmatprep.subr.mxu0 0.0
  %562 = vmatpush1.msra.mxu0 0.0
  %563 = vmatprep.subr.mxu0 0.0
  %564 = vmatpush1.msra.mxu0 0.0
  %565 = vmatprep.subr.mxu0 0.0
  %566 = vmatpush1.msra.mxu0 0.0
  %567 = vmatprep.subr.mxu0 0.0
  %568 = vmatpush1.msra.mxu0 0.0
  %569 = vmatprep.subr.mxu0 %v457
  %570 = vmatpush1.msra.mxu0 %v456
  %571 = vmatprep.subr.mxu0 %v453
  %572 = vmatpush1.msra.mxu0 %v452
  %573 = vmatprep.subr.mxu0 0.0
  %574 = vmatpush2.msra.mxu0 0.0
  %575 = vmatprep.subr.mxu0 0.0
  %576 = vmatpush2.msra.mxu0 0.0
  %577 = vmatprep.subr.mxu0 0.0
  %578 = vmatpush2.msra.mxu0 0.0
  %579 = vmatprep.subr.mxu0 0.0
  %580 = vmatpush2.msra.mxu0 0.0
  %581 = vmatprep.subr.mxu0 0.0
  %582 = vmatpush2.msra.mxu0 0.0
  %583 = vmatprep.subr.mxu0 0.0
  %584 = vmatpush2.msra.mxu0 0.0
  %585 = vmatprep.subr.mxu0 0.0
  %586 = vmatpush2.msra.mxu0 0.0
  %587 = vmatprep.subr.mxu0 0.0
  %588 = vmatpush2.msra.mxu0 0.0
  %589 = vmatprep.subr.mxu0 0.0
  %590 = vmatpush2.msra.mxu0 0.0
  %591 = vmatprep.subr.mxu0 0.0
  %592 = vmatpush2.msra.mxu0 0.0
  %593 = vmatprep.subr.mxu0 0.0
  %594 = vmatpush2.msra.mxu0 0.0
  %595 = vmatprep.subr.mxu0 0.0
  %596 = vmatpush2.msra.mxu0 0.0
  %597 = vmatprep.subr.mxu0 0.0
  %598 = vmatpush2.msra.mxu0 0.0
  %599 = vmatprep.subr.mxu0 0.0
  %600 = vmatpush2.msra.mxu0 0.0
  %601 = vmatprep.subr.mxu0 0.0
  %602 = vmatpush2.msra.mxu0 0.0
  %603 = vmatprep.subr.mxu0 0.0
  %604 = vmatpush2.msra.mxu0 0.0
  %605 = vmatprep.mubr.f32.mxu0 0.0
  %606 = vmatmul.mubr.f32.gmra.mxu0 %v468
  %v607 = vpop.f32.mrf.mxu0
  %v608 = vadd.f32 0.0, %v607
  %v609 = vpop.f32.mrf.mxu0
  %v610 = vadd.f32 0.0, %v609
  %611 = vdwg.mxu0
  %v613 = vsel %vm466, %v423, 0
  %615 = vmatprep.subr.mxu0 0.0
  %616 = vmatpush1.msra.mxu0 0.0
  %617 = vmatprep.subr.mxu0 0.0
  %618 = vmatpush1.msra.mxu0 0.0
  %619 = vmatprep.subr.mxu0 0.0
  %620 = vmatpush1.msra.mxu0 0.0
  %621 = vmatprep.subr.mxu0 0.0
  %622 = vmatpush1.msra.mxu0 0.0
  %623 = vmatprep.subr.mxu0 0.0
  %624 = vmatpush1.msra.mxu0 0.0
  %625 = vmatprep.subr.mxu0 0.0
  %626 = vmatpush1.msra.mxu0 0.0
  %627 = vmatprep.subr.mxu0 0.0
  %628 = vmatpush1.msra.mxu0 0.0
  %629 = vmatprep.subr.mxu0 0.0
  %630 = vmatpush1.msra.mxu0 0.0
  %631 = vmatprep.subr.mxu0 0.0
  %632 = vmatpush1.msra.mxu0 0.0
  %633 = vmatprep.subr.mxu0 0.0
  %634 = vmatpush1.msra.mxu0 0.0
  %635 = vmatprep.subr.mxu0 0.0
  %636 = vmatpush1.msra.mxu0 0.0
  %637 = vmatprep.subr.mxu0 0.0
  %638 = vmatpush1.msra.mxu0 0.0
  %639 = vmatprep.subr.mxu0 0.0
  %640 = vmatpush1.msra.mxu0 0.0
  %641 = vmatprep.subr.mxu0 0.0
  %642 = vmatpush1.msra.mxu0 0.0
  %643 = vmatprep.subr.mxu0 %v406
  %644 = vmatpush1.msra.mxu0 %v420
  %645 = vmatprep.subr.mxu0 %v403
  %646 = vmatpush1.msra.mxu0 %v419
  %647 = vmatprep.subr.mxu0 0.0
  %648 = vmatpush2.msra.mxu0 0.0
  %649 = vmatprep.subr.mxu0 0.0
  %650 = vmatpush2.msra.mxu0 0.0
  %651 = vmatprep.subr.mxu0 0.0
  %652 = vmatpush2.msra.mxu0 0.0
  %653 = vmatprep.subr.mxu0 0.0
  %654 = vmatpush2.msra.mxu0 0.0
  %655 = vmatprep.subr.mxu0 0.0
  %656 = vmatpush2.msra.mxu0 0.0
  %657 = vmatprep.subr.mxu0 0.0
  %658 = vmatpush2.msra.mxu0 0.0
  %659 = vmatprep.subr.mxu0 0.0
  %660 = vmatpush2.msra.mxu0 0.0
  %661 = vmatprep.subr.mxu0 0.0
  %662 = vmatpush2.msra.mxu0 0.0
  %663 = vmatprep.subr.mxu0 0.0
  %664 = vmatpush2.msra.mxu0 0.0
  %665 = vmatprep.subr.mxu0 0.0
  %666 = vmatpush2.msra.mxu0 0.0
  %667 = vmatprep.subr.mxu0 0.0
  %668 = vmatpush2.msra.mxu0 0.0
  %669 = vmatprep.subr.mxu0 0.0
  %670 = vmatpush2.msra.mxu0 0.0
  %671 = vmatprep.subr.mxu0 0.0
  %672 = vmatpush2.msra.mxu0 0.0
  %673 = vmatprep.subr.mxu0 0.0
  %674 = vmatpush2.msra.mxu0 0.0
  %675 = vmatprep.subr.mxu0 0.0
  %676 = vmatpush2.msra.mxu0 0.0
  %677 = vmatprep.subr.mxu0 0.0
  %678 = vmatpush2.msra.mxu0 0.0
  %679 = vmatprep.mubr.f32.mxu0 0.0
  %680 = vmatmul.mubr.f32.gmra.mxu0 %v613
  %v681 = vpop.f32.mrf.mxu0
  %v682 = vadd.f32 %v537, %v681
  %v683 = vpop.f32.mrf.mxu0
  %v684 = vadd.f32 %v539, %v683
  %685 = vdwg.mxu0
  %686 = vmatprep.subr.mxu0 0.0
  %687 = vmatpush1.msra.mxu0 0.0
  %688 = vmatprep.subr.mxu0 0.0
  %689 = vmatpush1.msra.mxu0 0.0
  %690 = vmatprep.subr.mxu0 0.0
  %691 = vmatpush1.msra.mxu0 0.0
  %692 = vmatprep.subr.mxu0 0.0
  %693 = vmatpush1.msra.mxu0 0.0
  %694 = vmatprep.subr.mxu0 0.0
  %695 = vmatpush1.msra.mxu0 0.0
  %696 = vmatprep.subr.mxu0 0.0
  %697 = vmatpush1.msra.mxu0 0.0
  %698 = vmatprep.subr.mxu0 0.0
  %699 = vmatpush1.msra.mxu0 0.0
  %700 = vmatprep.subr.mxu0 0.0
  %701 = vmatpush1.msra.mxu0 0.0
  %702 = vmatprep.subr.mxu0 0.0
  %703 = vmatpush1.msra.mxu0 0.0
  %704 = vmatprep.subr.mxu0 0.0
  %705 = vmatpush1.msra.mxu0 0.0
  %706 = vmatprep.subr.mxu0 0.0
  %707 = vmatpush1.msra.mxu0 0.0
  %708 = vmatprep.subr.mxu0 0.0
  %709 = vmatpush1.msra.mxu0 0.0
  %710 = vmatprep.subr.mxu0 0.0
  %711 = vmatpush1.msra.mxu0 0.0
  %712 = vmatprep.subr.mxu0 0.0
  %713 = vmatpush1.msra.mxu0 0.0
  %714 = vmatprep.subr.mxu0 %v408
  %715 = vmatpush1.msra.mxu0 %v407
  %716 = vmatprep.subr.mxu0 %v405
  %717 = vmatpush1.msra.mxu0 %v404
  %718 = vmatprep.subr.mxu0 0.0
  %719 = vmatpush2.msra.mxu0 0.0
  %720 = vmatprep.subr.mxu0 0.0
  %721 = vmatpush2.msra.mxu0 0.0
  %722 = vmatprep.subr.mxu0 0.0
  %723 = vmatpush2.msra.mxu0 0.0
  %724 = vmatprep.subr.mxu0 0.0
  %725 = vmatpush2.msra.mxu0 0.0
  %726 = vmatprep.subr.mxu0 0.0
  %727 = vmatpush2.msra.mxu0 0.0
  %728 = vmatprep.subr.mxu0 0.0
  %729 = vmatpush2.msra.mxu0 0.0
  %730 = vmatprep.subr.mxu0 0.0
  %731 = vmatpush2.msra.mxu0 0.0
  %732 = vmatprep.subr.mxu0 0.0
  %733 = vmatpush2.msra.mxu0 0.0
  %734 = vmatprep.subr.mxu0 0.0
  %735 = vmatpush2.msra.mxu0 0.0
  %736 = vmatprep.subr.mxu0 0.0
  %737 = vmatpush2.msra.mxu0 0.0
  %738 = vmatprep.subr.mxu0 0.0
  %739 = vmatpush2.msra.mxu0 0.0
  %740 = vmatprep.subr.mxu0 0.0
  %741 = vmatpush2.msra.mxu0 0.0
  %742 = vmatprep.subr.mxu0 0.0
  %743 = vmatpush2.msra.mxu0 0.0
  %744 = vmatprep.subr.mxu0 0.0
  %745 = vmatpush2.msra.mxu0 0.0
  %746 = vmatprep.subr.mxu0 0.0
  %747 = vmatpush2.msra.mxu0 0.0
  %748 = vmatprep.subr.mxu0 0.0
  %749 = vmatpush2.msra.mxu0 0.0
  %750 = vmatprep.mubr.f32.mxu0 0.0
  %751 = vmatmul.mubr.f32.gmra.mxu0 %v613
  %v752 = vpop.f32.mrf.mxu0
  %v753 = vadd.f32 %v608, %v752
  %v754 = vpop.f32.mrf.mxu0
  %v755 = vadd.f32 %v610, %v754
  %756 = vdwg.mxu0
  %s757 = scalar_lea.vmem %s3, 16
  %v758 = vld [vmem:[%s757] sm:$0xff]
  %v760 = vsel %vm466, %v758, 0
  %762 = vmatprep.subr.mxu0 0.0
  %763 = vmatpush1.msra.mxu0 0.0
  %764 = vmatprep.subr.mxu0 0.0
  %765 = vmatpush1.msra.mxu0 0.0
  %766 = vmatprep.subr.mxu0 0.0
  %767 = vmatpush1.msra.mxu0 0.0
  %768 = vmatprep.subr.mxu0 0.0
  %769 = vmatpush1.msra.mxu0 0.0
  %770 = vmatprep.subr.mxu0 0.0
  %771 = vmatpush1.msra.mxu0 0.0
  %772 = vmatprep.subr.mxu0 0.0
  %773 = vmatpush1.msra.mxu0 0.0
  %774 = vmatprep.subr.mxu0 0.0
  %775 = vmatpush1.msra.mxu0 0.0
  %776 = vmatprep.subr.mxu0 0.0
  %777 = vmatpush1.msra.mxu0 0.0
  %778 = vmatprep.subr.mxu0 0.0
  %779 = vmatpush1.msra.mxu0 0.0
  %780 = vmatprep.subr.mxu0 0.0
  %781 = vmatpush1.msra.mxu0 0.0
  %782 = vmatprep.subr.mxu0 0.0
  %783 = vmatpush1.msra.mxu0 0.0
  %784 = vmatprep.subr.mxu0 0.0
  %785 = vmatpush1.msra.mxu0 0.0
  %786 = vmatprep.subr.mxu0 0.0
  %787 = vmatpush1.msra.mxu0 0.0
  %788 = vmatprep.subr.mxu0 0.0
  %789 = vmatpush1.msra.mxu0 0.0
  %790 = vmatprep.subr.mxu0 %v407
  %791 = vmatpush1.msra.mxu0 %v406
  %792 = vmatprep.subr.mxu0 %v404
  %793 = vmatpush1.msra.mxu0 %v403
  %794 = vmatprep.subr.mxu0 0.0
  %795 = vmatpush2.msra.mxu0 0.0
  %796 = vmatprep.subr.mxu0 0.0
  %797 = vmatpush2.msra.mxu0 0.0
  %798 = vmatprep.subr.mxu0 0.0
  %799 = vmatpush2.msra.mxu0 0.0
  %800 = vmatprep.subr.mxu0 0.0
  %801 = vmatpush2.msra.mxu0 0.0
  %802 = vmatprep.subr.mxu0 0.0
  %803 = vmatpush2.msra.mxu0 0.0
  %804 = vmatprep.subr.mxu0 0.0
  %805 = vmatpush2.msra.mxu0 0.0
  %806 = vmatprep.subr.mxu0 0.0
  %807 = vmatpush2.msra.mxu0 0.0
  %808 = vmatprep.subr.mxu0 0.0
  %809 = vmatpush2.msra.mxu0 0.0
  %810 = vmatprep.subr.mxu0 0.0
  %811 = vmatpush2.msra.mxu0 0.0
  %812 = vmatprep.subr.mxu0 0.0
  %813 = vmatpush2.msra.mxu0 0.0
  %814 = vmatprep.subr.mxu0 0.0
  %815 = vmatpush2.msra.mxu0 0.0
  %816 = vmatprep.subr.mxu0 0.0
  %817 = vmatpush2.msra.mxu0 0.0
  %818 = vmatprep.subr.mxu0 0.0
  %819 = vmatpush2.msra.mxu0 0.0
  %820 = vmatprep.subr.mxu0 0.0
  %821 = vmatpush2.msra.mxu0 0.0
  %822 = vmatprep.subr.mxu0 0.0
  %823 = vmatpush2.msra.mxu0 0.0
  %824 = vmatprep.subr.mxu0 0.0
  %825 = vmatpush2.msra.mxu0 0.0
  %826 = vmatprep.mubr.f32.mxu0 0.0
  %827 = vmatmul.mubr.f32.gmra.mxu0 %v760
  %v828 = vpop.f32.mrf.mxu0
  %v829 = vadd.f32 0.0, %v828
  %v830 = vpop.f32.mrf.mxu0
  %v831 = vadd.f32 0.0, %v830
  %832 = vdwg.mxu0
  %833 = vmatprep.subr.mxu0 0.0
  %834 = vmatpush1.msra.mxu0 0.0
  %835 = vmatprep.subr.mxu0 0.0
  %836 = vmatpush1.msra.mxu0 0.0
  %837 = vmatprep.subr.mxu0 0.0
  %838 = vmatpush1.msra.mxu0 0.0
  %839 = vmatprep.subr.mxu0 0.0
  %840 = vmatpush1.msra.mxu0 0.0
  %841 = vmatprep.subr.mxu0 0.0
  %842 = vmatpush1.msra.mxu0 0.0
  %843 = vmatprep.subr.mxu0 0.0
  %844 = vmatpush1.msra.mxu0 0.0
  %845 = vmatprep.subr.mxu0 0.0
  %846 = vmatpush1.msra.mxu0 0.0
  %847 = vmatprep.subr.mxu0 0.0
  %848 = vmatpush1.msra.mxu0 0.0
  %849 = vmatprep.subr.mxu0 0.0
  %850 = vmatpush1.msra.mxu0 0.0
  %851 = vmatprep.subr.mxu0 0.0
  %852 = vmatpush1.msra.mxu0 0.0
  %853 = vmatprep.subr.mxu0 0.0
  %854 = vmatpush1.msra.mxu0 0.0
  %855 = vmatprep.subr.mxu0 0.0
  %856 = vmatpush1.msra.mxu0 0.0
  %857 = vmatprep.subr.mxu0 0.0
  %858 = vmatpush1.msra.mxu0 0.0
  %859 = vmatprep.subr.mxu0 0.0
  %860 = vmatpush1.msra.mxu0 0.0
  %861 = vmatprep.subr.mxu0 %v422
  %862 = vmatpush1.msra.mxu0 %v408
  %863 = vmatprep.subr.mxu0 %v421
  %864 = vmatpush1.msra.mxu0 %v405
  %865 = vmatprep.subr.mxu0 0.0
  %866 = vmatpush2.msra.mxu0 0.0
  %867 = vmatprep.subr.mxu0 0.0
  %868 = vmatpush2.msra.mxu0 0.0
  %869 = vmatprep.subr.mxu0 0.0
  %870 = vmatpush2.msra.mxu0 0.0
  %871 = vmatprep.subr.mxu0 0.0
  %872 = vmatpush2.msra.mxu0 0.0
  %873 = vmatprep.subr.mxu0 0.0
  %874 = vmatpush2.msra.mxu0 0.0
  %875 = vmatprep.subr.mxu0 0.0
  %876 = vmatpush2.msra.mxu0 0.0
  %877 = vmatprep.subr.mxu0 0.0
  %878 = vmatpush2.msra.mxu0 0.0
  %879 = vmatprep.subr.mxu0 0.0
  %880 = vmatpush2.msra.mxu0 0.0
  %881 = vmatprep.subr.mxu0 0.0
  %882 = vmatpush2.msra.mxu0 0.0
  %883 = vmatprep.subr.mxu0 0.0
  %884 = vmatpush2.msra.mxu0 0.0
  %885 = vmatprep.subr.mxu0 0.0
  %886 = vmatpush2.msra.mxu0 0.0
  %887 = vmatprep.subr.mxu0 0.0
  %888 = vmatpush2.msra.mxu0 0.0
  %889 = vmatprep.subr.mxu0 0.0
  %890 = vmatpush2.msra.mxu0 0.0
  %891 = vmatprep.subr.mxu0 0.0
  %892 = vmatpush2.msra.mxu0 0.0
  %893 = vmatprep.subr.mxu0 0.0
  %894 = vmatpush2.msra.mxu0 0.0
  %895 = vmatprep.subr.mxu0 0.0
  %896 = vmatpush2.msra.mxu0 0.0
  %897 = vmatprep.mubr.f32.mxu0 0.0
  %898 = vmatmul.mubr.f32.gmra.mxu0 %v760
  %v899 = vpop.f32.mrf.mxu0
  %v900 = vadd.f32 0.0, %v899
  %v901 = vpop.f32.mrf.mxu0
  %v902 = vadd.f32 0.0, %v901
  %903 = vdwg.mxu0
  %v904 = vadd.f32 %v682, %v829
  %v905 = vadd.f32 %v684, %v831
  %v906 = vadd.f32 %v753, %v900
  %v907 = vadd.f32 %v755, %v902
  %v908 = vld [vmem:[%s4] sm:$0xff]
  %910 = vset.pattern.permute.xlu0 0
  %911 = vperm.xlu0 %910, %v908
  %v912 = vpop.permute.xlu0 %911
  %v914 = vadd.f32 %v904, %v912
  %v915 = vadd.f32 %v905, %v912
  %v916 = vadd.f32 %v906, %v912
  %v917 = vadd.f32 %v907, %v912
  %v918 = vmax.f32 %v914, 0.0
  %v919 = vmax.f32 %v915, 0.0
  %v920 = vmax.f32 %v916, 0.0
  %v921 = vmax.f32 %v917, 0.0
  %v922 = vld [vmem:[%s5] sm:$0xff]
  %v923 = vld [vmem:[%s5 + $0x8] sm:$0xff]
  %v924 = vld [vmem:[%s6] sm:$0xff]
  %v925 = vld [vmem:[%s6 + $0x8] sm:$0xff]
  %vm926 = vcmask 64512
  %v928 = vsel %vm926, %v924, 0
  %v931 = vsel %vm926, %v925, 0
  %933 = vmatprep.subr.mxu0 0.0
  %934 = vmatpush1.msra.mxu0 0.0
  %935 = vmatprep.subr.mxu0 0.0
  %936 = vmatpush1.msra.mxu0 0.0
  %937 = vmatprep.subr.mxu0 0.0
  %938 = vmatpush1.msra.mxu0 0.0
  %939 = vmatprep.subr.mxu0 0.0
  %940 = vmatpush1.msra.mxu0 0.0
  %941 = vmatprep.subr.mxu0 0.0
  %942 = vmatpush1.msra.mxu0 0.0
  %943 = vmatprep.subr.mxu0 0.0
  %944 = vmatpush1.msra.mxu0 0.0
  %945 = vmatprep.subr.mxu0 0.0
  %946 = vmatpush1.msra.mxu0 0.0
  %947 = vmatprep.subr.mxu0 0.0
  %948 = vmatpush1.msra.mxu0 0.0
  %949 = vmatprep.subr.mxu0 0.0
  %950 = vmatpush1.msra.mxu0 0.0
  %951 = vmatprep.subr.mxu0 0.0
  %952 = vmatpush1.msra.mxu0 0.0
  %953 = vmatprep.subr.mxu0 0.0
  %954 = vmatpush1.msra.mxu0 0.0
  %955 = vmatprep.subr.mxu0 0.0
  %956 = vmatpush1.msra.mxu0 0.0
  %957 = vmatprep.subr.mxu0 0.0
  %958 = vmatpush1.msra.mxu0 0.0
  %959 = vmatprep.subr.mxu0 0.0
  %960 = vmatpush1.msra.mxu0 0.0
  %961 = vmatprep.subr.mxu0 0.0
  %962 = vmatpush1.msra.mxu0 0.0
  %963 = vmatprep.subr.mxu0 %v919
  %964 = vmatpush1.msra.mxu0 %v918
  %965 = vmatprep.subr.mxu0 0.0
  %966 = vmatpush2.msra.mxu0 0.0
  %967 = vmatprep.subr.mxu0 0.0
  %968 = vmatpush2.msra.mxu0 0.0
  %969 = vmatprep.subr.mxu0 0.0
  %970 = vmatpush2.msra.mxu0 0.0
  %971 = vmatprep.subr.mxu0 0.0
  %972 = vmatpush2.msra.mxu0 0.0
  %973 = vmatprep.subr.mxu0 0.0
  %974 = vmatpush2.msra.mxu0 0.0
  %975 = vmatprep.subr.mxu0 0.0
  %976 = vmatpush2.msra.mxu0 0.0
  %977 = vmatprep.subr.mxu0 0.0
  %978 = vmatpush2.msra.mxu0 0.0
  %979 = vmatprep.subr.mxu0 0.0
  %980 = vmatpush2.msra.mxu0 0.0
  %981 = vmatprep.subr.mxu0 0.0
  %982 = vmatpush2.msra.mxu0 0.0
  %983 = vmatprep.subr.mxu0 0.0
  %984 = vmatpush2.msra.mxu0 0.0
  %985 = vmatprep.subr.mxu0 0.0
  %986 = vmatpush2.msra.mxu0 0.0
  %987 = vmatprep.subr.mxu0 0.0
  %988 = vmatpush2.msra.mxu0 0.0
  %989 = vmatprep.subr.mxu0 0.0
  %990 = vmatpush2.msra.mxu0 0.0
  %991 = vmatprep.subr.mxu0 0.0
  %992 = vmatpush2.msra.mxu0 0.0
  %993 = vmatprep.subr.mxu0 0.0
  %994 = vmatpush2.msra.mxu0 0.0
  %995 = vmatprep.subr.mxu0 0.0
  %996 = vmatpush2.msra.mxu0 0.0
  %997 = vmatprep.mubr.f32.mxu0 0.0
  %998 = vmatmul.mubr.f32.gmra.mxu0 %v928
  %v999 = vpop.f32.mrf.mxu0
  %v1000 = vadd.f32 0.0, %v999
  %v1001 = vpop.f32.mrf.mxu0
  %v1002 = vadd.f32 0.0, %v1001
  %1003 = vmatprep.mubr.f32.mxu0 0.0
  %1004 = vmatmul.mubr.f32.gmra.mxu0 %v931
  %v1005 = vpop.f32.mrf.mxu0
  %v1006 = vadd.f32 0.0, %v1005
  %v1007 = vpop.f32.mrf.mxu0
  %v1008 = vadd.f32 0.0, %v1007
  %1009 = vdwg.mxu0
  %1010 = vmatprep.subr.mxu0 0.0
  %1011 = vmatpush1.msra.mxu0 0.0
  %1012 = vmatprep.subr.mxu0 0.0
  %1013 = vmatpush1.msra.mxu0 0.0
  %1014 = vmatprep.subr.mxu0 0.0
  %1015 = vmatpush1.msra.mxu0 0.0
  %1016 = vmatprep.subr.mxu0 0.0
  %1017 = vmatpush1.msra.mxu0 0.0
  %1018 = vmatprep.subr.mxu0 0.0
  %1019 = vmatpush1.msra.mxu0 0.0
  %1020 = vmatprep.subr.mxu0 0.0
  %1021 = vmatpush1.msra.mxu0 0.0
  %1022 = vmatprep.subr.mxu0 0.0
  %1023 = vmatpush1.msra.mxu0 0.0
  %1024 = vmatprep.subr.mxu0 0.0
  %1025 = vmatpush1.msra.mxu0 0.0
  %1026 = vmatprep.subr.mxu0 0.0
  %1027 = vmatpush1.msra.mxu0 0.0
  %1028 = vmatprep.subr.mxu0 0.0
  %1029 = vmatpush1.msra.mxu0 0.0
  %1030 = vmatprep.subr.mxu0 0.0
  %1031 = vmatpush1.msra.mxu0 0.0
  %1032 = vmatprep.subr.mxu0 0.0
  %1033 = vmatpush1.msra.mxu0 0.0
  %1034 = vmatprep.subr.mxu0 0.0
  %1035 = vmatpush1.msra.mxu0 0.0
  %1036 = vmatprep.subr.mxu0 0.0
  %1037 = vmatpush1.msra.mxu0 0.0
  %1038 = vmatprep.subr.mxu0 0.0
  %1039 = vmatpush1.msra.mxu0 0.0
  %1040 = vmatprep.subr.mxu0 %v921
  %1041 = vmatpush1.msra.mxu0 %v920
  %1042 = vmatprep.subr.mxu0 0.0
  %1043 = vmatpush2.msra.mxu0 0.0
  %1044 = vmatprep.subr.mxu0 0.0
  %1045 = vmatpush2.msra.mxu0 0.0
  %1046 = vmatprep.subr.mxu0 0.0
  %1047 = vmatpush2.msra.mxu0 0.0
  %1048 = vmatprep.subr.mxu0 0.0
  %1049 = vmatpush2.msra.mxu0 0.0
  %1050 = vmatprep.subr.mxu0 0.0
  %1051 = vmatpush2.msra.mxu0 0.0
  %1052 = vmatprep.subr.mxu0 0.0
  %1053 = vmatpush2.msra.mxu0 0.0
  %1054 = vmatprep.subr.mxu0 0.0
  %1055 = vmatpush2.msra.mxu0 0.0
  %1056 = vmatprep.subr.mxu0 0.0
  %1057 = vmatpush2.msra.mxu0 0.0
  %1058 = vmatprep.subr.mxu0 0.0
  %1059 = vmatpush2.msra.mxu0 0.0
  %1060 = vmatprep.subr.mxu0 0.0
  %1061 = vmatpush2.msra.mxu0 0.0
  %1062 = vmatprep.subr.mxu0 0.0
  %1063 = vmatpush2.msra.mxu0 0.0
  %1064 = vmatprep.subr.mxu0 0.0
  %1065 = vmatpush2.msra.mxu0 0.0
  %1066 = vmatprep.subr.mxu0 0.0
  %1067 = vmatpush2.msra.mxu0 0.0
  %1068 = vmatprep.subr.mxu0 0.0
  %1069 = vmatpush2.msra.mxu0 0.0
  %1070 = vmatprep.subr.mxu0 0.0
  %1071 = vmatpush2.msra.mxu0 0.0
  %1072 = vmatprep.subr.mxu0 0.0
  %1073 = vmatpush2.msra.mxu0 0.0
  %1074 = vmatprep.mubr.f32.mxu0 0.0
  %1075 = vmatmul.mubr.f32.gmra.mxu0 %v928
  %v1076 = vpop.f32.mrf.mxu0
  %v1077 = vadd.f32 0.0, %v1076
  %v1078 = vpop.f32.mrf.mxu0
  %v1079 = vadd.f32 0.0, %v1078
  %1080 = vmatprep.mubr.f32.mxu0 0.0
  %1081 = vmatmul.mubr.f32.gmra.mxu0 %v931
  %v1082 = vpop.f32.mrf.mxu0
  %v1083 = vadd.f32 0.0, %v1082
  %v1084 = vpop.f32.mrf.mxu0
  %v1085 = vadd.f32 0.0, %v1084
  %1086 = vdwg.mxu0
  %v1088 = vsel %vm210, %v922, 0
  %v1091 = vsel %vm210, %v923, 0
  %1093 = vmatprep.subr.mxu0 0.0
  %1094 = vmatpush1.msra.mxu0 0.0
  %1095 = vmatprep.subr.mxu0 0.0
  %1096 = vmatpush1.msra.mxu0 0.0
  %1097 = vmatprep.subr.mxu0 0.0
  %1098 = vmatpush1.msra.mxu0 0.0
  %1099 = vmatprep.subr.mxu0 0.0
  %1100 = vmatpush1.msra.mxu0 0.0
  %1101 = vmatprep.subr.mxu0 0.0
  %1102 = vmatpush1.msra.mxu0 0.0
  %1103 = vmatprep.subr.mxu0 0.0
  %1104 = vmatpush1.msra.mxu0 0.0
  %1105 = vmatprep.subr.mxu0 0.0
  %1106 = vmatpush1.msra.mxu0 0.0
  %1107 = vmatprep.subr.mxu0 0.0
  %1108 = vmatpush1.msra.mxu0 0.0
  %1109 = vmatprep.subr.mxu0 0.0
  %1110 = vmatpush1.msra.mxu0 0.0
  %1111 = vmatprep.subr.mxu0 0.0
  %1112 = vmatpush1.msra.mxu0 0.0
  %1113 = vmatprep.subr.mxu0 0.0
  %1114 = vmatpush1.msra.mxu0 0.0
  %1115 = vmatprep.subr.mxu0 0.0
  %1116 = vmatpush1.msra.mxu0 0.0
  %1117 = vmatprep.subr.mxu0 %v187
  %1118 = vmatpush1.msra.mxu0 %v183
  %1119 = vmatprep.subr.mxu0 %v186
  %1120 = vmatpush1.msra.mxu0 %v182
  %1121 = vmatprep.subr.mxu0 %v185
  %1122 = vmatpush1.msra.mxu0 %v181
  %1123 = vmatprep.subr.mxu0 %v184
  %1124 = vmatpush1.msra.mxu0 %v180
  %1125 = vmatprep.subr.mxu0 0.0
  %1126 = vmatpush2.msra.mxu0 0.0
  %1127 = vmatprep.subr.mxu0 0.0
  %1128 = vmatpush2.msra.mxu0 0.0
  %1129 = vmatprep.subr.mxu0 0.0
  %1130 = vmatpush2.msra.mxu0 0.0
  %1131 = vmatprep.subr.mxu0 0.0
  %1132 = vmatpush2.msra.mxu0 0.0
  %1133 = vmatprep.subr.mxu0 0.0
  %1134 = vmatpush2.msra.mxu0 0.0
  %1135 = vmatprep.subr.mxu0 0.0
  %1136 = vmatpush2.msra.mxu0 0.0
  %1137 = vmatprep.subr.mxu0 0.0
  %1138 = vmatpush2.msra.mxu0 0.0
  %1139 = vmatprep.subr.mxu0 0.0
  %1140 = vmatpush2.msra.mxu0 0.0
  %1141 = vmatprep.subr.mxu0 0.0
  %1142 = vmatpush2.msra.mxu0 0.0
  %1143 = vmatprep.subr.mxu0 0.0
  %1144 = vmatpush2.msra.mxu0 0.0
  %1145 = vmatprep.subr.mxu0 0.0
  %1146 = vmatpush2.msra.mxu0 0.0
  %1147 = vmatprep.subr.mxu0 0.0
  %1148 = vmatpush2.msra.mxu0 0.0
  %1149 = vmatprep.subr.mxu0 0.0
  %1150 = vmatpush2.msra.mxu0 0.0
  %1151 = vmatprep.subr.mxu0 0.0
  %1152 = vmatpush2.msra.mxu0 0.0
  %1153 = vmatprep.subr.mxu0 0.0
  %1154 = vmatpush2.msra.mxu0 0.0
  %1155 = vmatprep.subr.mxu0 0.0
  %1156 = vmatpush2.msra.mxu0 0.0
  %1157 = vmatprep.mubr.f32.mxu0 0.0
  %1158 = vmatmul.mubr.f32.gmra.mxu0 %v1088
  %v1159 = vpop.f32.mrf.mxu0
  %v1160 = vadd.f32 %v1000, %v1159
  %v1161 = vpop.f32.mrf.mxu0
  %v1162 = vadd.f32 %v1002, %v1161
  %1163 = vmatprep.mubr.f32.mxu0 0.0
  %1164 = vmatmul.mubr.f32.gmra.mxu0 %v1091
  %v1165 = vpop.f32.mrf.mxu0
  %v1166 = vadd.f32 %v1006, %v1165
  %v1167 = vpop.f32.mrf.mxu0
  %v1168 = vadd.f32 %v1008, %v1167
  %1169 = vdwg.mxu0
  %1170 = vmatprep.subr.mxu0 0.0
  %1171 = vmatpush1.msra.mxu0 0.0
  %1172 = vmatprep.subr.mxu0 0.0
  %1173 = vmatpush1.msra.mxu0 0.0
  %1174 = vmatprep.subr.mxu0 0.0
  %1175 = vmatpush1.msra.mxu0 0.0
  %1176 = vmatprep.subr.mxu0 0.0
  %1177 = vmatpush1.msra.mxu0 0.0
  %1178 = vmatprep.subr.mxu0 0.0
  %1179 = vmatpush1.msra.mxu0 0.0
  %1180 = vmatprep.subr.mxu0 0.0
  %1181 = vmatpush1.msra.mxu0 0.0
  %1182 = vmatprep.subr.mxu0 0.0
  %1183 = vmatpush1.msra.mxu0 0.0
  %1184 = vmatprep.subr.mxu0 0.0
  %1185 = vmatpush1.msra.mxu0 0.0
  %1186 = vmatprep.subr.mxu0 0.0
  %1187 = vmatpush1.msra.mxu0 0.0
  %1188 = vmatprep.subr.mxu0 0.0
  %1189 = vmatpush1.msra.mxu0 0.0
  %1190 = vmatprep.subr.mxu0 0.0
  %1191 = vmatpush1.msra.mxu0 0.0
  %1192 = vmatprep.subr.mxu0 0.0
  %1193 = vmatpush1.msra.mxu0 0.0
  %1194 = vmatprep.subr.mxu0 %v195
  %1195 = vmatpush1.msra.mxu0 %v191
  %1196 = vmatprep.subr.mxu0 %v194
  %1197 = vmatpush1.msra.mxu0 %v190
  %1198 = vmatprep.subr.mxu0 %v193
  %1199 = vmatpush1.msra.mxu0 %v189
  %1200 = vmatprep.subr.mxu0 %v192
  %1201 = vmatpush1.msra.mxu0 %v188
  %1202 = vmatprep.subr.mxu0 0.0
  %1203 = vmatpush2.msra.mxu0 0.0
  %1204 = vmatprep.subr.mxu0 0.0
  %1205 = vmatpush2.msra.mxu0 0.0
  %1206 = vmatprep.subr.mxu0 0.0
  %1207 = vmatpush2.msra.mxu0 0.0
  %1208 = vmatprep.subr.mxu0 0.0
  %1209 = vmatpush2.msra.mxu0 0.0
  %1210 = vmatprep.subr.mxu0 0.0
  %1211 = vmatpush2.msra.mxu0 0.0
  %1212 = vmatprep.subr.mxu0 0.0
  %1213 = vmatpush2.msra.mxu0 0.0
  %1214 = vmatprep.subr.mxu0 0.0
  %1215 = vmatpush2.msra.mxu0 0.0
  %1216 = vmatprep.subr.mxu0 0.0
  %1217 = vmatpush2.msra.mxu0 0.0
  %1218 = vmatprep.subr.mxu0 0.0
  %1219 = vmatpush2.msra.mxu0 0.0
  %1220 = vmatprep.subr.mxu0 0.0
  %1221 = vmatpush2.msra.mxu0 0.0
  %1222 = vmatprep.subr.mxu0 0.0
  %1223 = vmatpush2.msra.mxu0 0.0
  %1224 = vmatprep.subr.mxu0 0.0
  %1225 = vmatpush2.msra.mxu0 0.0
  %1226 = vmatprep.subr.mxu0 0.0
  %1227 = vmatpush2.msra.mxu0 0.0
  %1228 = vmatprep.subr.mxu0 0.0
  %1229 = vmatpush2.msra.mxu0 0.0
  %1230 = vmatprep.subr.mxu0 0.0
  %1231 = vmatpush2.msra.mxu0 0.0
  %1232 = vmatprep.subr.mxu0 0.0
  %1233 = vmatpush2.msra.mxu0 0.0
  %1234 = vmatprep.mubr.f32.mxu0 0.0
  %1235 = vmatmul.mubr.f32.gmra.mxu0 %v1088
  %v1236 = vpop.f32.mrf.mxu0
  %v1237 = vadd.f32 %v1077, %v1236
  %v1238 = vpop.f32.mrf.mxu0
  %v1239 = vadd.f32 %v1079, %v1238
  %1240 = vmatprep.mubr.f32.mxu0 0.0
  %1241 = vmatmul.mubr.f32.gmra.mxu0 %v1091
  %v1242 = vpop.f32.mrf.mxu0
  %v1243 = vadd.f32 %v1083, %v1242
  %v1244 = vpop.f32.mrf.mxu0
  %v1245 = vadd.f32 %v1085, %v1244
  %1246 = vdwg.mxu0
  %v1247 = vld [vmem:[%s7] sm:$0xff]
  %v1248 = vld [vmem:[%s7 + $0x8] sm:$0xff]
  %1250 = vset.pattern.permute.xlu0 0
  %1251 = vperm.xlu0 %1250, %v1247
  %v1252 = vpop.permute.xlu0 %1251
  %1255 = vset.pattern.permute.xlu0 0
  %1256 = vperm.xlu0 %1255, %v1248
  %v1257 = vpop.permute.xlu0 %1256
  %v1259 = vadd.f32 %v1160, %v1252
  %v1260 = vadd.f32 %v1162, %v1252
  %v1261 = vadd.f32 %v1237, %v1252
  %v1262 = vadd.f32 %v1239, %v1252
  %v1263 = vadd.f32 %v1166, %v1257
  %v1264 = vadd.f32 %v1168, %v1257
  %v1265 = vadd.f32 %v1243, %v1257
  %v1266 = vadd.f32 %v1245, %v1257
  %v1267 = vmax.f32 %v1259, 0.0
  %v1268 = vmax.f32 %v1260, 0.0
  %v1269 = vmax.f32 %v1261, 0.0
  %v1270 = vmax.f32 %v1262, 0.0
  %v1271 = vmax.f32 %v1263, 0.0
  %v1272 = vmax.f32 %v1264, 0.0
  %v1273 = vmax.f32 %v1265, 0.0
  %v1274 = vmax.f32 %v1266, 0.0
  %v1275 = vld [vmem:[%s8] sm:$0xff]
  %s1276 = scalar_lea.vmem %s8, 8
  %v1277 = vld [vmem:[%s1276] sm:$0xff]
  %v1279 = vsel %vm466, %v1277, 0
  %1281 = vmatprep.subr.mxu0 0.0
  %1282 = vmatpush1.msra.mxu0 0.0
  %1283 = vmatprep.subr.mxu0 0.0
  %1284 = vmatpush1.msra.mxu0 0.0
  %1285 = vmatprep.subr.mxu0 0.0
  %1286 = vmatpush1.msra.mxu0 0.0
  %1287 = vmatprep.subr.mxu0 0.0
  %1288 = vmatpush1.msra.mxu0 0.0
  %1289 = vmatprep.subr.mxu0 0.0
  %1290 = vmatpush1.msra.mxu0 0.0
  %1291 = vmatprep.subr.mxu0 0.0
  %1292 = vmatpush1.msra.mxu0 0.0
  %1293 = vmatprep.subr.mxu0 0.0
  %1294 = vmatpush1.msra.mxu0 0.0
  %1295 = vmatprep.subr.mxu0 0.0
  %1296 = vmatpush1.msra.mxu0 0.0
  %1297 = vmatprep.subr.mxu0 0.0
  %1298 = vmatpush1.msra.mxu0 0.0
  %1299 = vmatprep.subr.mxu0 0.0
  %1300 = vmatpush1.msra.mxu0 0.0
  %1301 = vmatprep.subr.mxu0 0.0
  %1302 = vmatpush1.msra.mxu0 0.0
  %1303 = vmatprep.subr.mxu0 0.0
  %1304 = vmatpush1.msra.mxu0 0.0
  %1305 = vmatprep.subr.mxu0 0.0
  %1306 = vmatpush1.msra.mxu0 0.0
  %1307 = vmatprep.subr.mxu0 0.0
  %1308 = vmatpush1.msra.mxu0 0.0
  %1309 = vmatprep.subr.mxu0 %v1272
  %1310 = vmatpush1.msra.mxu0 %v1271
  %1311 = vmatprep.subr.mxu0 %v1268
  %1312 = vmatpush1.msra.mxu0 %v1267
  %1313 = vmatprep.subr.mxu0 0.0
  %1314 = vmatpush2.msra.mxu0 0.0
  %1315 = vmatprep.subr.mxu0 0.0
  %1316 = vmatpush2.msra.mxu0 0.0
  %1317 = vmatprep.subr.mxu0 0.0
  %1318 = vmatpush2.msra.mxu0 0.0
  %1319 = vmatprep.subr.mxu0 0.0
  %1320 = vmatpush2.msra.mxu0 0.0
  %1321 = vmatprep.subr.mxu0 0.0
  %1322 = vmatpush2.msra.mxu0 0.0
  %1323 = vmatprep.subr.mxu0 0.0
  %1324 = vmatpush2.msra.mxu0 0.0
  %1325 = vmatprep.subr.mxu0 0.0
  %1326 = vmatpush2.msra.mxu0 0.0
  %1327 = vmatprep.subr.mxu0 0.0
  %1328 = vmatpush2.msra.mxu0 0.0
  %1329 = vmatprep.subr.mxu0 0.0
  %1330 = vmatpush2.msra.mxu0 0.0
  %1331 = vmatprep.subr.mxu0 0.0
  %1332 = vmatpush2.msra.mxu0 0.0
  %1333 = vmatprep.subr.mxu0 0.0
  %1334 = vmatpush2.msra.mxu0 0.0
  %1335 = vmatprep.subr.mxu0 0.0
  %1336 = vmatpush2.msra.mxu0 0.0
  %1337 = vmatprep.subr.mxu0 0.0
  %1338 = vmatpush2.msra.mxu0 0.0
  %1339 = vmatprep.subr.mxu0 0.0
  %1340 = vmatpush2.msra.mxu0 0.0
  %1341 = vmatprep.subr.mxu0 0.0
  %1342 = vmatpush2.msra.mxu0 0.0
  %1343 = vmatprep.subr.mxu0 0.0
  %1344 = vmatpush2.msra.mxu0 0.0
  %1345 = vmatprep.mubr.f32.mxu0 0.0
  %1346 = vmatmul.mubr.f32.gmra.mxu0 %v1279
  %v1347 = vpop.f32.mrf.mxu0
  %v1348 = vadd.f32 0.0, %v1347
  %v1349 = vpop.f32.mrf.mxu0
  %v1350 = vadd.f32 0.0, %v1349
  %1351 = vdwg.mxu0
  %1352 = vmatprep.subr.mxu0 0.0
  %1353 = vmatpush1.msra.mxu0 0.0
  %1354 = vmatprep.subr.mxu0 0.0
  %1355 = vmatpush1.msra.mxu0 0.0
  %1356 = vmatprep.subr.mxu0 0.0
  %1357 = vmatpush1.msra.mxu0 0.0
  %1358 = vmatprep.subr.mxu0 0.0
  %1359 = vmatpush1.msra.mxu0 0.0
  %1360 = vmatprep.subr.mxu0 0.0
  %1361 = vmatpush1.msra.mxu0 0.0
  %1362 = vmatprep.subr.mxu0 0.0
  %1363 = vmatpush1.msra.mxu0 0.0
  %1364 = vmatprep.subr.mxu0 0.0
  %1365 = vmatpush1.msra.mxu0 0.0
  %1366 = vmatprep.subr.mxu0 0.0
  %1367 = vmatpush1.msra.mxu0 0.0
  %1368 = vmatprep.subr.mxu0 0.0
  %1369 = vmatpush1.msra.mxu0 0.0
  %1370 = vmatprep.subr.mxu0 0.0
  %1371 = vmatpush1.msra.mxu0 0.0
  %1372 = vmatprep.subr.mxu0 0.0
  %1373 = vmatpush1.msra.mxu0 0.0
  %1374 = vmatprep.subr.mxu0 0.0
  %1375 = vmatpush1.msra.mxu0 0.0
  %1376 = vmatprep.subr.mxu0 0.0
  %1377 = vmatpush1.msra.mxu0 0.0
  %1378 = vmatprep.subr.mxu0 0.0
  %1379 = vmatpush1.msra.mxu0 0.0
  %1380 = vmatprep.subr.mxu0 %v1274
  %1381 = vmatpush1.msra.mxu0 %v1273
  %1382 = vmatprep.subr.mxu0 %v1270
  %1383 = vmatpush1.msra.mxu0 %v1269
  %1384 = vmatprep.subr.mxu0 0.0
  %1385 = vmatpush2.msra.mxu0 0.0
  %1386 = vmatprep.subr.mxu0 0.0
  %1387 = vmatpush2.msra.mxu0 0.0
  %1388 = vmatprep.subr.mxu0 0.0
  %1389 = vmatpush2.msra.mxu0 0.0
  %1390 = vmatprep.subr.mxu0 0.0
  %1391 = vmatpush2.msra.mxu0 0.0
  %1392 = vmatprep.subr.mxu0 0.0
  %1393 = vmatpush2.msra.mxu0 0.0
  %1394 = vmatprep.subr.mxu0 0.0
  %1395 = vmatpush2.msra.mxu0 0.0
  %1396 = vmatprep.subr.mxu0 0.0
  %1397 = vmatpush2.msra.mxu0 0.0
  %1398 = vmatprep.subr.mxu0 0.0
  %1399 = vmatpush2.msra.mxu0 0.0
  %1400 = vmatprep.subr.mxu0 0.0
  %1401 = vmatpush2.msra.mxu0 0.0
  %1402 = vmatprep.subr.mxu0 0.0
  %1403 = vmatpush2.msra.mxu0 0.0
  %1404 = vmatprep.subr.mxu0 0.0
  %1405 = vmatpush2.msra.mxu0 0.0
  %1406 = vmatprep.subr.mxu0 0.0
  %1407 = vmatpush2.msra.mxu0 0.0
  %1408 = vmatprep.subr.mxu0 0.0
  %1409 = vmatpush2.msra.mxu0 0.0
  %1410 = vmatprep.subr.mxu0 0.0
  %1411 = vmatpush2.msra.mxu0 0.0
  %1412 = vmatprep.subr.mxu0 0.0
  %1413 = vmatpush2.msra.mxu0 0.0
  %1414 = vmatprep.subr.mxu0 0.0
  %1415 = vmatpush2.msra.mxu0 0.0
  %1416 = vmatprep.mubr.f32.mxu0 0.0
  %1417 = vmatmul.mubr.f32.gmra.mxu0 %v1279
  %v1418 = vpop.f32.mrf.mxu0
  %v1419 = vadd.f32 0.0, %v1418
  %v1420 = vpop.f32.mrf.mxu0
  %v1421 = vadd.f32 0.0, %v1420
  %1422 = vdwg.mxu0
  %v1424 = vsel %vm466, %v1275, 0
  %1426 = vmatprep.subr.mxu0 0.0
  %1427 = vmatpush1.msra.mxu0 0.0
  %1428 = vmatprep.subr.mxu0 0.0
  %1429 = vmatpush1.msra.mxu0 0.0
  %1430 = vmatprep.subr.mxu0 0.0
  %1431 = vmatpush1.msra.mxu0 0.0
  %1432 = vmatprep.subr.mxu0 0.0
  %1433 = vmatpush1.msra.mxu0 0.0
  %1434 = vmatprep.subr.mxu0 0.0
  %1435 = vmatpush1.msra.mxu0 0.0
  %1436 = vmatprep.subr.mxu0 0.0
  %1437 = vmatpush1.msra.mxu0 0.0
  %1438 = vmatprep.subr.mxu0 0.0
  %1439 = vmatpush1.msra.mxu0 0.0
  %1440 = vmatprep.subr.mxu0 0.0
  %1441 = vmatpush1.msra.mxu0 0.0
  %1442 = vmatprep.subr.mxu0 0.0
  %1443 = vmatpush1.msra.mxu0 0.0
  %1444 = vmatprep.subr.mxu0 0.0
  %1445 = vmatpush1.msra.mxu0 0.0
  %1446 = vmatprep.subr.mxu0 0.0
  %1447 = vmatpush1.msra.mxu0 0.0
  %1448 = vmatprep.subr.mxu0 0.0
  %1449 = vmatpush1.msra.mxu0 0.0
  %1450 = vmatprep.subr.mxu0 0.0
  %1451 = vmatpush1.msra.mxu0 0.0
  %1452 = vmatprep.subr.mxu0 0.0
  %1453 = vmatpush1.msra.mxu0 0.0
  %1454 = vmatprep.subr.mxu0 %v1271
  %1455 = vmatpush1.msra.mxu0 0.0
  %1456 = vmatprep.subr.mxu0 %v1267
  %1457 = vmatpush1.msra.mxu0 0.0
  %1458 = vmatprep.subr.mxu0 0.0
  %1459 = vmatpush2.msra.mxu0 0.0
  %1460 = vmatprep.subr.mxu0 0.0
  %1461 = vmatpush2.msra.mxu0 0.0
  %1462 = vmatprep.subr.mxu0 0.0
  %1463 = vmatpush2.msra.mxu0 0.0
  %1464 = vmatprep.subr.mxu0 0.0
  %1465 = vmatpush2.msra.mxu0 0.0
  %1466 = vmatprep.subr.mxu0 0.0
  %1467 = vmatpush2.msra.mxu0 0.0
  %1468 = vmatprep.subr.mxu0 0.0
  %1469 = vmatpush2.msra.mxu0 0.0
  %1470 = vmatprep.subr.mxu0 0.0
  %1471 = vmatpush2.msra.mxu0 0.0
  %1472 = vmatprep.subr.mxu0 0.0
  %1473 = vmatpush2.msra.mxu0 0.0
  %1474 = vmatprep.subr.mxu0 0.0
  %1475 = vmatpush2.msra.mxu0 0.0
  %1476 = vmatprep.subr.mxu0 0.0
  %1477 = vmatpush2.msra.mxu0 0.0
  %1478 = vmatprep.subr.mxu0 0.0
  %1479 = vmatpush2.msra.mxu0 0.0
  %1480 = vmatprep.subr.mxu0 0.0
  %1481 = vmatpush2.msra.mxu0 0.0
  %1482 = vmatprep.subr.mxu0 0.0
  %1483 = vmatpush2.msra.mxu0 0.0
  %1484 = vmatprep.subr.mxu0 0.0
  %1485 = vmatpush2.msra.mxu0 0.0
  %1486 = vmatprep.subr.mxu0 0.0
  %1487 = vmatpush2.msra.mxu0 0.0
  %1488 = vmatprep.subr.mxu0 0.0
  %1489 = vmatpush2.msra.mxu0 0.0
  %1490 = vmatprep.mubr.f32.mxu0 0.0
  %1491 = vmatmul.mubr.f32.gmra.mxu0 %v1424
  %v1492 = vpop.f32.mrf.mxu0
  %v1493 = vadd.f32 %v1348, %v1492
  %v1494 = vpop.f32.mrf.mxu0
  %v1495 = vadd.f32 %v1350, %v1494
  %1496 = vdwg.mxu0
  %1497 = vmatprep.subr.mxu0 0.0
  %1498 = vmatpush1.msra.mxu0 0.0
  %1499 = vmatprep.subr.mxu0 0.0
  %1500 = vmatpush1.msra.mxu0 0.0
  %1501 = vmatprep.subr.mxu0 0.0
  %1502 = vmatpush1.msra.mxu0 0.0
  %1503 = vmatprep.subr.mxu0 0.0
  %1504 = vmatpush1.msra.mxu0 0.0
  %1505 = vmatprep.subr.mxu0 0.0
  %1506 = vmatpush1.msra.mxu0 0.0
  %1507 = vmatprep.subr.mxu0 0.0
  %1508 = vmatpush1.msra.mxu0 0.0
  %1509 = vmatprep.subr.mxu0 0.0
  %1510 = vmatpush1.msra.mxu0 0.0
  %1511 = vmatprep.subr.mxu0 0.0
  %1512 = vmatpush1.msra.mxu0 0.0
  %1513 = vmatprep.subr.mxu0 0.0
  %1514 = vmatpush1.msra.mxu0 0.0
  %1515 = vmatprep.subr.mxu0 0.0
  %1516 = vmatpush1.msra.mxu0 0.0
  %1517 = vmatprep.subr.mxu0 0.0
  %1518 = vmatpush1.msra.mxu0 0.0
  %1519 = vmatprep.subr.mxu0 0.0
  %1520 = vmatpush1.msra.mxu0 0.0
  %1521 = vmatprep.subr.mxu0 0.0
  %1522 = vmatpush1.msra.mxu0 0.0
  %1523 = vmatprep.subr.mxu0 0.0
  %1524 = vmatpush1.msra.mxu0 0.0
  %1525 = vmatprep.subr.mxu0 %v1273
  %1526 = vmatpush1.msra.mxu0 %v1272
  %1527 = vmatprep.subr.mxu0 %v1269
  %1528 = vmatpush1.msra.mxu0 %v1268
  %1529 = vmatprep.subr.mxu0 0.0
  %1530 = vmatpush2.msra.mxu0 0.0
  %1531 = vmatprep.subr.mxu0 0.0
  %1532 = vmatpush2.msra.mxu0 0.0
  %1533 = vmatprep.subr.mxu0 0.0
  %1534 = vmatpush2.msra.mxu0 0.0
  %1535 = vmatprep.subr.mxu0 0.0
  %1536 = vmatpush2.msra.mxu0 0.0
  %1537 = vmatprep.subr.mxu0 0.0
  %1538 = vmatpush2.msra.mxu0 0.0
  %1539 = vmatprep.subr.mxu0 0.0
  %1540 = vmatpush2.msra.mxu0 0.0
  %1541 = vmatprep.subr.mxu0 0.0
  %1542 = vmatpush2.msra.mxu0 0.0
  %1543 = vmatprep.subr.mxu0 0.0
  %1544 = vmatpush2.msra.mxu0 0.0
  %1545 = vmatprep.subr.mxu0 0.0
  %1546 = vmatpush2.msra.mxu0 0.0
  %1547 = vmatprep.subr.mxu0 0.0
  %1548 = vmatpush2.msra.mxu0 0.0
  %1549 = vmatprep.subr.mxu0 0.0
  %1550 = vmatpush2.msra.mxu0 0.0
  %1551 = vmatprep.subr.mxu0 0.0
  %1552 = vmatpush2.msra.mxu0 0.0
  %1553 = vmatprep.subr.mxu0 0.0
  %1554 = vmatpush2.msra.mxu0 0.0
  %1555 = vmatprep.subr.mxu0 0.0
  %1556 = vmatpush2.msra.mxu0 0.0
  %1557 = vmatprep.subr.mxu0 0.0
  %1558 = vmatpush2.msra.mxu0 0.0
  %1559 = vmatprep.subr.mxu0 0.0
  %1560 = vmatpush2.msra.mxu0 0.0
  %1561 = vmatprep.mubr.f32.mxu0 0.0
  %1562 = vmatmul.mubr.f32.gmra.mxu0 %v1424
  %v1563 = vpop.f32.mrf.mxu0
  %v1564 = vadd.f32 %v1419, %v1563
  %v1565 = vpop.f32.mrf.mxu0
  %v1566 = vadd.f32 %v1421, %v1565
  %1567 = vdwg.mxu0
  %s1568 = scalar_lea.vmem %s8, 16
  %v1569 = vld [vmem:[%s1568] sm:$0xff]
  %v1571 = vsel %vm466, %v1569, 0
  %1573 = vmatprep.subr.mxu0 0.0
  %1574 = vmatpush1.msra.mxu0 0.0
  %1575 = vmatprep.subr.mxu0 0.0
  %1576 = vmatpush1.msra.mxu0 0.0
  %1577 = vmatprep.subr.mxu0 0.0
  %1578 = vmatpush1.msra.mxu0 0.0
  %1579 = vmatprep.subr.mxu0 0.0
  %1580 = vmatpush1.msra.mxu0 0.0
  %1581 = vmatprep.subr.mxu0 0.0
  %1582 = vmatpush1.msra.mxu0 0.0
  %1583 = vmatprep.subr.mxu0 0.0
  %1584 = vmatpush1.msra.mxu0 0.0
  %1585 = vmatprep.subr.mxu0 0.0
  %1586 = vmatpush1.msra.mxu0 0.0
  %1587 = vmatprep.subr.mxu0 0.0
  %1588 = vmatpush1.msra.mxu0 0.0
  %1589 = vmatprep.subr.mxu0 0.0
  %1590 = vmatpush1.msra.mxu0 0.0
  %1591 = vmatprep.subr.mxu0 0.0
  %1592 = vmatpush1.msra.mxu0 0.0
  %1593 = vmatprep.subr.mxu0 0.0
  %1594 = vmatpush1.msra.mxu0 0.0
  %1595 = vmatprep.subr.mxu0 0.0
  %1596 = vmatpush1.msra.mxu0 0.0
  %1597 = vmatprep.subr.mxu0 0.0
  %1598 = vmatpush1.msra.mxu0 0.0
  %1599 = vmatprep.subr.mxu0 0.0
  %1600 = vmatpush1.msra.mxu0 0.0
  %1601 = vmatprep.subr.mxu0 %v1273
  %1602 = vmatpush1.msra.mxu0 %v1272
  %1603 = vmatprep.subr.mxu0 %v1269
  %1604 = vmatpush1.msra.mxu0 %v1268
  %1605 = vmatprep.subr.mxu0 0.0
  %1606 = vmatpush2.msra.mxu0 0.0
  %1607 = vmatprep.subr.mxu0 0.0
  %1608 = vmatpush2.msra.mxu0 0.0
  %1609 = vmatprep.subr.mxu0 0.0
  %1610 = vmatpush2.msra.mxu0 0.0
  %1611 = vmatprep.subr.mxu0 0.0
  %1612 = vmatpush2.msra.mxu0 0.0
  %1613 = vmatprep.subr.mxu0 0.0
  %1614 = vmatpush2.msra.mxu0 0.0
  %1615 = vmatprep.subr.mxu0 0.0
  %1616 = vmatpush2.msra.mxu0 0.0
  %1617 = vmatprep.subr.mxu0 0.0
  %1618 = vmatpush2.msra.mxu0 0.0
  %1619 = vmatprep.subr.mxu0 0.0
  %1620 = vmatpush2.msra.mxu0 0.0
  %1621 = vmatprep.subr.mxu0 0.0
  %1622 = vmatpush2.msra.mxu0 0.0
  %1623 = vmatprep.subr.mxu0 0.0
  %1624 = vmatpush2.msra.mxu0 0.0
  %1625 = vmatprep.subr.mxu0 0.0
  %1626 = vmatpush2.msra.mxu0 0.0
  %1627 = vmatprep.subr.mxu0 0.0
  %1628 = vmatpush2.msra.mxu0 0.0
  %1629 = vmatprep.subr.mxu0 0.0
  %1630 = vmatpush2.msra.mxu0 0.0
  %1631 = vmatprep.subr.mxu0 0.0
  %1632 = vmatpush2.msra.mxu0 0.0
  %1633 = vmatprep.subr.mxu0 0.0
  %1634 = vmatpush2.msra.mxu0 0.0
  %1635 = vmatprep.subr.mxu0 0.0
  %1636 = vmatpush2.msra.mxu0 0.0
  %1637 = vmatprep.mubr.f32.mxu0 0.0
  %1638 = vmatmul.mubr.f32.gmra.mxu0 %v1571
  %v1639 = vpop.f32.mrf.mxu0
  %v1640 = vadd.f32 0.0, %v1639
  %v1641 = vpop.f32.mrf.mxu0
  %v1642 = vadd.f32 0.0, %v1641
  %1643 = vdwg.mxu0
  %1644 = vmatprep.subr.mxu0 0.0
  %1645 = vmatpush1.msra.mxu0 0.0
  %1646 = vmatprep.subr.mxu0 0.0
  %1647 = vmatpush1.msra.mxu0 0.0
  %1648 = vmatprep.subr.mxu0 0.0
  %1649 = vmatpush1.msra.mxu0 0.0
  %1650 = vmatprep.subr.mxu0 0.0
  %1651 = vmatpush1.msra.mxu0 0.0
  %1652 = vmatprep.subr.mxu0 0.0
  %1653 = vmatpush1.msra.mxu0 0.0
  %1654 = vmatprep.subr.mxu0 0.0
  %1655 = vmatpush1.msra.mxu0 0.0
  %1656 = vmatprep.subr.mxu0 0.0
  %1657 = vmatpush1.msra.mxu0 0.0
  %1658 = vmatprep.subr.mxu0 0.0
  %1659 = vmatpush1.msra.mxu0 0.0
  %1660 = vmatprep.subr.mxu0 0.0
  %1661 = vmatpush1.msra.mxu0 0.0
  %1662 = vmatprep.subr.mxu0 0.0
  %1663 = vmatpush1.msra.mxu0 0.0
  %1664 = vmatprep.subr.mxu0 0.0
  %1665 = vmatpush1.msra.mxu0 0.0
  %1666 = vmatprep.subr.mxu0 0.0
  %1667 = vmatpush1.msra.mxu0 0.0
  %1668 = vmatprep.subr.mxu0 0.0
  %1669 = vmatpush1.msra.mxu0 0.0
  %1670 = vmatprep.subr.mxu0 0.0
  %1671 = vmatpush1.msra.mxu0 0.0
  %1672 = vmatprep.subr.mxu0 0.0
  %1673 = vmatpush1.msra.mxu0 %v1274
  %1674 = vmatprep.subr.mxu0 0.0
  %1675 = vmatpush1.msra.mxu0 %v1270
  %1676 = vmatprep.subr.mxu0 0.0
  %1677 = vmatpush2.msra.mxu0 0.0
  %1678 = vmatprep.subr.mxu0 0.0
  %1679 = vmatpush2.msra.mxu0 0.0
  %1680 = vmatprep.subr.mxu0 0.0
  %1681 = vmatpush2.msra.mxu0 0.0
  %1682 = vmatprep.subr.mxu0 0.0
  %1683 = vmatpush2.msra.mxu0 0.0
  %1684 = vmatprep.subr.mxu0 0.0
  %1685 = vmatpush2.msra.mxu0 0.0
  %1686 = vmatprep.subr.mxu0 0.0
  %1687 = vmatpush2.msra.mxu0 0.0
  %1688 = vmatprep.subr.mxu0 0.0
  %1689 = vmatpush2.msra.mxu0 0.0
  %1690 = vmatprep.subr.mxu0 0.0
  %1691 = vmatpush2.msra.mxu0 0.0
  %1692 = vmatprep.subr.mxu0 0.0
  %1693 = vmatpush2.msra.mxu0 0.0
  %1694 = vmatprep.subr.mxu0 0.0
  %1695 = vmatpush2.msra.mxu0 0.0
  %1696 = vmatprep.subr.mxu0 0.0
  %1697 = vmatpush2.msra.mxu0 0.0
  %1698 = vmatprep.subr.mxu0 0.0
  %1699 = vmatpush2.msra.mxu0 0.0
  %1700 = vmatprep.subr.mxu0 0.0
  %1701 = vmatpush2.msra.mxu0 0.0
  %1702 = vmatprep.subr.mxu0 0.0
  %1703 = vmatpush2.msra.mxu0 0.0
  %1704 = vmatprep.subr.mxu0 0.0
  %1705 = vmatpush2.msra.mxu0 0.0
  %1706 = vmatprep.subr.mxu0 0.0
  %1707 = vmatpush2.msra.mxu0 0.0
  %1708 = vmatprep.mubr.f32.mxu0 0.0
  %1709 = vmatmul.mubr.f32.gmra.mxu0 %v1571
  %v1710 = vpop.f32.mrf.mxu0
  %v1711 = vadd.f32 0.0, %v1710
  %v1712 = vpop.f32.mrf.mxu0
  %v1713 = vadd.f32 0.0, %v1712
  %1714 = vdwg.mxu0
  %v1715 = vadd.f32 %v1493, %v1640
  %v1716 = vadd.f32 %v1495, %v1642
  %v1717 = vadd.f32 %v1564, %v1711
  %v1718 = vadd.f32 %v1566, %v1713
  %v1719 = vld [vmem:[%s9] sm:$0xff]
  %1721 = vset.pattern.permute.xlu0 0
  %1722 = vperm.xlu0 %1721, %v1719
  %v1723 = vpop.permute.xlu0 %1722
  %v1725 = vadd.f32 %v1715, %v1723
  %v1726 = vadd.f32 %v1716, %v1723
  %v1727 = vadd.f32 %v1717, %v1723
  %v1728 = vadd.f32 %v1718, %v1723
  %v1729 = vmax.f32 %v1725, 0.0
  %v1730 = vmax.f32 %v1726, 0.0
  %v1731 = vmax.f32 %v1727, 0.0
  %v1732 = vmax.f32 %v1728, 0.0
  %v1733 = vld [vmem:[%s10] sm:$0xff]
  %v1734 = vld [vmem:[%s10 + $0x8] sm:$0xff]
  %v1735 = vld [vmem:[%s11] sm:$0xff]
  %v1736 = vld [vmem:[%s11 + $0x8] sm:$0xff]
  %v1738 = vsel %vm926, %v1735, 0
  %v1741 = vsel %vm926, %v1736, 0
  %1743 = vmatprep.subr.mxu0 0.0
  %1744 = vmatpush1.msra.mxu0 0.0
  %1745 = vmatprep.subr.mxu0 0.0
  %1746 = vmatpush1.msra.mxu0 0.0
  %1747 = vmatprep.subr.mxu0 0.0
  %1748 = vmatpush1.msra.mxu0 0.0
  %1749 = vmatprep.subr.mxu0 0.0
  %1750 = vmatpush1.msra.mxu0 0.0
  %1751 = vmatprep.subr.mxu0 0.0
  %1752 = vmatpush1.msra.mxu0 0.0
  %1753 = vmatprep.subr.mxu0 0.0
  %1754 = vmatpush1.msra.mxu0 0.0
  %1755 = vmatprep.subr.mxu0 0.0
  %1756 = vmatpush1.msra.mxu0 0.0
  %1757 = vmatprep.subr.mxu0 0.0
  %1758 = vmatpush1.msra.mxu0 0.0
  %1759 = vmatprep.subr.mxu0 0.0
  %1760 = vmatpush1.msra.mxu0 0.0
  %1761 = vmatprep.subr.mxu0 0.0
  %1762 = vmatpush1.msra.mxu0 0.0
  %1763 = vmatprep.subr.mxu0 0.0
  %1764 = vmatpush1.msra.mxu0 0.0
  %1765 = vmatprep.subr.mxu0 0.0
  %1766 = vmatpush1.msra.mxu0 0.0
  %1767 = vmatprep.subr.mxu0 0.0
  %1768 = vmatpush1.msra.mxu0 0.0
  %1769 = vmatprep.subr.mxu0 0.0
  %1770 = vmatpush1.msra.mxu0 0.0
  %1771 = vmatprep.subr.mxu0 0.0
  %1772 = vmatpush1.msra.mxu0 0.0
  %1773 = vmatprep.subr.mxu0 %v1730
  %1774 = vmatpush1.msra.mxu0 %v1729
  %1775 = vmatprep.subr.mxu0 0.0
  %1776 = vmatpush2.msra.mxu0 0.0
  %1777 = vmatprep.subr.mxu0 0.0
  %1778 = vmatpush2.msra.mxu0 0.0
  %1779 = vmatprep.subr.mxu0 0.0
  %1780 = vmatpush2.msra.mxu0 0.0
  %1781 = vmatprep.subr.mxu0 0.0
  %1782 = vmatpush2.msra.mxu0 0.0
  %1783 = vmatprep.subr.mxu0 0.0
  %1784 = vmatpush2.msra.mxu0 0.0
  %1785 = vmatprep.subr.mxu0 0.0
  %1786 = vmatpush2.msra.mxu0 0.0
  %1787 = vmatprep.subr.mxu0 0.0
  %1788 = vmatpush2.msra.mxu0 0.0
  %1789 = vmatprep.subr.mxu0 0.0
  %1790 = vmatpush2.msra.mxu0 0.0
  %1791 = vmatprep.subr.mxu0 0.0
  %1792 = vmatpush2.msra.mxu0 0.0
  %1793 = vmatprep.subr.mxu0 0.0
  %1794 = vmatpush2.msra.mxu0 0.0
  %1795 = vmatprep.subr.mxu0 0.0
  %1796 = vmatpush2.msra.mxu0 0.0
  %1797 = vmatprep.subr.mxu0 0.0
  %1798 = vmatpush2.msra.mxu0 0.0
  %1799 = vmatprep.subr.mxu0 0.0
  %1800 = vmatpush2.msra.mxu0 0.0
  %1801 = vmatprep.subr.mxu0 0.0
  %1802 = vmatpush2.msra.mxu0 0.0
  %1803 = vmatprep.subr.mxu0 0.0
  %1804 = vmatpush2.msra.mxu0 0.0
  %1805 = vmatprep.subr.mxu0 0.0
  %1806 = vmatpush2.msra.mxu0 0.0
  %1807 = vmatprep.mubr.f32.mxu0 0.0
  %1808 = vmatmul.mubr.f32.gmra.mxu0 %v1738
  %v1809 = vpop.f32.mrf.mxu0
  %v1810 = vadd.f32 0.0, %v1809
  %v1811 = vpop.f32.mrf.mxu0
  %v1812 = vadd.f32 0.0, %v1811
  %1813 = vmatprep.mubr.f32.mxu0 0.0
  %1814 = vmatmul.mubr.f32.gmra.mxu0 %v1741
  %v1815 = vpop.f32.mrf.mxu0
  %v1816 = vadd.f32 0.0, %v1815
  %v1817 = vpop.f32.mrf.mxu0
  %v1818 = vadd.f32 0.0, %v1817
  %1819 = vdwg.mxu0
  %1820 = vmatprep.subr.mxu0 0.0
  %1821 = vmatpush1.msra.mxu0 0.0
  %1822 = vmatprep.subr.mxu0 0.0
  %1823 = vmatpush1.msra.mxu0 0.0
  %1824 = vmatprep.subr.mxu0 0.0
  %1825 = vmatpush1.msra.mxu0 0.0
  %1826 = vmatprep.subr.mxu0 0.0
  %1827 = vmatpush1.msra.mxu0 0.0
  %1828 = vmatprep.subr.mxu0 0.0
  %1829 = vmatpush1.msra.mxu0 0.0
  %1830 = vmatprep.subr.mxu0 0.0
  %1831 = vmatpush1.msra.mxu0 0.0
  %1832 = vmatprep.subr.mxu0 0.0
  %1833 = vmatpush1.msra.mxu0 0.0
  %1834 = vmatprep.subr.mxu0 0.0
  %1835 = vmatpush1.msra.mxu0 0.0
  %1836 = vmatprep.subr.mxu0 0.0
  %1837 = vmatpush1.msra.mxu0 0.0
  %1838 = vmatprep.subr.mxu0 0.0
  %1839 = vmatpush1.msra.mxu0 0.0
  %1840 = vmatprep.subr.mxu0 0.0
  %1841 = vmatpush1.msra.mxu0 0.0
  %1842 = vmatprep.subr.mxu0 0.0
  %1843 = vmatpush1.msra.mxu0 0.0
  %1844 = vmatprep.subr.mxu0 0.0
  %1845 = vmatpush1.msra.mxu0 0.0
  %1846 = vmatprep.subr.mxu0 0.0
  %1847 = vmatpush1.msra.mxu0 0.0
  %1848 = vmatprep.subr.mxu0 0.0
  %1849 = vmatpush1.msra.mxu0 0.0
  %1850 = vmatprep.subr.mxu0 %v1732
  %1851 = vmatpush1.msra.mxu0 %v1731
  %1852 = vmatprep.subr.mxu0 0.0
  %1853 = vmatpush2.msra.mxu0 0.0
  %1854 = vmatprep.subr.mxu0 0.0
  %1855 = vmatpush2.msra.mxu0 0.0
  %1856 = vmatprep.subr.mxu0 0.0
  %1857 = vmatpush2.msra.mxu0 0.0
  %1858 = vmatprep.subr.mxu0 0.0
  %1859 = vmatpush2.msra.mxu0 0.0
  %1860 = vmatprep.subr.mxu0 0.0
  %1861 = vmatpush2.msra.mxu0 0.0
  %1862 = vmatprep.subr.mxu0 0.0
  %1863 = vmatpush2.msra.mxu0 0.0
  %1864 = vmatprep.subr.mxu0 0.0
  %1865 = vmatpush2.msra.mxu0 0.0
  %1866 = vmatprep.subr.mxu0 0.0
  %1867 = vmatpush2.msra.mxu0 0.0
  %1868 = vmatprep.subr.mxu0 0.0
  %1869 = vmatpush2.msra.mxu0 0.0
  %1870 = vmatprep.subr.mxu0 0.0
  %1871 = vmatpush2.msra.mxu0 0.0
  %1872 = vmatprep.subr.mxu0 0.0
  %1873 = vmatpush2.msra.mxu0 0.0
  %1874 = vmatprep.subr.mxu0 0.0
  %1875 = vmatpush2.msra.mxu0 0.0
  %1876 = vmatprep.subr.mxu0 0.0
  %1877 = vmatpush2.msra.mxu0 0.0
  %1878 = vmatprep.subr.mxu0 0.0
  %1879 = vmatpush2.msra.mxu0 0.0
  %1880 = vmatprep.subr.mxu0 0.0
  %1881 = vmatpush2.msra.mxu0 0.0
  %1882 = vmatprep.subr.mxu0 0.0
  %1883 = vmatpush2.msra.mxu0 0.0
  %1884 = vmatprep.mubr.f32.mxu0 0.0
  %1885 = vmatmul.mubr.f32.gmra.mxu0 %v1738
  %v1886 = vpop.f32.mrf.mxu0
  %v1887 = vadd.f32 0.0, %v1886
  %v1888 = vpop.f32.mrf.mxu0
  %v1889 = vadd.f32 0.0, %v1888
  %1890 = vmatprep.mubr.f32.mxu0 0.0
  %1891 = vmatmul.mubr.f32.gmra.mxu0 %v1741
  %v1892 = vpop.f32.mrf.mxu0
  %v1893 = vadd.f32 0.0, %v1892
  %v1894 = vpop.f32.mrf.mxu0
  %v1895 = vadd.f32 0.0, %v1894
  %1896 = vdwg.mxu0
  %v1898 = vsel %vm926, %v1733, 0
  %v1901 = vsel %vm926, %v1734, 0
  %1903 = vmatprep.subr.mxu0 0.0
  %1904 = vmatpush1.msra.mxu0 0.0
  %1905 = vmatprep.subr.mxu0 0.0
  %1906 = vmatpush1.msra.mxu0 0.0
  %1907 = vmatprep.subr.mxu0 0.0
  %1908 = vmatpush1.msra.mxu0 0.0
  %1909 = vmatprep.subr.mxu0 0.0
  %1910 = vmatpush1.msra.mxu0 0.0
  %1911 = vmatprep.subr.mxu0 0.0
  %1912 = vmatpush1.msra.mxu0 0.0
  %1913 = vmatprep.subr.mxu0 0.0
  %1914 = vmatpush1.msra.mxu0 0.0
  %1915 = vmatprep.subr.mxu0 0.0
  %1916 = vmatpush1.msra.mxu0 0.0
  %1917 = vmatprep.subr.mxu0 0.0
  %1918 = vmatpush1.msra.mxu0 0.0
  %1919 = vmatprep.subr.mxu0 0.0
  %1920 = vmatpush1.msra.mxu0 0.0
  %1921 = vmatprep.subr.mxu0 0.0
  %1922 = vmatpush1.msra.mxu0 0.0
  %1923 = vmatprep.subr.mxu0 0.0
  %1924 = vmatpush1.msra.mxu0 0.0
  %1925 = vmatprep.subr.mxu0 0.0
  %1926 = vmatpush1.msra.mxu0 0.0
  %1927 = vmatprep.subr.mxu0 0.0
  %1928 = vmatpush1.msra.mxu0 0.0
  %1929 = vmatprep.subr.mxu0 0.0
  %1930 = vmatpush1.msra.mxu0 0.0
  %1931 = vmatprep.subr.mxu0 0.0
  %1932 = vmatpush1.msra.mxu0 0.0
  %1933 = vmatprep.subr.mxu0 %v919
  %1934 = vmatpush1.msra.mxu0 %v918
  %1935 = vmatprep.subr.mxu0 0.0
  %1936 = vmatpush2.msra.mxu0 0.0
  %1937 = vmatprep.subr.mxu0 0.0
  %1938 = vmatpush2.msra.mxu0 0.0
  %1939 = vmatprep.subr.mxu0 0.0
  %1940 = vmatpush2.msra.mxu0 0.0
  %1941 = vmatprep.subr.mxu0 0.0
  %1942 = vmatpush2.msra.mxu0 0.0
  %1943 = vmatprep.subr.mxu0 0.0
  %1944 = vmatpush2.msra.mxu0 0.0
  %1945 = vmatprep.subr.mxu0 0.0
  %1946 = vmatpush2.msra.mxu0 0.0
  %1947 = vmatprep.subr.mxu0 0.0
  %1948 = vmatpush2.msra.mxu0 0.0
  %1949 = vmatprep.subr.mxu0 0.0
  %1950 = vmatpush2.msra.mxu0 0.0
  %1951 = vmatprep.subr.mxu0 0.0
  %1952 = vmatpush2.msra.mxu0 0.0
  %1953 = vmatprep.subr.mxu0 0.0
  %1954 = vmatpush2.msra.mxu0 0.0
  %1955 = vmatprep.subr.mxu0 0.0
  %1956 = vmatpush2.msra.mxu0 0.0
  %1957 = vmatprep.subr.mxu0 0.0
  %1958 = vmatpush2.msra.mxu0 0.0
  %1959 = vmatprep.subr.mxu0 0.0
  %1960 = vmatpush2.msra.mxu0 0.0
  %1961 = vmatprep.subr.mxu0 0.0
  %1962 = vmatpush2.msra.mxu0 0.0
  %1963 = vmatprep.subr.mxu0 0.0
  %1964 = vmatpush2.msra.mxu0 0.0
  %1965 = vmatprep.subr.mxu0 0.0
  %1966 = vmatpush2.msra.mxu0 0.0
  %1967 = vmatprep.mubr.f32.mxu0 0.0
  %1968 = vmatmul.mubr.f32.gmra.mxu0 %v1898
  %v1969 = vpop.f32.mrf.mxu0
  %v1970 = vadd.f32 %v1810, %v1969
  %v1971 = vpop.f32.mrf.mxu0
  %v1972 = vadd.f32 %v1812, %v1971
  %1973 = vmatprep.mubr.f32.mxu0 0.0
  %1974 = vmatmul.mubr.f32.gmra.mxu0 %v1901
  %v1975 = vpop.f32.mrf.mxu0
  %v1976 = vadd.f32 %v1816, %v1975
  %v1977 = vpop.f32.mrf.mxu0
  %v1978 = vadd.f32 %v1818, %v1977
  %1979 = vdwg.mxu0
  %1980 = vmatprep.subr.mxu0 0.0
  %1981 = vmatpush1.msra.mxu0 0.0
  %1982 = vmatprep.subr.mxu0 0.0
  %1983 = vmatpush1.msra.mxu0 0.0
  %1984 = vmatprep.subr.mxu0 0.0
  %1985 = vmatpush1.msra.mxu0 0.0
  %1986 = vmatprep.subr.mxu0 0.0
  %1987 = vmatpush1.msra.mxu0 0.0
  %1988 = vmatprep.subr.mxu0 0.0
  %1989 = vmatpush1.msra.mxu0 0.0
  %1990 = vmatprep.subr.mxu0 0.0
  %1991 = vmatpush1.msra.mxu0 0.0
  %1992 = vmatprep.subr.mxu0 0.0
  %1993 = vmatpush1.msra.mxu0 0.0
  %1994 = vmatprep.subr.mxu0 0.0
  %1995 = vmatpush1.msra.mxu0 0.0
  %1996 = vmatprep.subr.mxu0 0.0
  %1997 = vmatpush1.msra.mxu0 0.0
  %1998 = vmatprep.subr.mxu0 0.0
  %1999 = vmatpush1.msra.mxu0 0.0
  %2000 = vmatprep.subr.mxu0 0.0
  %2001 = vmatpush1.msra.mxu0 0.0
  %2002 = vmatprep.subr.mxu0 0.0
  %2003 = vmatpush1.msra.mxu0 0.0
  %2004 = vmatprep.subr.mxu0 0.0
  %2005 = vmatpush1.msra.mxu0 0.0
  %2006 = vmatprep.subr.mxu0 0.0
  %2007 = vmatpush1.msra.mxu0 0.0
  %2008 = vmatprep.subr.mxu0 0.0
  %2009 = vmatpush1.msra.mxu0 0.0
  %2010 = vmatprep.subr.mxu0 %v921
  %2011 = vmatpush1.msra.mxu0 %v920
  %2012 = vmatprep.subr.mxu0 0.0
  %2013 = vmatpush2.msra.mxu0 0.0
  %2014 = vmatprep.subr.mxu0 0.0
  %2015 = vmatpush2.msra.mxu0 0.0
  %2016 = vmatprep.subr.mxu0 0.0
  %2017 = vmatpush2.msra.mxu0 0.0
  %2018 = vmatprep.subr.mxu0 0.0
  %2019 = vmatpush2.msra.mxu0 0.0
  %2020 = vmatprep.subr.mxu0 0.0
  %2021 = vmatpush2.msra.mxu0 0.0
  %2022 = vmatprep.subr.mxu0 0.0
  %2023 = vmatpush2.msra.mxu0 0.0
  %2024 = vmatprep.subr.mxu0 0.0
  %2025 = vmatpush2.msra.mxu0 0.0
  %2026 = vmatprep.subr.mxu0 0.0
  %2027 = vmatpush2.msra.mxu0 0.0
  %2028 = vmatprep.subr.mxu0 0.0
  %2029 = vmatpush2.msra.mxu0 0.0
  %2030 = vmatprep.subr.mxu0 0.0
  %2031 = vmatpush2.msra.mxu0 0.0
  %2032 = vmatprep.subr.mxu0 0.0
  %2033 = vmatpush2.msra.mxu0 0.0
  %2034 = vmatprep.subr.mxu0 0.0
  %2035 = vmatpush2.msra.mxu0 0.0
  %2036 = vmatprep.subr.mxu0 0.0
  %2037 = vmatpush2.msra.mxu0 0.0
  %2038 = vmatprep.subr.mxu0 0.0
  %2039 = vmatpush2.msra.mxu0 0.0
  %2040 = vmatprep.subr.mxu0 0.0
  %2041 = vmatpush2.msra.mxu0 0.0
  %2042 = vmatprep.subr.mxu0 0.0
  %2043 = vmatpush2.msra.mxu0 0.0
  %2044 = vmatprep.mubr.f32.mxu0 0.0
  %2045 = vmatmul.mubr.f32.gmra.mxu0 %v1898
  %v2046 = vpop.f32.mrf.mxu0
  %v2047 = vadd.f32 %v1887, %v2046
  %v2048 = vpop.f32.mrf.mxu0
  %v2049 = vadd.f32 %v1889, %v2048
  %2050 = vmatprep.mubr.f32.mxu0 0.0
  %2051 = vmatmul.mubr.f32.gmra.mxu0 %v1901
  %v2052 = vpop.f32.mrf.mxu0
  %v2053 = vadd.f32 %v1893, %v2052
  %v2054 = vpop.f32.mrf.mxu0
  %v2055 = vadd.f32 %v1895, %v2054
  %2056 = vdwg.mxu0
  %v2057 = vld [vmem:[%s12] sm:$0xff]
  %v2058 = vld [vmem:[%s12 + $0x8] sm:$0xff]
  %2060 = vset.pattern.permute.xlu0 0
  %2061 = vperm.xlu0 %2060, %v2057
  %v2062 = vpop.permute.xlu0 %2061
  %2065 = vset.pattern.permute.xlu0 0
  %2066 = vperm.xlu0 %2065, %v2058
  %v2067 = vpop.permute.xlu0 %2066
  %v2069 = vadd.f32 %v1970, %v2062
  %v2070 = vadd.f32 %v1972, %v2062
  %v2071 = vadd.f32 %v2047, %v2062
  %v2072 = vadd.f32 %v2049, %v2062
  %v2073 = vadd.f32 %v1976, %v2067
  %v2074 = vadd.f32 %v1978, %v2067
  %v2075 = vadd.f32 %v2053, %v2067
  %v2076 = vadd.f32 %v2055, %v2067
  %v2077 = vmax.f32 %v2069, 0.0
  %v2078 = vmax.f32 %v2070, 0.0
  %v2079 = vmax.f32 %v2071, 0.0
  %v2080 = vmax.f32 %v2072, 0.0
  %v2081 = vmax.f32 %v2073, 0.0
  %v2082 = vmax.f32 %v2074, 0.0
  %v2083 = vmax.f32 %v2075, 0.0
  %v2084 = vmax.f32 %v2076, 0.0
  %2093 = vrot.lane.b32.xlu0 %v2077, 64
  %v2094 = vpop.permute.xlu0 %2093
  %2095 = vrot.lane.b32.xlu0 %v2078, 64
  %v2096 = vpop.permute.xlu0 %2095
  %2097 = vrot.lane.b32.xlu0 %v2079, 64
  %v2098 = vpop.permute.xlu0 %2097
  %2099 = vrot.lane.b32.xlu0 %v2080, 64
  %v2100 = vpop.permute.xlu0 %2099
  %2101 = vrot.lane.b32.xlu0 %v2081, 64
  %v2102 = vpop.permute.xlu0 %2101
  %2103 = vrot.lane.b32.xlu0 %v2082, 64
  %v2104 = vpop.permute.xlu0 %2103
  %2105 = vrot.lane.b32.xlu0 %v2083, 64
  %v2106 = vpop.permute.xlu0 %2105
  %2107 = vrot.lane.b32.xlu0 %v2084, 64
  %v2108 = vpop.permute.xlu0 %2107
  %v2109 = vsel %vm179, %v2094, %v2096
  %v2110 = vsel %vm179, %v2096, %v2098
  %v2111 = vsel %vm179, %v2098, %v2100
  %v2112 = vsel %vm179, %v2102, %v2104
  %v2113 = vsel %vm179, %v2104, %v2106
  %v2114 = vsel %vm179, %v2106, %v2108
  %v2125 = vsel %vm179, 0.0, %v2094
  %v2126 = vsel %vm179, 0.0, %v2102
  %v2127 = vsel %vm179, %v2100, 0.0
  %v2128 = vsel %vm179, %v2108, 0.0
  %v2129 = vld [vmem:[%s13] sm:$0xff]
  %s2130 = scalar_lea.vmem %s13, 8
  %v2131 = vld [vmem:[%s2130] sm:$0xff]
  %v2133 = vsel %vm466, %v2131, 0
  %2135 = vmatprep.subr.mxu0 0.0
  %2136 = vmatpush1.msra.mxu0 0.0
  %2137 = vmatprep.subr.mxu0 0.0
  %2138 = vmatpush1.msra.mxu0 0.0
  %2139 = vmatprep.subr.mxu0 0.0
  %2140 = vmatpush1.msra.mxu0 0.0
  %2141 = vmatprep.subr.mxu0 0.0
  %2142 = vmatpush1.msra.mxu0 0.0
  %2143 = vmatprep.subr.mxu0 0.0
  %2144 = vmatpush1.msra.mxu0 0.0
  %2145 = vmatprep.subr.mxu0 0.0
  %2146 = vmatpush1.msra.mxu0 0.0
  %2147 = vmatprep.subr.mxu0 0.0
  %2148 = vmatpush1.msra.mxu0 0.0
  %2149 = vmatprep.subr.mxu0 0.0
  %2150 = vmatpush1.msra.mxu0 0.0
  %2151 = vmatprep.subr.mxu0 0.0
  %2152 = vmatpush1.msra.mxu0 0.0
  %2153 = vmatprep.subr.mxu0 0.0
  %2154 = vmatpush1.msra.mxu0 0.0
  %2155 = vmatprep.subr.mxu0 0.0
  %2156 = vmatpush1.msra.mxu0 0.0
  %2157 = vmatprep.subr.mxu0 0.0
  %2158 = vmatpush1.msra.mxu0 0.0
  %2159 = vmatprep.subr.mxu0 0.0
  %2160 = vmatpush1.msra.mxu0 0.0
  %2161 = vmatprep.subr.mxu0 0.0
  %2162 = vmatpush1.msra.mxu0 0.0
  %2163 = vmatprep.subr.mxu0 %v2112
  %2164 = vmatpush1.msra.mxu0 %v2126
  %2165 = vmatprep.subr.mxu0 %v2109
  %2166 = vmatpush1.msra.mxu0 %v2125
  %2167 = vmatprep.subr.mxu0 0.0
  %2168 = vmatpush2.msra.mxu0 0.0
  %2169 = vmatprep.subr.mxu0 0.0
  %2170 = vmatpush2.msra.mxu0 0.0
  %2171 = vmatprep.subr.mxu0 0.0
  %2172 = vmatpush2.msra.mxu0 0.0
  %2173 = vmatprep.subr.mxu0 0.0
  %2174 = vmatpush2.msra.mxu0 0.0
  %2175 = vmatprep.subr.mxu0 0.0
  %2176 = vmatpush2.msra.mxu0 0.0
  %2177 = vmatprep.subr.mxu0 0.0
  %2178 = vmatpush2.msra.mxu0 0.0
  %2179 = vmatprep.subr.mxu0 0.0
  %2180 = vmatpush2.msra.mxu0 0.0
  %2181 = vmatprep.subr.mxu0 0.0
  %2182 = vmatpush2.msra.mxu0 0.0
  %2183 = vmatprep.subr.mxu0 0.0
  %2184 = vmatpush2.msra.mxu0 0.0
  %2185 = vmatprep.subr.mxu0 0.0
  %2186 = vmatpush2.msra.mxu0 0.0
  %2187 = vmatprep.subr.mxu0 0.0
  %2188 = vmatpush2.msra.mxu0 0.0
  %2189 = vmatprep.subr.mxu0 0.0
  %2190 = vmatpush2.msra.mxu0 0.0
  %2191 = vmatprep.subr.mxu0 0.0
  %2192 = vmatpush2.msra.mxu0 0.0
  %2193 = vmatprep.subr.mxu0 0.0
  %2194 = vmatpush2.msra.mxu0 0.0
  %2195 = vmatprep.subr.mxu0 0.0
  %2196 = vmatpush2.msra.mxu0 0.0
  %2197 = vmatprep.subr.mxu0 0.0
  %2198 = vmatpush2.msra.mxu0 0.0
  %2199 = vmatprep.mubr.f32.mxu0 0.0
  %2200 = vmatmul.mubr.f32.gmra.mxu0 %v2133
  %v2201 = vpop.f32.mrf.mxu0
  %v2202 = vadd.f32 0.0, %v2201
  %v2203 = vpop.f32.mrf.mxu0
  %v2204 = vadd.f32 0.0, %v2203
  %2205 = vdwg.mxu0
  %2206 = vmatprep.subr.mxu0 0.0
  %2207 = vmatpush1.msra.mxu0 0.0
  %2208 = vmatprep.subr.mxu0 0.0
  %2209 = vmatpush1.msra.mxu0 0.0
  %2210 = vmatprep.subr.mxu0 0.0
  %2211 = vmatpush1.msra.mxu0 0.0
  %2212 = vmatprep.subr.mxu0 0.0
  %2213 = vmatpush1.msra.mxu0 0.0
  %2214 = vmatprep.subr.mxu0 0.0
  %2215 = vmatpush1.msra.mxu0 0.0
  %2216 = vmatprep.subr.mxu0 0.0
  %2217 = vmatpush1.msra.mxu0 0.0
  %2218 = vmatprep.subr.mxu0 0.0
  %2219 = vmatpush1.msra.mxu0 0.0
  %2220 = vmatprep.subr.mxu0 0.0
  %2221 = vmatpush1.msra.mxu0 0.0
  %2222 = vmatprep.subr.mxu0 0.0
  %2223 = vmatpush1.msra.mxu0 0.0
  %2224 = vmatprep.subr.mxu0 0.0
  %2225 = vmatpush1.msra.mxu0 0.0
  %2226 = vmatprep.subr.mxu0 0.0
  %2227 = vmatpush1.msra.mxu0 0.0
  %2228 = vmatprep.subr.mxu0 0.0
  %2229 = vmatpush1.msra.mxu0 0.0
  %2230 = vmatprep.subr.mxu0 0.0
  %2231 = vmatpush1.msra.mxu0 0.0
  %2232 = vmatprep.subr.mxu0 0.0
  %2233 = vmatpush1.msra.mxu0 0.0
  %2234 = vmatprep.subr.mxu0 %v2114
  %2235 = vmatpush1.msra.mxu0 %v2113
  %2236 = vmatprep.subr.mxu0 %v2111
  %2237 = vmatpush1.msra.mxu0 %v2110
  %2238 = vmatprep.subr.mxu0 0.0
  %2239 = vmatpush2.msra.mxu0 0.0
  %2240 = vmatprep.subr.mxu0 0.0
  %2241 = vmatpush2.msra.mxu0 0.0
  %2242 = vmatprep.subr.mxu0 0.0
  %2243 = vmatpush2.msra.mxu0 0.0
  %2244 = vmatprep.subr.mxu0 0.0
  %2245 = vmatpush2.msra.mxu0 0.0
  %2246 = vmatprep.subr.mxu0 0.0
  %2247 = vmatpush2.msra.mxu0 0.0
  %2248 = vmatprep.subr.mxu0 0.0
  %2249 = vmatpush2.msra.mxu0 0.0
  %2250 = vmatprep.subr.mxu0 0.0
  %2251 = vmatpush2.msra.mxu0 0.0
  %2252 = vmatprep.subr.mxu0 0.0
  %2253 = vmatpush2.msra.mxu0 0.0
  %2254 = vmatprep.subr.mxu0 0.0
  %2255 = vmatpush2.msra.mxu0 0.0
  %2256 = vmatprep.subr.mxu0 0.0
  %2257 = vmatpush2.msra.mxu0 0.0
  %2258 = vmatprep.subr.mxu0 0.0
  %2259 = vmatpush2.msra.mxu0 0.0
  %2260 = vmatprep.subr.mxu0 0.0
  %2261 = vmatpush2.msra.mxu0 0.0
  %2262 = vmatprep.subr.mxu0 0.0
  %2263 = vmatpush2.msra.mxu0 0.0
  %2264 = vmatprep.subr.mxu0 0.0
  %2265 = vmatpush2.msra.mxu0 0.0
  %2266 = vmatprep.subr.mxu0 0.0
  %2267 = vmatpush2.msra.mxu0 0.0
  %2268 = vmatprep.subr.mxu0 0.0
  %2269 = vmatpush2.msra.mxu0 0.0
  %2270 = vmatprep.mubr.f32.mxu0 0.0
  %2271 = vmatmul.mubr.f32.gmra.mxu0 %v2133
  %v2272 = vpop.f32.mrf.mxu0
  %v2273 = vadd.f32 0.0, %v2272
  %v2274 = vpop.f32.mrf.mxu0
  %v2275 = vadd.f32 0.0, %v2274
  %2276 = vdwg.mxu0
  %v2278 = vsel %vm466, %v2129, 0
  %2280 = vmatprep.subr.mxu0 0.0
  %2281 = vmatpush1.msra.mxu0 0.0
  %2282 = vmatprep.subr.mxu0 0.0
  %2283 = vmatpush1.msra.mxu0 0.0
  %2284 = vmatprep.subr.mxu0 0.0
  %2285 = vmatpush1.msra.mxu0 0.0
  %2286 = vmatprep.subr.mxu0 0.0
  %2287 = vmatpush1.msra.mxu0 0.0
  %2288 = vmatprep.subr.mxu0 0.0
  %2289 = vmatpush1.msra.mxu0 0.0
  %2290 = vmatprep.subr.mxu0 0.0
  %2291 = vmatpush1.msra.mxu0 0.0
  %2292 = vmatprep.subr.mxu0 0.0
  %2293 = vmatpush1.msra.mxu0 0.0
  %2294 = vmatprep.subr.mxu0 0.0
  %2295 = vmatpush1.msra.mxu0 0.0
  %2296 = vmatprep.subr.mxu0 0.0
  %2297 = vmatpush1.msra.mxu0 0.0
  %2298 = vmatprep.subr.mxu0 0.0
  %2299 = vmatpush1.msra.mxu0 0.0
  %2300 = vmatprep.subr.mxu0 0.0
  %2301 = vmatpush1.msra.mxu0 0.0
  %2302 = vmatprep.subr.mxu0 0.0
  %2303 = vmatpush1.msra.mxu0 0.0
  %2304 = vmatprep.subr.mxu0 0.0
  %2305 = vmatpush1.msra.mxu0 0.0
  %2306 = vmatprep.subr.mxu0 0.0
  %2307 = vmatpush1.msra.mxu0 0.0
  %2308 = vmatprep.subr.mxu0 %v2126
  %2309 = vmatpush1.msra.mxu0 0.0
  %2310 = vmatprep.subr.mxu0 %v2125
  %2311 = vmatpush1.msra.mxu0 0.0
  %2312 = vmatprep.subr.mxu0 0.0
  %2313 = vmatpush2.msra.mxu0 0.0
  %2314 = vmatprep.subr.mxu0 0.0
  %2315 = vmatpush2.msra.mxu0 0.0
  %2316 = vmatprep.subr.mxu0 0.0
  %2317 = vmatpush2.msra.mxu0 0.0
  %2318 = vmatprep.subr.mxu0 0.0
  %2319 = vmatpush2.msra.mxu0 0.0
  %2320 = vmatprep.subr.mxu0 0.0
  %2321 = vmatpush2.msra.mxu0 0.0
  %2322 = vmatprep.subr.mxu0 0.0
  %2323 = vmatpush2.msra.mxu0 0.0
  %2324 = vmatprep.subr.mxu0 0.0
  %2325 = vmatpush2.msra.mxu0 0.0
  %2326 = vmatprep.subr.mxu0 0.0
  %2327 = vmatpush2.msra.mxu0 0.0
  %2328 = vmatprep.subr.mxu0 0.0
  %2329 = vmatpush2.msra.mxu0 0.0
  %2330 = vmatprep.subr.mxu0 0.0
  %2331 = vmatpush2.msra.mxu0 0.0
  %2332 = vmatprep.subr.mxu0 0.0
  %2333 = vmatpush2.msra.mxu0 0.0
  %2334 = vmatprep.subr.mxu0 0.0
  %2335 = vmatpush2.msra.mxu0 0.0
  %2336 = vmatprep.subr.mxu0 0.0
  %2337 = vmatpush2.msra.mxu0 0.0
  %2338 = vmatprep.subr.mxu0 0.0
  %2339 = vmatpush2.msra.mxu0 0.0
  %2340 = vmatprep.subr.mxu0 0.0
  %2341 = vmatpush2.msra.mxu0 0.0
  %2342 = vmatprep.subr.mxu0 0.0
  %2343 = vmatpush2.msra.mxu0 0.0
  %2344 = vmatprep.mubr.f32.mxu0 0.0
  %2345 = vmatmul.mubr.f32.gmra.mxu0 %v2278
  %v2346 = vpop.f32.mrf.mxu0
  %v2347 = vadd.f32 %v2202, %v2346
  %v2348 = vpop.f32.mrf.mxu0
  %v2349 = vadd.f32 %v2204, %v2348
  %2350 = vdwg.mxu0
  %2351 = vmatprep.subr.mxu0 0.0
  %2352 = vmatpush1.msra.mxu0 0.0
  %2353 = vmatprep.subr.mxu0 0.0
  %2354 = vmatpush1.msra.mxu0 0.0
  %2355 = vmatprep.subr.mxu0 0.0
  %2356 = vmatpush1.msra.mxu0 0.0
  %2357 = vmatprep.subr.mxu0 0.0
  %2358 = vmatpush1.msra.mxu0 0.0
  %2359 = vmatprep.subr.mxu0 0.0
  %2360 = vmatpush1.msra.mxu0 0.0
  %2361 = vmatprep.subr.mxu0 0.0
  %2362 = vmatpush1.msra.mxu0 0.0
  %2363 = vmatprep.subr.mxu0 0.0
  %2364 = vmatpush1.msra.mxu0 0.0
  %2365 = vmatprep.subr.mxu0 0.0
  %2366 = vmatpush1.msra.mxu0 0.0
  %2367 = vmatprep.subr.mxu0 0.0
  %2368 = vmatpush1.msra.mxu0 0.0
  %2369 = vmatprep.subr.mxu0 0.0
  %2370 = vmatpush1.msra.mxu0 0.0
  %2371 = vmatprep.subr.mxu0 0.0
  %2372 = vmatpush1.msra.mxu0 0.0
  %2373 = vmatprep.subr.mxu0 0.0
  %2374 = vmatpush1.msra.mxu0 0.0
  %2375 = vmatprep.subr.mxu0 0.0
  %2376 = vmatpush1.msra.mxu0 0.0
  %2377 = vmatprep.subr.mxu0 0.0
  %2378 = vmatpush1.msra.mxu0 0.0
  %2379 = vmatprep.subr.mxu0 %v2113
  %2380 = vmatpush1.msra.mxu0 %v2112
  %2381 = vmatprep.subr.mxu0 %v2110
  %2382 = vmatpush1.msra.mxu0 %v2109
  %2383 = vmatprep.subr.mxu0 0.0
  %2384 = vmatpush2.msra.mxu0 0.0
  %2385 = vmatprep.subr.mxu0 0.0
  %2386 = vmatpush2.msra.mxu0 0.0
  %2387 = vmatprep.subr.mxu0 0.0
  %2388 = vmatpush2.msra.mxu0 0.0
  %2389 = vmatprep.subr.mxu0 0.0
  %2390 = vmatpush2.msra.mxu0 0.0
  %2391 = vmatprep.subr.mxu0 0.0
  %2392 = vmatpush2.msra.mxu0 0.0
  %2393 = vmatprep.subr.mxu0 0.0
  %2394 = vmatpush2.msra.mxu0 0.0
  %2395 = vmatprep.subr.mxu0 0.0
  %2396 = vmatpush2.msra.mxu0 0.0
  %2397 = vmatprep.subr.mxu0 0.0
  %2398 = vmatpush2.msra.mxu0 0.0
  %2399 = vmatprep.subr.mxu0 0.0
  %2400 = vmatpush2.msra.mxu0 0.0
  %2401 = vmatprep.subr.mxu0 0.0
  %2402 = vmatpush2.msra.mxu0 0.0
  %2403 = vmatprep.subr.mxu0 0.0
  %2404 = vmatpush2.msra.mxu0 0.0
  %2405 = vmatprep.subr.mxu0 0.0
  %2406 = vmatpush2.msra.mxu0 0.0
  %2407 = vmatprep.subr.mxu0 0.0
  %2408 = vmatpush2.msra.mxu0 0.0
  %2409 = vmatprep.subr.mxu0 0.0
  %2410 = vmatpush2.msra.mxu0 0.0
  %2411 = vmatprep.subr.mxu0 0.0
  %2412 = vmatpush2.msra.mxu0 0.0
  %2413 = vmatprep.subr.mxu0 0.0
  %2414 = vmatpush2.msra.mxu0 0.0
  %2415 = vmatprep.mubr.f32.mxu0 0.0
  %2416 = vmatmul.mubr.f32.gmra.mxu0 %v2278
  %v2417 = vpop.f32.mrf.mxu0
  %v2418 = vadd.f32 %v2273, %v2417
  %v2419 = vpop.f32.mrf.mxu0
  %v2420 = vadd.f32 %v2275, %v2419
  %2421 = vdwg.mxu0
  %s2422 = scalar_lea.vmem %s13, 16
  %v2423 = vld [vmem:[%s2422] sm:$0xff]
  %v2425 = vsel %vm466, %v2423, 0
  %2427 = vmatprep.subr.mxu0 0.0
  %2428 = vmatpush1.msra.mxu0 0.0
  %2429 = vmatprep.subr.mxu0 0.0
  %2430 = vmatpush1.msra.mxu0 0.0
  %2431 = vmatprep.subr.mxu0 0.0
  %2432 = vmatpush1.msra.mxu0 0.0
  %2433 = vmatprep.subr.mxu0 0.0
  %2434 = vmatpush1.msra.mxu0 0.0
  %2435 = vmatprep.subr.mxu0 0.0
  %2436 = vmatpush1.msra.mxu0 0.0
  %2437 = vmatprep.subr.mxu0 0.0
  %2438 = vmatpush1.msra.mxu0 0.0
  %2439 = vmatprep.subr.mxu0 0.0
  %2440 = vmatpush1.msra.mxu0 0.0
  %2441 = vmatprep.subr.mxu0 0.0
  %2442 = vmatpush1.msra.mxu0 0.0
  %2443 = vmatprep.subr.mxu0 0.0
  %2444 = vmatpush1.msra.mxu0 0.0
  %2445 = vmatprep.subr.mxu0 0.0
  %2446 = vmatpush1.msra.mxu0 0.0
  %2447 = vmatprep.subr.mxu0 0.0
  %2448 = vmatpush1.msra.mxu0 0.0
  %2449 = vmatprep.subr.mxu0 0.0
  %2450 = vmatpush1.msra.mxu0 0.0
  %2451 = vmatprep.subr.mxu0 0.0
  %2452 = vmatpush1.msra.mxu0 0.0
  %2453 = vmatprep.subr.mxu0 0.0
  %2454 = vmatpush1.msra.mxu0 0.0
  %2455 = vmatprep.subr.mxu0 %v2113
  %2456 = vmatpush1.msra.mxu0 %v2112
  %2457 = vmatprep.subr.mxu0 %v2110
  %2458 = vmatpush1.msra.mxu0 %v2109
  %2459 = vmatprep.subr.mxu0 0.0
  %2460 = vmatpush2.msra.mxu0 0.0
  %2461 = vmatprep.subr.mxu0 0.0
  %2462 = vmatpush2.msra.mxu0 0.0
  %2463 = vmatprep.subr.mxu0 0.0
  %2464 = vmatpush2.msra.mxu0 0.0
  %2465 = vmatprep.subr.mxu0 0.0
  %2466 = vmatpush2.msra.mxu0 0.0
  %2467 = vmatprep.subr.mxu0 0.0
  %2468 = vmatpush2.msra.mxu0 0.0
  %2469 = vmatprep.subr.mxu0 0.0
  %2470 = vmatpush2.msra.mxu0 0.0
  %2471 = vmatprep.subr.mxu0 0.0
  %2472 = vmatpush2.msra.mxu0 0.0
  %2473 = vmatprep.subr.mxu0 0.0
  %2474 = vmatpush2.msra.mxu0 0.0
  %2475 = vmatprep.subr.mxu0 0.0
  %2476 = vmatpush2.msra.mxu0 0.0
  %2477 = vmatprep.subr.mxu0 0.0
  %2478 = vmatpush2.msra.mxu0 0.0
  %2479 = vmatprep.subr.mxu0 0.0
  %2480 = vmatpush2.msra.mxu0 0.0
  %2481 = vmatprep.subr.mxu0 0.0
  %2482 = vmatpush2.msra.mxu0 0.0
  %2483 = vmatprep.subr.mxu0 0.0
  %2484 = vmatpush2.msra.mxu0 0.0
  %2485 = vmatprep.subr.mxu0 0.0
  %2486 = vmatpush2.msra.mxu0 0.0
  %2487 = vmatprep.subr.mxu0 0.0
  %2488 = vmatpush2.msra.mxu0 0.0
  %2489 = vmatprep.subr.mxu0 0.0
  %2490 = vmatpush2.msra.mxu0 0.0
  %2491 = vmatprep.mubr.f32.mxu0 0.0
  %2492 = vmatmul.mubr.f32.gmra.mxu0 %v2425
  %v2493 = vpop.f32.mrf.mxu0
  %v2494 = vadd.f32 0.0, %v2493
  %v2495 = vpop.f32.mrf.mxu0
  %v2496 = vadd.f32 0.0, %v2495
  %2497 = vdwg.mxu0
  %2498 = vmatprep.subr.mxu0 0.0
  %2499 = vmatpush1.msra.mxu0 0.0
  %2500 = vmatprep.subr.mxu0 0.0
  %2501 = vmatpush1.msra.mxu0 0.0
  %2502 = vmatprep.subr.mxu0 0.0
  %2503 = vmatpush1.msra.mxu0 0.0
  %2504 = vmatprep.subr.mxu0 0.0
  %2505 = vmatpush1.msra.mxu0 0.0
  %2506 = vmatprep.subr.mxu0 0.0
  %2507 = vmatpush1.msra.mxu0 0.0
  %2508 = vmatprep.subr.mxu0 0.0
  %2509 = vmatpush1.msra.mxu0 0.0
  %2510 = vmatprep.subr.mxu0 0.0
  %2511 = vmatpush1.msra.mxu0 0.0
  %2512 = vmatprep.subr.mxu0 0.0
  %2513 = vmatpush1.msra.mxu0 0.0
  %2514 = vmatprep.subr.mxu0 0.0
  %2515 = vmatpush1.msra.mxu0 0.0
  %2516 = vmatprep.subr.mxu0 0.0
  %2517 = vmatpush1.msra.mxu0 0.0
  %2518 = vmatprep.subr.mxu0 0.0
  %2519 = vmatpush1.msra.mxu0 0.0
  %2520 = vmatprep.subr.mxu0 0.0
  %2521 = vmatpush1.msra.mxu0 0.0
  %2522 = vmatprep.subr.mxu0 0.0
  %2523 = vmatpush1.msra.mxu0 0.0
  %2524 = vmatprep.subr.mxu0 0.0
  %2525 = vmatpush1.msra.mxu0 0.0
  %2526 = vmatprep.subr.mxu0 %v2128
  %2527 = vmatpush1.msra.mxu0 %v2114
  %2528 = vmatprep.subr.mxu0 %v2127
  %2529 = vmatpush1.msra.mxu0 %v2111
  %2530 = vmatprep.subr.mxu0 0.0
  %2531 = vmatpush2.msra.mxu0 0.0
  %2532 = vmatprep.subr.mxu0 0.0
  %2533 = vmatpush2.msra.mxu0 0.0
  %2534 = vmatprep.subr.mxu0 0.0
  %2535 = vmatpush2.msra.mxu0 0.0
  %2536 = vmatprep.subr.mxu0 0.0
  %2537 = vmatpush2.msra.mxu0 0.0
  %2538 = vmatprep.subr.mxu0 0.0
  %2539 = vmatpush2.msra.mxu0 0.0
  %2540 = vmatprep.subr.mxu0 0.0
  %2541 = vmatpush2.msra.mxu0 0.0
  %2542 = vmatprep.subr.mxu0 0.0
  %2543 = vmatpush2.msra.mxu0 0.0
  %2544 = vmatprep.subr.mxu0 0.0
  %2545 = vmatpush2.msra.mxu0 0.0
  %2546 = vmatprep.subr.mxu0 0.0
  %2547 = vmatpush2.msra.mxu0 0.0
  %2548 = vmatprep.subr.mxu0 0.0
  %2549 = vmatpush2.msra.mxu0 0.0
  %2550 = vmatprep.subr.mxu0 0.0
  %2551 = vmatpush2.msra.mxu0 0.0
  %2552 = vmatprep.subr.mxu0 0.0
  %2553 = vmatpush2.msra.mxu0 0.0
  %2554 = vmatprep.subr.mxu0 0.0
  %2555 = vmatpush2.msra.mxu0 0.0
  %2556 = vmatprep.subr.mxu0 0.0
  %2557 = vmatpush2.msra.mxu0 0.0
  %2558 = vmatprep.subr.mxu0 0.0
  %2559 = vmatpush2.msra.mxu0 0.0
  %2560 = vmatprep.subr.mxu0 0.0
  %2561 = vmatpush2.msra.mxu0 0.0
  %2562 = vmatprep.mubr.f32.mxu0 0.0
  %2563 = vmatmul.mubr.f32.gmra.mxu0 %v2425
  %v2564 = vpop.f32.mrf.mxu0
  %v2565 = vadd.f32 0.0, %v2564
  %v2566 = vpop.f32.mrf.mxu0
  %v2567 = vadd.f32 0.0, %v2566
  %2568 = vdwg.mxu0
  %v2569 = vadd.f32 %v2347, %v2494
  %v2570 = vadd.f32 %v2349, %v2496
  %v2571 = vadd.f32 %v2418, %v2565
  %v2572 = vadd.f32 %v2420, %v2567
  %s2573 = scalar_lea.vmem %s13, 24
  %v2574 = vld [vmem:[%s2573] sm:$0xff]
  %v2576 = vsel %vm466, %v2574, 0
  %2578 = vmatprep.subr.mxu0 0.0
  %2579 = vmatpush1.msra.mxu0 0.0
  %2580 = vmatprep.subr.mxu0 0.0
  %2581 = vmatpush1.msra.mxu0 0.0
  %2582 = vmatprep.subr.mxu0 0.0
  %2583 = vmatpush1.msra.mxu0 0.0
  %2584 = vmatprep.subr.mxu0 0.0
  %2585 = vmatpush1.msra.mxu0 0.0
  %2586 = vmatprep.subr.mxu0 0.0
  %2587 = vmatpush1.msra.mxu0 0.0
  %2588 = vmatprep.subr.mxu0 0.0
  %2589 = vmatpush1.msra.mxu0 0.0
  %2590 = vmatprep.subr.mxu0 0.0
  %2591 = vmatpush1.msra.mxu0 0.0
  %2592 = vmatprep.subr.mxu0 0.0
  %2593 = vmatpush1.msra.mxu0 0.0
  %2594 = vmatprep.subr.mxu0 0.0
  %2595 = vmatpush1.msra.mxu0 0.0
  %2596 = vmatprep.subr.mxu0 0.0
  %2597 = vmatpush1.msra.mxu0 0.0
  %2598 = vmatprep.subr.mxu0 0.0
  %2599 = vmatpush1.msra.mxu0 0.0
  %2600 = vmatprep.subr.mxu0 0.0
  %2601 = vmatpush1.msra.mxu0 0.0
  %2602 = vmatprep.subr.mxu0 0.0
  %2603 = vmatpush1.msra.mxu0 0.0
  %2604 = vmatprep.subr.mxu0 0.0
  %2605 = vmatpush1.msra.mxu0 0.0
  %2606 = vmatprep.subr.mxu0 %v2114
  %2607 = vmatpush1.msra.mxu0 %v2113
  %2608 = vmatprep.subr.mxu0 %v2111
  %2609 = vmatpush1.msra.mxu0 %v2110
  %2610 = vmatprep.subr.mxu0 0.0
  %2611 = vmatpush2.msra.mxu0 0.0
  %2612 = vmatprep.subr.mxu0 0.0
  %2613 = vmatpush2.msra.mxu0 0.0
  %2614 = vmatprep.subr.mxu0 0.0
  %2615 = vmatpush2.msra.mxu0 0.0
  %2616 = vmatprep.subr.mxu0 0.0
  %2617 = vmatpush2.msra.mxu0 0.0
  %2618 = vmatprep.subr.mxu0 0.0
  %2619 = vmatpush2.msra.mxu0 0.0
  %2620 = vmatprep.subr.mxu0 0.0
  %2621 = vmatpush2.msra.mxu0 0.0
  %2622 = vmatprep.subr.mxu0 0.0
  %2623 = vmatpush2.msra.mxu0 0.0
  %2624 = vmatprep.subr.mxu0 0.0
  %2625 = vmatpush2.msra.mxu0 0.0
  %2626 = vmatprep.subr.mxu0 0.0
  %2627 = vmatpush2.msra.mxu0 0.0
  %2628 = vmatprep.subr.mxu0 0.0
  %2629 = vmatpush2.msra.mxu0 0.0
  %2630 = vmatprep.subr.mxu0 0.0
  %2631 = vmatpush2.msra.mxu0 0.0
  %2632 = vmatprep.subr.mxu0 0.0
  %2633 = vmatpush2.msra.mxu0 0.0
  %2634 = vmatprep.subr.mxu0 0.0
  %2635 = vmatpush2.msra.mxu0 0.0
  %2636 = vmatprep.subr.mxu0 0.0
  %2637 = vmatpush2.msra.mxu0 0.0
  %2638 = vmatprep.subr.mxu0 0.0
  %2639 = vmatpush2.msra.mxu0 0.0
  %2640 = vmatprep.subr.mxu0 0.0
  %2641 = vmatpush2.msra.mxu0 0.0
  %2642 = vmatprep.mubr.f32.mxu0 0.0
  %2643 = vmatmul.mubr.f32.gmra.mxu0 %v2576
  %v2644 = vpop.f32.mrf.mxu0
  %v2645 = vadd.f32 0.0, %v2644
  %v2646 = vpop.f32.mrf.mxu0
  %v2647 = vadd.f32 0.0, %v2646
  %2648 = vdwg.mxu0
  %2649 = vmatprep.subr.mxu0 0.0
  %2650 = vmatpush1.msra.mxu0 0.0
  %2651 = vmatprep.subr.mxu0 0.0
  %2652 = vmatpush1.msra.mxu0 0.0
  %2653 = vmatprep.subr.mxu0 0.0
  %2654 = vmatpush1.msra.mxu0 0.0
  %2655 = vmatprep.subr.mxu0 0.0
  %2656 = vmatpush1.msra.mxu0 0.0
  %2657 = vmatprep.subr.mxu0 0.0
  %2658 = vmatpush1.msra.mxu0 0.0
  %2659 = vmatprep.subr.mxu0 0.0
  %2660 = vmatpush1.msra.mxu0 0.0
  %2661 = vmatprep.subr.mxu0 0.0
  %2662 = vmatpush1.msra.mxu0 0.0
  %2663 = vmatprep.subr.mxu0 0.0
  %2664 = vmatpush1.msra.mxu0 0.0
  %2665 = vmatprep.subr.mxu0 0.0
  %2666 = vmatpush1.msra.mxu0 0.0
  %2667 = vmatprep.subr.mxu0 0.0
  %2668 = vmatpush1.msra.mxu0 0.0
  %2669 = vmatprep.subr.mxu0 0.0
  %2670 = vmatpush1.msra.mxu0 0.0
  %2671 = vmatprep.subr.mxu0 0.0
  %2672 = vmatpush1.msra.mxu0 0.0
  %2673 = vmatprep.subr.mxu0 0.0
  %2674 = vmatpush1.msra.mxu0 0.0
  %2675 = vmatprep.subr.mxu0 0.0
  %2676 = vmatpush1.msra.mxu0 0.0
  %2677 = vmatprep.subr.mxu0 0.0
  %2678 = vmatpush1.msra.mxu0 %v2128
  %2679 = vmatprep.subr.mxu0 0.0
  %2680 = vmatpush1.msra.mxu0 %v2127
  %2681 = vmatprep.subr.mxu0 0.0
  %2682 = vmatpush2.msra.mxu0 0.0
  %2683 = vmatprep.subr.mxu0 0.0
  %2684 = vmatpush2.msra.mxu0 0.0
  %2685 = vmatprep.subr.mxu0 0.0
  %2686 = vmatpush2.msra.mxu0 0.0
  %2687 = vmatprep.subr.mxu0 0.0
  %2688 = vmatpush2.msra.mxu0 0.0
  %2689 = vmatprep.subr.mxu0 0.0
  %2690 = vmatpush2.msra.mxu0 0.0
  %2691 = vmatprep.subr.mxu0 0.0
  %2692 = vmatpush2.msra.mxu0 0.0
  %2693 = vmatprep.subr.mxu0 0.0
  %2694 = vmatpush2.msra.mxu0 0.0
  %2695 = vmatprep.subr.mxu0 0.0
  %2696 = vmatpush2.msra.mxu0 0.0
  %2697 = vmatprep.subr.mxu0 0.0
  %2698 = vmatpush2.msra.mxu0 0.0
  %2699 = vmatprep.subr.mxu0 0.0
  %2700 = vmatpush2.msra.mxu0 0.0
  %2701 = vmatprep.subr.mxu0 0.0
  %2702 = vmatpush2.msra.mxu0 0.0
  %2703 = vmatprep.subr.mxu0 0.0
  %2704 = vmatpush2.msra.mxu0 0.0
  %2705 = vmatprep.subr.mxu0 0.0
  %2706 = vmatpush2.msra.mxu0 0.0
  %2707 = vmatprep.subr.mxu0 0.0
  %2708 = vmatpush2.msra.mxu0 0.0
  %2709 = vmatprep.subr.mxu0 0.0
  %2710 = vmatpush2.msra.mxu0 0.0
  %2711 = vmatprep.subr.mxu0 0.0
  %2712 = vmatpush2.msra.mxu0 0.0
  %2713 = vmatprep.mubr.f32.mxu0 0.0
  %2714 = vmatmul.mubr.f32.gmra.mxu0 %v2576
  %v2715 = vpop.f32.mrf.mxu0
  %v2716 = vadd.f32 0.0, %v2715
  %v2717 = vpop.f32.mrf.mxu0
  %v2718 = vadd.f32 0.0, %v2717
  %2719 = vdwg.mxu0
  %v2720 = vadd.f32 %v2569, %v2645
  %v2721 = vadd.f32 %v2570, %v2647
  %v2722 = vadd.f32 %v2571, %v2716
  %v2723 = vadd.f32 %v2572, %v2718
  %v2724 = vld [vmem:[%s14] sm:$0xff]
  %2726 = vset.pattern.permute.xlu0 0
  %2727 = vperm.xlu0 %2726, %v2724
  %v2728 = vpop.permute.xlu0 %2727
  %v2730 = vadd.f32 %v2720, %v2728
  %v2731 = vadd.f32 %v2721, %v2728
  %v2732 = vadd.f32 %v2722, %v2728
  %v2733 = vadd.f32 %v2723, %v2728
  %v2734 = vmax.f32 %v2730, 0.0
  %v2735 = vmax.f32 %v2731, 0.0
  %v2736 = vmax.f32 %v2732, 0.0
  %v2737 = vmax.f32 %v2733, 0.0
  %v2738 = vld [vmem:[%s15] sm:$0xff]
  %v2739 = vld [vmem:[%s15 + $0x8] sm:$0xff]
  %v2740 = vld [vmem:[%s16] sm:$0xff]
  %v2741 = vld [vmem:[%s16 + $0x8] sm:$0xff]
  %v2743 = vsel %vm926, %v2740, 0
  %v2746 = vsel %vm926, %v2741, 0
  %2748 = vmatprep.subr.mxu0 0.0
  %2749 = vmatpush1.msra.mxu0 0.0
  %2750 = vmatprep.subr.mxu0 0.0
  %2751 = vmatpush1.msra.mxu0 0.0
  %2752 = vmatprep.subr.mxu0 0.0
  %2753 = vmatpush1.msra.mxu0 0.0
  %2754 = vmatprep.subr.mxu0 0.0
  %2755 = vmatpush1.msra.mxu0 0.0
  %2756 = vmatprep.subr.mxu0 0.0
  %2757 = vmatpush1.msra.mxu0 0.0
  %2758 = vmatprep.subr.mxu0 0.0
  %2759 = vmatpush1.msra.mxu0 0.0
  %2760 = vmatprep.subr.mxu0 0.0
  %2761 = vmatpush1.msra.mxu0 0.0
  %2762 = vmatprep.subr.mxu0 0.0
  %2763 = vmatpush1.msra.mxu0 0.0
  %2764 = vmatprep.subr.mxu0 0.0
  %2765 = vmatpush1.msra.mxu0 0.0
  %2766 = vmatprep.subr.mxu0 0.0
  %2767 = vmatpush1.msra.mxu0 0.0
  %2768 = vmatprep.subr.mxu0 0.0
  %2769 = vmatpush1.msra.mxu0 0.0
  %2770 = vmatprep.subr.mxu0 0.0
  %2771 = vmatpush1.msra.mxu0 0.0
  %2772 = vmatprep.subr.mxu0 0.0
  %2773 = vmatpush1.msra.mxu0 0.0
  %2774 = vmatprep.subr.mxu0 0.0
  %2775 = vmatpush1.msra.mxu0 0.0
  %2776 = vmatprep.subr.mxu0 0.0
  %2777 = vmatpush1.msra.mxu0 0.0
  %2778 = vmatprep.subr.mxu0 %v2735
  %2779 = vmatpush1.msra.mxu0 %v2734
  %2780 = vmatprep.subr.mxu0 0.0
  %2781 = vmatpush2.msra.mxu0 0.0
  %2782 = vmatprep.subr.mxu0 0.0
  %2783 = vmatpush2.msra.mxu0 0.0
  %2784 = vmatprep.subr.mxu0 0.0
  %2785 = vmatpush2.msra.mxu0 0.0
  %2786 = vmatprep.subr.mxu0 0.0
  %2787 = vmatpush2.msra.mxu0 0.0
  %2788 = vmatprep.subr.mxu0 0.0
  %2789 = vmatpush2.msra.mxu0 0.0
  %2790 = vmatprep.subr.mxu0 0.0
  %2791 = vmatpush2.msra.mxu0 0.0
  %2792 = vmatprep.subr.mxu0 0.0
  %2793 = vmatpush2.msra.mxu0 0.0
  %2794 = vmatprep.subr.mxu0 0.0
  %2795 = vmatpush2.msra.mxu0 0.0
  %2796 = vmatprep.subr.mxu0 0.0
  %2797 = vmatpush2.msra.mxu0 0.0
  %2798 = vmatprep.subr.mxu0 0.0
  %2799 = vmatpush2.msra.mxu0 0.0
  %2800 = vmatprep.subr.mxu0 0.0
  %2801 = vmatpush2.msra.mxu0 0.0
  %2802 = vmatprep.subr.mxu0 0.0
  %2803 = vmatpush2.msra.mxu0 0.0
  %2804 = vmatprep.subr.mxu0 0.0
  %2805 = vmatpush2.msra.mxu0 0.0
  %2806 = vmatprep.subr.mxu0 0.0
  %2807 = vmatpush2.msra.mxu0 0.0
  %2808 = vmatprep.subr.mxu0 0.0
  %2809 = vmatpush2.msra.mxu0 0.0
  %2810 = vmatprep.subr.mxu0 0.0
  %2811 = vmatpush2.msra.mxu0 0.0
  %2812 = vmatprep.mubr.f32.mxu0 0.0
  %2813 = vmatmul.mubr.f32.gmra.mxu0 %v2743
  %v2814 = vpop.f32.mrf.mxu0
  %v2815 = vadd.f32 0.0, %v2814
  %v2816 = vpop.f32.mrf.mxu0
  %v2817 = vadd.f32 0.0, %v2816
  %2818 = vmatprep.mubr.f32.mxu0 0.0
  %2819 = vmatmul.mubr.f32.gmra.mxu0 %v2746
  %v2820 = vpop.f32.mrf.mxu0
  %v2821 = vadd.f32 0.0, %v2820
  %v2822 = vpop.f32.mrf.mxu0
  %v2823 = vadd.f32 0.0, %v2822
  %2824 = vdwg.mxu0
  %2825 = vmatprep.subr.mxu0 0.0
  %2826 = vmatpush1.msra.mxu0 0.0
  %2827 = vmatprep.subr.mxu0 0.0
  %2828 = vmatpush1.msra.mxu0 0.0
  %2829 = vmatprep.subr.mxu0 0.0
  %2830 = vmatpush1.msra.mxu0 0.0
  %2831 = vmatprep.subr.mxu0 0.0
  %2832 = vmatpush1.msra.mxu0 0.0
  %2833 = vmatprep.subr.mxu0 0.0
  %2834 = vmatpush1.msra.mxu0 0.0
  %2835 = vmatprep.subr.mxu0 0.0
  %2836 = vmatpush1.msra.mxu0 0.0
  %2837 = vmatprep.subr.mxu0 0.0
  %2838 = vmatpush1.msra.mxu0 0.0
  %2839 = vmatprep.subr.mxu0 0.0
  %2840 = vmatpush1.msra.mxu0 0.0
  %2841 = vmatprep.subr.mxu0 0.0
  %2842 = vmatpush1.msra.mxu0 0.0
  %2843 = vmatprep.subr.mxu0 0.0
  %2844 = vmatpush1.msra.mxu0 0.0
  %2845 = vmatprep.subr.mxu0 0.0
  %2846 = vmatpush1.msra.mxu0 0.0
  %2847 = vmatprep.subr.mxu0 0.0
  %2848 = vmatpush1.msra.mxu0 0.0
  %2849 = vmatprep.subr.mxu0 0.0
  %2850 = vmatpush1.msra.mxu0 0.0
  %2851 = vmatprep.subr.mxu0 0.0
  %2852 = vmatpush1.msra.mxu0 0.0
  %2853 = vmatprep.subr.mxu0 0.0
  %2854 = vmatpush1.msra.mxu0 0.0
  %2855 = vmatprep.subr.mxu0 %v2737
  %2856 = vmatpush1.msra.mxu0 %v2736
  %2857 = vmatprep.subr.mxu0 0.0
  %2858 = vmatpush2.msra.mxu0 0.0
  %2859 = vmatprep.subr.mxu0 0.0
  %2860 = vmatpush2.msra.mxu0 0.0
  %2861 = vmatprep.subr.mxu0 0.0
  %2862 = vmatpush2.msra.mxu0 0.0
  %2863 = vmatprep.subr.mxu0 0.0
  %2864 = vmatpush2.msra.mxu0 0.0
  %2865 = vmatprep.subr.mxu0 0.0
  %2866 = vmatpush2.msra.mxu0 0.0
  %2867 = vmatprep.subr.mxu0 0.0
  %2868 = vmatpush2.msra.mxu0 0.0
  %2869 = vmatprep.subr.mxu0 0.0
  %2870 = vmatpush2.msra.mxu0 0.0
  %2871 = vmatprep.subr.mxu0 0.0
  %2872 = vmatpush2.msra.mxu0 0.0
  %2873 = vmatprep.subr.mxu0 0.0
  %2874 = vmatpush2.msra.mxu0 0.0
  %2875 = vmatprep.subr.mxu0 0.0
  %2876 = vmatpush2.msra.mxu0 0.0
  %2877 = vmatprep.subr.mxu0 0.0
  %2878 = vmatpush2.msra.mxu0 0.0
  %2879 = vmatprep.subr.mxu0 0.0
  %2880 = vmatpush2.msra.mxu0 0.0
  %2881 = vmatprep.subr.mxu0 0.0
  %2882 = vmatpush2.msra.mxu0 0.0
  %2883 = vmatprep.subr.mxu0 0.0
  %2884 = vmatpush2.msra.mxu0 0.0
  %2885 = vmatprep.subr.mxu0 0.0
  %2886 = vmatpush2.msra.mxu0 0.0
  %2887 = vmatprep.subr.mxu0 0.0
  %2888 = vmatpush2.msra.mxu0 0.0
  %2889 = vmatprep.mubr.f32.mxu0 0.0
  %2890 = vmatmul.mubr.f32.gmra.mxu0 %v2743
  %v2891 = vpop.f32.mrf.mxu0
  %v2892 = vadd.f32 0.0, %v2891
  %v2893 = vpop.f32.mrf.mxu0
  %v2894 = vadd.f32 0.0, %v2893
  %2895 = vmatprep.mubr.f32.mxu0 0.0
  %2896 = vmatmul.mubr.f32.gmra.mxu0 %v2746
  %v2897 = vpop.f32.mrf.mxu0
  %v2898 = vadd.f32 0.0, %v2897
  %v2899 = vpop.f32.mrf.mxu0
  %v2900 = vadd.f32 0.0, %v2899
  %2901 = vdwg.mxu0
  %v2903 = vsel %vm926, %v2738, 0
  %v2906 = vsel %vm926, %v2739, 0
  %2908 = vmatprep.subr.mxu0 0.0
  %2909 = vmatpush1.msra.mxu0 0.0
  %2910 = vmatprep.subr.mxu0 0.0
  %2911 = vmatpush1.msra.mxu0 0.0
  %2912 = vmatprep.subr.mxu0 0.0
  %2913 = vmatpush1.msra.mxu0 0.0
  %2914 = vmatprep.subr.mxu0 0.0
  %2915 = vmatpush1.msra.mxu0 0.0
  %2916 = vmatprep.subr.mxu0 0.0
  %2917 = vmatpush1.msra.mxu0 0.0
  %2918 = vmatprep.subr.mxu0 0.0
  %2919 = vmatpush1.msra.mxu0 0.0
  %2920 = vmatprep.subr.mxu0 0.0
  %2921 = vmatpush1.msra.mxu0 0.0
  %2922 = vmatprep.subr.mxu0 0.0
  %2923 = vmatpush1.msra.mxu0 0.0
  %2924 = vmatprep.subr.mxu0 0.0
  %2925 = vmatpush1.msra.mxu0 0.0
  %2926 = vmatprep.subr.mxu0 0.0
  %2927 = vmatpush1.msra.mxu0 0.0
  %2928 = vmatprep.subr.mxu0 0.0
  %2929 = vmatpush1.msra.mxu0 0.0
  %2930 = vmatprep.subr.mxu0 0.0
  %2931 = vmatpush1.msra.mxu0 0.0
  %2932 = vmatprep.subr.mxu0 0.0
  %2933 = vmatpush1.msra.mxu0 0.0
  %2934 = vmatprep.subr.mxu0 0.0
  %2935 = vmatpush1.msra.mxu0 0.0
  %2936 = vmatprep.subr.mxu0 0.0
  %2937 = vmatpush1.msra.mxu0 0.0
  %2938 = vmatprep.subr.mxu0 %v1730
  %2939 = vmatpush1.msra.mxu0 %v1729
  %2940 = vmatprep.subr.mxu0 0.0
  %2941 = vmatpush2.msra.mxu0 0.0
  %2942 = vmatprep.subr.mxu0 0.0
  %2943 = vmatpush2.msra.mxu0 0.0
  %2944 = vmatprep.subr.mxu0 0.0
  %2945 = vmatpush2.msra.mxu0 0.0
  %2946 = vmatprep.subr.mxu0 0.0
  %2947 = vmatpush2.msra.mxu0 0.0
  %2948 = vmatprep.subr.mxu0 0.0
  %2949 = vmatpush2.msra.mxu0 0.0
  %2950 = vmatprep.subr.mxu0 0.0
  %2951 = vmatpush2.msra.mxu0 0.0
  %2952 = vmatprep.subr.mxu0 0.0
  %2953 = vmatpush2.msra.mxu0 0.0
  %2954 = vmatprep.subr.mxu0 0.0
  %2955 = vmatpush2.msra.mxu0 0.0
  %2956 = vmatprep.subr.mxu0 0.0
  %2957 = vmatpush2.msra.mxu0 0.0
  %2958 = vmatprep.subr.mxu0 0.0
  %2959 = vmatpush2.msra.mxu0 0.0
  %2960 = vmatprep.subr.mxu0 0.0
  %2961 = vmatpush2.msra.mxu0 0.0
  %2962 = vmatprep.subr.mxu0 0.0
  %2963 = vmatpush2.msra.mxu0 0.0
  %2964 = vmatprep.subr.mxu0 0.0
  %2965 = vmatpush2.msra.mxu0 0.0
  %2966 = vmatprep.subr.mxu0 0.0
  %2967 = vmatpush2.msra.mxu0 0.0
  %2968 = vmatprep.subr.mxu0 0.0
  %2969 = vmatpush2.msra.mxu0 0.0
  %2970 = vmatprep.subr.mxu0 0.0
  %2971 = vmatpush2.msra.mxu0 0.0
  %2972 = vmatprep.mubr.f32.mxu0 0.0
  %2973 = vmatmul.mubr.f32.gmra.mxu0 %v2903
  %v2974 = vpop.f32.mrf.mxu0
  %v2975 = vadd.f32 %v2815, %v2974
  %v2976 = vpop.f32.mrf.mxu0
  %v2977 = vadd.f32 %v2817, %v2976
  %2978 = vmatprep.mubr.f32.mxu0 0.0
  %2979 = vmatmul.mubr.f32.gmra.mxu0 %v2906
  %v2980 = vpop.f32.mrf.mxu0
  %v2981 = vadd.f32 %v2821, %v2980
  %v2982 = vpop.f32.mrf.mxu0
  %v2983 = vadd.f32 %v2823, %v2982
  %2984 = vdwg.mxu0
  %2985 = vmatprep.subr.mxu0 0.0
  %2986 = vmatpush1.msra.mxu0 0.0
  %2987 = vmatprep.subr.mxu0 0.0
  %2988 = vmatpush1.msra.mxu0 0.0
  %2989 = vmatprep.subr.mxu0 0.0
  %2990 = vmatpush1.msra.mxu0 0.0
  %2991 = vmatprep.subr.mxu0 0.0
  %2992 = vmatpush1.msra.mxu0 0.0
  %2993 = vmatprep.subr.mxu0 0.0
  %2994 = vmatpush1.msra.mxu0 0.0
  %2995 = vmatprep.subr.mxu0 0.0
  %2996 = vmatpush1.msra.mxu0 0.0
  %2997 = vmatprep.subr.mxu0 0.0
  %2998 = vmatpush1.msra.mxu0 0.0
  %2999 = vmatprep.subr.mxu0 0.0
  %3000 = vmatpush1.msra.mxu0 0.0
  %3001 = vmatprep.subr.mxu0 0.0
  %3002 = vmatpush1.msra.mxu0 0.0
  %3003 = vmatprep.subr.mxu0 0.0
  %3004 = vmatpush1.msra.mxu0 0.0
  %3005 = vmatprep.subr.mxu0 0.0
  %3006 = vmatpush1.msra.mxu0 0.0
  %3007 = vmatprep.subr.mxu0 0.0
  %3008 = vmatpush1.msra.mxu0 0.0
  %3009 = vmatprep.subr.mxu0 0.0
  %3010 = vmatpush1.msra.mxu0 0.0
  %3011 = vmatprep.subr.mxu0 0.0
  %3012 = vmatpush1.msra.mxu0 0.0
  %3013 = vmatprep.subr.mxu0 0.0
  %3014 = vmatpush1.msra.mxu0 0.0
  %3015 = vmatprep.subr.mxu0 %v1732
  %3016 = vmatpush1.msra.mxu0 %v1731
  %3017 = vmatprep.subr.mxu0 0.0
  %3018 = vmatpush2.msra.mxu0 0.0
  %3019 = vmatprep.subr.mxu0 0.0
  %3020 = vmatpush2.msra.mxu0 0.0
  %3021 = vmatprep.subr.mxu0 0.0
  %3022 = vmatpush2.msra.mxu0 0.0
  %3023 = vmatprep.subr.mxu0 0.0
  %3024 = vmatpush2.msra.mxu0 0.0
  %3025 = vmatprep.subr.mxu0 0.0
  %3026 = vmatpush2.msra.mxu0 0.0
  %3027 = vmatprep.subr.mxu0 0.0
  %3028 = vmatpush2.msra.mxu0 0.0
  %3029 = vmatprep.subr.mxu0 0.0
  %3030 = vmatpush2.msra.mxu0 0.0
  %3031 = vmatprep.subr.mxu0 0.0
  %3032 = vmatpush2.msra.mxu0 0.0
  %3033 = vmatprep.subr.mxu0 0.0
  %3034 = vmatpush2.msra.mxu0 0.0
  %3035 = vmatprep.subr.mxu0 0.0
  %3036 = vmatpush2.msra.mxu0 0.0
  %3037 = vmatprep.subr.mxu0 0.0
  %3038 = vmatpush2.msra.mxu0 0.0
  %3039 = vmatprep.subr.mxu0 0.0
  %3040 = vmatpush2.msra.mxu0 0.0
  %3041 = vmatprep.subr.mxu0 0.0
  %3042 = vmatpush2.msra.mxu0 0.0
  %3043 = vmatprep.subr.mxu0 0.0
  %3044 = vmatpush2.msra.mxu0 0.0
  %3045 = vmatprep.subr.mxu0 0.0
  %3046 = vmatpush2.msra.mxu0 0.0
  %3047 = vmatprep.subr.mxu0 0.0
  %3048 = vmatpush2.msra.mxu0 0.0
  %3049 = vmatprep.mubr.f32.mxu0 0.0
  %3050 = vmatmul.mubr.f32.gmra.mxu0 %v2903
  %v3051 = vpop.f32.mrf.mxu0
  %v3052 = vadd.f32 %v2892, %v3051
  %v3053 = vpop.f32.mrf.mxu0
  %v3054 = vadd.f32 %v2894, %v3053
  %3055 = vmatprep.mubr.f32.mxu0 0.0
  %3056 = vmatmul.mubr.f32.gmra.mxu0 %v2906
  %v3057 = vpop.f32.mrf.mxu0
  %v3058 = vadd.f32 %v2898, %v3057
  %v3059 = vpop.f32.mrf.mxu0
  %v3060 = vadd.f32 %v2900, %v3059
  %3061 = vdwg.mxu0
  %v3062 = vld [vmem:[%s17] sm:$0xff]
  %v3063 = vld [vmem:[%s17 + $0x8] sm:$0xff]
  %3065 = vset.pattern.permute.xlu0 0
  %3066 = vperm.xlu0 %3065, %v3062
  %v3067 = vpop.permute.xlu0 %3066
  %3070 = vset.pattern.permute.xlu0 0
  %3071 = vperm.xlu0 %3070, %v3063
  %v3072 = vpop.permute.xlu0 %3071
  %v3074 = vadd.f32 %v2975, %v3067
  %v3075 = vadd.f32 %v2977, %v3067
  %v3076 = vadd.f32 %v3052, %v3067
  %v3077 = vadd.f32 %v3054, %v3067
  %v3078 = vadd.f32 %v2981, %v3072
  %v3079 = vadd.f32 %v2983, %v3072
  %v3080 = vadd.f32 %v3058, %v3072
  %v3081 = vadd.f32 %v3060, %v3072
  %v3082 = vmax.f32 %v3074, 0.0
  %v3083 = vmax.f32 %v3075, 0.0
  %v3084 = vmax.f32 %v3076, 0.0
  %v3085 = vmax.f32 %v3077, 0.0
  %v3086 = vmax.f32 %v3078, 0.0
  %v3087 = vmax.f32 %v3079, 0.0
  %v3088 = vmax.f32 %v3080, 0.0
  %v3089 = vmax.f32 %v3081, 0.0
  %v3090 = vld [vmem:[%s18] sm:$0xff]
  %s3091 = scalar_lea.vmem %s18, 8
  %v3092 = vld [vmem:[%s3091] sm:$0xff]
  %v3094 = vsel %vm466, %v3092, 0
  %3096 = vmatprep.subr.mxu0 0.0
  %3097 = vmatpush1.msra.mxu0 0.0
  %3098 = vmatprep.subr.mxu0 0.0
  %3099 = vmatpush1.msra.mxu0 0.0
  %3100 = vmatprep.subr.mxu0 0.0
  %3101 = vmatpush1.msra.mxu0 0.0
  %3102 = vmatprep.subr.mxu0 0.0
  %3103 = vmatpush1.msra.mxu0 0.0
  %3104 = vmatprep.subr.mxu0 0.0
  %3105 = vmatpush1.msra.mxu0 0.0
  %3106 = vmatprep.subr.mxu0 0.0
  %3107 = vmatpush1.msra.mxu0 0.0
  %3108 = vmatprep.subr.mxu0 0.0
  %3109 = vmatpush1.msra.mxu0 0.0
  %3110 = vmatprep.subr.mxu0 0.0
  %3111 = vmatpush1.msra.mxu0 0.0
  %3112 = vmatprep.subr.mxu0 0.0
  %3113 = vmatpush1.msra.mxu0 0.0
  %3114 = vmatprep.subr.mxu0 0.0
  %3115 = vmatpush1.msra.mxu0 0.0
  %3116 = vmatprep.subr.mxu0 0.0
  %3117 = vmatpush1.msra.mxu0 0.0
  %3118 = vmatprep.subr.mxu0 0.0
  %3119 = vmatpush1.msra.mxu0 0.0
  %3120 = vmatprep.subr.mxu0 0.0
  %3121 = vmatpush1.msra.mxu0 0.0
  %3122 = vmatprep.subr.mxu0 0.0
  %3123 = vmatpush1.msra.mxu0 0.0
  %3124 = vmatprep.subr.mxu0 %v3086
  %3125 = vmatpush1.msra.mxu0 0.0
  %3126 = vmatprep.subr.mxu0 %v3082
  %3127 = vmatpush1.msra.mxu0 0.0
  %3128 = vmatprep.subr.mxu0 0.0
  %3129 = vmatpush2.msra.mxu0 0.0
  %3130 = vmatprep.subr.mxu0 0.0
  %3131 = vmatpush2.msra.mxu0 0.0
  %3132 = vmatprep.subr.mxu0 0.0
  %3133 = vmatpush2.msra.mxu0 0.0
  %3134 = vmatprep.subr.mxu0 0.0
  %3135 = vmatpush2.msra.mxu0 0.0
  %3136 = vmatprep.subr.mxu0 0.0
  %3137 = vmatpush2.msra.mxu0 0.0
  %3138 = vmatprep.subr.mxu0 0.0
  %3139 = vmatpush2.msra.mxu0 0.0
  %3140 = vmatprep.subr.mxu0 0.0
  %3141 = vmatpush2.msra.mxu0 0.0
  %3142 = vmatprep.subr.mxu0 0.0
  %3143 = vmatpush2.msra.mxu0 0.0
  %3144 = vmatprep.subr.mxu0 0.0
  %3145 = vmatpush2.msra.mxu0 0.0
  %3146 = vmatprep.subr.mxu0 0.0
  %3147 = vmatpush2.msra.mxu0 0.0
  %3148 = vmatprep.subr.mxu0 0.0
  %3149 = vmatpush2.msra.mxu0 0.0
  %3150 = vmatprep.subr.mxu0 0.0
  %3151 = vmatpush2.msra.mxu0 0.0
  %3152 = vmatprep.subr.mxu0 0.0
  %3153 = vmatpush2.msra.mxu0 0.0
  %3154 = vmatprep.subr.mxu0 0.0
  %3155 = vmatpush2.msra.mxu0 0.0
  %3156 = vmatprep.subr.mxu0 0.0
  %3157 = vmatpush2.msra.mxu0 0.0
  %3158 = vmatprep.subr.mxu0 0.0
  %3159 = vmatpush2.msra.mxu0 0.0
  %3160 = vmatprep.mubr.f32.mxu0 0.0
  %3161 = vmatmul.mubr.f32.gmra.mxu0 %v3094
  %v3162 = vpop.f32.mrf.mxu0
  %v3163 = vadd.f32 0.0, %v3162
  %v3164 = vpop.f32.mrf.mxu0
  %v3165 = vadd.f32 0.0, %v3164
  %3166 = vdwg.mxu0
  %3167 = vmatprep.subr.mxu0 0.0
  %3168 = vmatpush1.msra.mxu0 0.0
  %3169 = vmatprep.subr.mxu0 0.0
  %3170 = vmatpush1.msra.mxu0 0.0
  %3171 = vmatprep.subr.mxu0 0.0
  %3172 = vmatpush1.msra.mxu0 0.0
  %3173 = vmatprep.subr.mxu0 0.0
  %3174 = vmatpush1.msra.mxu0 0.0
  %3175 = vmatprep.subr.mxu0 0.0
  %3176 = vmatpush1.msra.mxu0 0.0
  %3177 = vmatprep.subr.mxu0 0.0
  %3178 = vmatpush1.msra.mxu0 0.0
  %3179 = vmatprep.subr.mxu0 0.0
  %3180 = vmatpush1.msra.mxu0 0.0
  %3181 = vmatprep.subr.mxu0 0.0
  %3182 = vmatpush1.msra.mxu0 0.0
  %3183 = vmatprep.subr.mxu0 0.0
  %3184 = vmatpush1.msra.mxu0 0.0
  %3185 = vmatprep.subr.mxu0 0.0
  %3186 = vmatpush1.msra.mxu0 0.0
  %3187 = vmatprep.subr.mxu0 0.0
  %3188 = vmatpush1.msra.mxu0 0.0
  %3189 = vmatprep.subr.mxu0 0.0
  %3190 = vmatpush1.msra.mxu0 0.0
  %3191 = vmatprep.subr.mxu0 0.0
  %3192 = vmatpush1.msra.mxu0 0.0
  %3193 = vmatprep.subr.mxu0 0.0
  %3194 = vmatpush1.msra.mxu0 0.0
  %3195 = vmatprep.subr.mxu0 %v3088
  %3196 = vmatpush1.msra.mxu0 %v3087
  %3197 = vmatprep.subr.mxu0 %v3084
  %3198 = vmatpush1.msra.mxu0 %v3083
  %3199 = vmatprep.subr.mxu0 0.0
  %3200 = vmatpush2.msra.mxu0 0.0
  %3201 = vmatprep.subr.mxu0 0.0
  %3202 = vmatpush2.msra.mxu0 0.0
  %3203 = vmatprep.subr.mxu0 0.0
  %3204 = vmatpush2.msra.mxu0 0.0
  %3205 = vmatprep.subr.mxu0 0.0
  %3206 = vmatpush2.msra.mxu0 0.0
  %3207 = vmatprep.subr.mxu0 0.0
  %3208 = vmatpush2.msra.mxu0 0.0
  %3209 = vmatprep.subr.mxu0 0.0
  %3210 = vmatpush2.msra.mxu0 0.0
  %3211 = vmatprep.subr.mxu0 0.0
  %3212 = vmatpush2.msra.mxu0 0.0
  %3213 = vmatprep.subr.mxu0 0.0
  %3214 = vmatpush2.msra.mxu0 0.0
  %3215 = vmatprep.subr.mxu0 0.0
  %3216 = vmatpush2.msra.mxu0 0.0
  %3217 = vmatprep.subr.mxu0 0.0
  %3218 = vmatpush2.msra.mxu0 0.0
  %3219 = vmatprep.subr.mxu0 0.0
  %3220 = vmatpush2.msra.mxu0 0.0
  %3221 = vmatprep.subr.mxu0 0.0
  %3222 = vmatpush2.msra.mxu0 0.0
  %3223 = vmatprep.subr.mxu0 0.0
  %3224 = vmatpush2.msra.mxu0 0.0
  %3225 = vmatprep.subr.mxu0 0.0
  %3226 = vmatpush2.msra.mxu0 0.0
  %3227 = vmatprep.subr.mxu0 0.0
  %3228 = vmatpush2.msra.mxu0 0.0
  %3229 = vmatprep.subr.mxu0 0.0
  %3230 = vmatpush2.msra.mxu0 0.0
  %3231 = vmatprep.mubr.f32.mxu0 0.0
  %3232 = vmatmul.mubr.f32.gmra.mxu0 %v3094
  %v3233 = vpop.f32.mrf.mxu0
  %v3234 = vadd.f32 0.0, %v3233
  %v3235 = vpop.f32.mrf.mxu0
  %v3236 = vadd.f32 0.0, %v3235
  %3237 = vdwg.mxu0
  %v3239 = vsel %vm466, %v3090, 0
  %3241 = vmatprep.subr.mxu0 0.0
  %3242 = vmatpush1.msra.mxu0 0.0
  %3243 = vmatprep.subr.mxu0 0.0
  %3244 = vmatpush1.msra.mxu0 0.0
  %3245 = vmatprep.subr.mxu0 0.0
  %3246 = vmatpush1.msra.mxu0 0.0
  %3247 = vmatprep.subr.mxu0 0.0
  %3248 = vmatpush1.msra.mxu0 0.0
  %3249 = vmatprep.subr.mxu0 0.0
  %3250 = vmatpush1.msra.mxu0 0.0
  %3251 = vmatprep.subr.mxu0 0.0
  %3252 = vmatpush1.msra.mxu0 0.0
  %3253 = vmatprep.subr.mxu0 0.0
  %3254 = vmatpush1.msra.mxu0 0.0
  %3255 = vmatprep.subr.mxu0 0.0
  %3256 = vmatpush1.msra.mxu0 0.0
  %3257 = vmatprep.subr.mxu0 0.0
  %3258 = vmatpush1.msra.mxu0 0.0
  %3259 = vmatprep.subr.mxu0 0.0
  %3260 = vmatpush1.msra.mxu0 0.0
  %3261 = vmatprep.subr.mxu0 0.0
  %3262 = vmatpush1.msra.mxu0 0.0
  %3263 = vmatprep.subr.mxu0 0.0
  %3264 = vmatpush1.msra.mxu0 0.0
  %3265 = vmatprep.subr.mxu0 0.0
  %3266 = vmatpush1.msra.mxu0 0.0
  %3267 = vmatprep.subr.mxu0 0.0
  %3268 = vmatpush1.msra.mxu0 0.0
  %3269 = vmatprep.subr.mxu0 0.0
  %3270 = vmatpush1.msra.mxu0 0.0
  %3271 = vmatprep.subr.mxu0 0.0
  %3272 = vmatpush1.msra.mxu0 0.0
  %3273 = vmatprep.subr.mxu0 0.0
  %3274 = vmatpush2.msra.mxu0 0.0
  %3275 = vmatprep.subr.mxu0 0.0
  %3276 = vmatpush2.msra.mxu0 0.0
  %3277 = vmatprep.subr.mxu0 0.0
  %3278 = vmatpush2.msra.mxu0 0.0
  %3279 = vmatprep.subr.mxu0 0.0
  %3280 = vmatpush2.msra.mxu0 0.0
  %3281 = vmatprep.subr.mxu0 0.0
  %3282 = vmatpush2.msra.mxu0 0.0
  %3283 = vmatprep.subr.mxu0 0.0
  %3284 = vmatpush2.msra.mxu0 0.0
  %3285 = vmatprep.subr.mxu0 0.0
  %3286 = vmatpush2.msra.mxu0 0.0
  %3287 = vmatprep.subr.mxu0 0.0
  %3288 = vmatpush2.msra.mxu0 0.0
  %3289 = vmatprep.subr.mxu0 0.0
  %3290 = vmatpush2.msra.mxu0 0.0
  %3291 = vmatprep.subr.mxu0 0.0
  %3292 = vmatpush2.msra.mxu0 0.0
  %3293 = vmatprep.subr.mxu0 0.0
  %3294 = vmatpush2.msra.mxu0 0.0
  %3295 = vmatprep.subr.mxu0 0.0
  %3296 = vmatpush2.msra.mxu0 0.0
  %3297 = vmatprep.subr.mxu0 0.0
  %3298 = vmatpush2.msra.mxu0 0.0
  %3299 = vmatprep.subr.mxu0 0.0
  %3300 = vmatpush2.msra.mxu0 0.0
  %3301 = vmatprep.subr.mxu0 0.0
  %3302 = vmatpush2.msra.mxu0 0.0
  %3303 = vmatprep.subr.mxu0 0.0
  %3304 = vmatpush2.msra.mxu0 0.0
  %3305 = vmatprep.mubr.f32.mxu0 0.0
  %3306 = vmatmul.mubr.f32.gmra.mxu0 %v3239
  %v3307 = vpop.f32.mrf.mxu0
  %v3308 = vadd.f32 %v3163, %v3307
  %v3309 = vpop.f32.mrf.mxu0
  %v3310 = vadd.f32 %v3165, %v3309
  %3311 = vdwg.mxu0
  %3312 = vmatprep.subr.mxu0 0.0
  %3313 = vmatpush1.msra.mxu0 0.0
  %3314 = vmatprep.subr.mxu0 0.0
  %3315 = vmatpush1.msra.mxu0 0.0
  %3316 = vmatprep.subr.mxu0 0.0
  %3317 = vmatpush1.msra.mxu0 0.0
  %3318 = vmatprep.subr.mxu0 0.0
  %3319 = vmatpush1.msra.mxu0 0.0
  %3320 = vmatprep.subr.mxu0 0.0
  %3321 = vmatpush1.msra.mxu0 0.0
  %3322 = vmatprep.subr.mxu0 0.0
  %3323 = vmatpush1.msra.mxu0 0.0
  %3324 = vmatprep.subr.mxu0 0.0
  %3325 = vmatpush1.msra.mxu0 0.0
  %3326 = vmatprep.subr.mxu0 0.0
  %3327 = vmatpush1.msra.mxu0 0.0
  %3328 = vmatprep.subr.mxu0 0.0
  %3329 = vmatpush1.msra.mxu0 0.0
  %3330 = vmatprep.subr.mxu0 0.0
  %3331 = vmatpush1.msra.mxu0 0.0
  %3332 = vmatprep.subr.mxu0 0.0
  %3333 = vmatpush1.msra.mxu0 0.0
  %3334 = vmatprep.subr.mxu0 0.0
  %3335 = vmatpush1.msra.mxu0 0.0
  %3336 = vmatprep.subr.mxu0 0.0
  %3337 = vmatpush1.msra.mxu0 0.0
  %3338 = vmatprep.subr.mxu0 0.0
  %3339 = vmatpush1.msra.mxu0 0.0
  %3340 = vmatprep.subr.mxu0 %v3087
  %3341 = vmatpush1.msra.mxu0 %v3086
  %3342 = vmatprep.subr.mxu0 %v3083
  %3343 = vmatpush1.msra.mxu0 %v3082
  %3344 = vmatprep.subr.mxu0 0.0
  %3345 = vmatpush2.msra.mxu0 0.0
  %3346 = vmatprep.subr.mxu0 0.0
  %3347 = vmatpush2.msra.mxu0 0.0
  %3348 = vmatprep.subr.mxu0 0.0
  %3349 = vmatpush2.msra.mxu0 0.0
  %3350 = vmatprep.subr.mxu0 0.0
  %3351 = vmatpush2.msra.mxu0 0.0
  %3352 = vmatprep.subr.mxu0 0.0
  %3353 = vmatpush2.msra.mxu0 0.0
  %3354 = vmatprep.subr.mxu0 0.0
  %3355 = vmatpush2.msra.mxu0 0.0
  %3356 = vmatprep.subr.mxu0 0.0
  %3357 = vmatpush2.msra.mxu0 0.0
  %3358 = vmatprep.subr.mxu0 0.0
  %3359 = vmatpush2.msra.mxu0 0.0
  %3360 = vmatprep.subr.mxu0 0.0
  %3361 = vmatpush2.msra.mxu0 0.0
  %3362 = vmatprep.subr.mxu0 0.0
  %3363 = vmatpush2.msra.mxu0 0.0
  %3364 = vmatprep.subr.mxu0 0.0
  %3365 = vmatpush2.msra.mxu0 0.0
  %3366 = vmatprep.subr.mxu0 0.0
  %3367 = vmatpush2.msra.mxu0 0.0
  %3368 = vmatprep.subr.mxu0 0.0
  %3369 = vmatpush2.msra.mxu0 0.0
  %3370 = vmatprep.subr.mxu0 0.0
  %3371 = vmatpush2.msra.mxu0 0.0
  %3372 = vmatprep.subr.mxu0 0.0
  %3373 = vmatpush2.msra.mxu0 0.0
  %3374 = vmatprep.subr.mxu0 0.0
  %3375 = vmatpush2.msra.mxu0 0.0
  %3376 = vmatprep.mubr.f32.mxu0 0.0
  %3377 = vmatmul.mubr.f32.gmra.mxu0 %v3239
  %v3378 = vpop.f32.mrf.mxu0
  %v3379 = vadd.f32 %v3234, %v3378
  %v3380 = vpop.f32.mrf.mxu0
  %v3381 = vadd.f32 %v3236, %v3380
  %3382 = vdwg.mxu0
  %s3383 = scalar_lea.vmem %s18, 16
  %v3384 = vld [vmem:[%s3383] sm:$0xff]
  %v3386 = vsel %vm466, %v3384, 0
  %3388 = vmatprep.subr.mxu0 0.0
  %3389 = vmatpush1.msra.mxu0 0.0
  %3390 = vmatprep.subr.mxu0 0.0
  %3391 = vmatpush1.msra.mxu0 0.0
  %3392 = vmatprep.subr.mxu0 0.0
  %3393 = vmatpush1.msra.mxu0 0.0
  %3394 = vmatprep.subr.mxu0 0.0
  %3395 = vmatpush1.msra.mxu0 0.0
  %3396 = vmatprep.subr.mxu0 0.0
  %3397 = vmatpush1.msra.mxu0 0.0
  %3398 = vmatprep.subr.mxu0 0.0
  %3399 = vmatpush1.msra.mxu0 0.0
  %3400 = vmatprep.subr.mxu0 0.0
  %3401 = vmatpush1.msra.mxu0 0.0
  %3402 = vmatprep.subr.mxu0 0.0
  %3403 = vmatpush1.msra.mxu0 0.0
  %3404 = vmatprep.subr.mxu0 0.0
  %3405 = vmatpush1.msra.mxu0 0.0
  %3406 = vmatprep.subr.mxu0 0.0
  %3407 = vmatpush1.msra.mxu0 0.0
  %3408 = vmatprep.subr.mxu0 0.0
  %3409 = vmatpush1.msra.mxu0 0.0
  %3410 = vmatprep.subr.mxu0 0.0
  %3411 = vmatpush1.msra.mxu0 0.0
  %3412 = vmatprep.subr.mxu0 0.0
  %3413 = vmatpush1.msra.mxu0 0.0
  %3414 = vmatprep.subr.mxu0 0.0
  %3415 = vmatpush1.msra.mxu0 0.0
  %3416 = vmatprep.subr.mxu0 %v3087
  %3417 = vmatpush1.msra.mxu0 %v3086
  %3418 = vmatprep.subr.mxu0 %v3083
  %3419 = vmatpush1.msra.mxu0 %v3082
  %3420 = vmatprep.subr.mxu0 0.0
  %3421 = vmatpush2.msra.mxu0 0.0
  %3422 = vmatprep.subr.mxu0 0.0
  %3423 = vmatpush2.msra.mxu0 0.0
  %3424 = vmatprep.subr.mxu0 0.0
  %3425 = vmatpush2.msra.mxu0 0.0
  %3426 = vmatprep.subr.mxu0 0.0
  %3427 = vmatpush2.msra.mxu0 0.0
  %3428 = vmatprep.subr.mxu0 0.0
  %3429 = vmatpush2.msra.mxu0 0.0
  %3430 = vmatprep.subr.mxu0 0.0
  %3431 = vmatpush2.msra.mxu0 0.0
  %3432 = vmatprep.subr.mxu0 0.0
  %3433 = vmatpush2.msra.mxu0 0.0
  %3434 = vmatprep.subr.mxu0 0.0
  %3435 = vmatpush2.msra.mxu0 0.0
  %3436 = vmatprep.subr.mxu0 0.0
  %3437 = vmatpush2.msra.mxu0 0.0
  %3438 = vmatprep.subr.mxu0 0.0
  %3439 = vmatpush2.msra.mxu0 0.0
  %3440 = vmatprep.subr.mxu0 0.0
  %3441 = vmatpush2.msra.mxu0 0.0
  %3442 = vmatprep.subr.mxu0 0.0
  %3443 = vmatpush2.msra.mxu0 0.0
  %3444 = vmatprep.subr.mxu0 0.0
  %3445 = vmatpush2.msra.mxu0 0.0
  %3446 = vmatprep.subr.mxu0 0.0
  %3447 = vmatpush2.msra.mxu0 0.0
  %3448 = vmatprep.subr.mxu0 0.0
  %3449 = vmatpush2.msra.mxu0 0.0
  %3450 = vmatprep.subr.mxu0 0.0
  %3451 = vmatpush2.msra.mxu0 0.0
  %3452 = vmatprep.mubr.f32.mxu0 0.0
  %3453 = vmatmul.mubr.f32.gmra.mxu0 %v3386
  %v3454 = vpop.f32.mrf.mxu0
  %v3455 = vadd.f32 0.0, %v3454
  %v3456 = vpop.f32.mrf.mxu0
  %v3457 = vadd.f32 0.0, %v3456
  %3458 = vdwg.mxu0
  %3459 = vmatprep.subr.mxu0 0.0
  %3460 = vmatpush1.msra.mxu0 0.0
  %3461 = vmatprep.subr.mxu0 0.0
  %3462 = vmatpush1.msra.mxu0 0.0
  %3463 = vmatprep.subr.mxu0 0.0
  %3464 = vmatpush1.msra.mxu0 0.0
  %3465 = vmatprep.subr.mxu0 0.0
  %3466 = vmatpush1.msra.mxu0 0.0
  %3467 = vmatprep.subr.mxu0 0.0
  %3468 = vmatpush1.msra.mxu0 0.0
  %3469 = vmatprep.subr.mxu0 0.0
  %3470 = vmatpush1.msra.mxu0 0.0
  %3471 = vmatprep.subr.mxu0 0.0
  %3472 = vmatpush1.msra.mxu0 0.0
  %3473 = vmatprep.subr.mxu0 0.0
  %3474 = vmatpush1.msra.mxu0 0.0
  %3475 = vmatprep.subr.mxu0 0.0
  %3476 = vmatpush1.msra.mxu0 0.0
  %3477 = vmatprep.subr.mxu0 0.0
  %3478 = vmatpush1.msra.mxu0 0.0
  %3479 = vmatprep.subr.mxu0 0.0
  %3480 = vmatpush1.msra.mxu0 0.0
  %3481 = vmatprep.subr.mxu0 0.0
  %3482 = vmatpush1.msra.mxu0 0.0
  %3483 = vmatprep.subr.mxu0 0.0
  %3484 = vmatpush1.msra.mxu0 0.0
  %3485 = vmatprep.subr.mxu0 0.0
  %3486 = vmatpush1.msra.mxu0 0.0
  %3487 = vmatprep.subr.mxu0 %v3089
  %3488 = vmatpush1.msra.mxu0 %v3088
  %3489 = vmatprep.subr.mxu0 %v3085
  %3490 = vmatpush1.msra.mxu0 %v3084
  %3491 = vmatprep.subr.mxu0 0.0
  %3492 = vmatpush2.msra.mxu0 0.0
  %3493 = vmatprep.subr.mxu0 0.0
  %3494 = vmatpush2.msra.mxu0 0.0
  %3495 = vmatprep.subr.mxu0 0.0
  %3496 = vmatpush2.msra.mxu0 0.0
  %3497 = vmatprep.subr.mxu0 0.0
  %3498 = vmatpush2.msra.mxu0 0.0
  %3499 = vmatprep.subr.mxu0 0.0
  %3500 = vmatpush2.msra.mxu0 0.0
  %3501 = vmatprep.subr.mxu0 0.0
  %3502 = vmatpush2.msra.mxu0 0.0
  %3503 = vmatprep.subr.mxu0 0.0
  %3504 = vmatpush2.msra.mxu0 0.0
  %3505 = vmatprep.subr.mxu0 0.0
  %3506 = vmatpush2.msra.mxu0 0.0
  %3507 = vmatprep.subr.mxu0 0.0
  %3508 = vmatpush2.msra.mxu0 0.0
  %3509 = vmatprep.subr.mxu0 0.0
  %3510 = vmatpush2.msra.mxu0 0.0
  %3511 = vmatprep.subr.mxu0 0.0
  %3512 = vmatpush2.msra.mxu0 0.0
  %3513 = vmatprep.subr.mxu0 0.0
  %3514 = vmatpush2.msra.mxu0 0.0
  %3515 = vmatprep.subr.mxu0 0.0
  %3516 = vmatpush2.msra.mxu0 0.0
  %3517 = vmatprep.subr.mxu0 0.0
  %3518 = vmatpush2.msra.mxu0 0.0
  %3519 = vmatprep.subr.mxu0 0.0
  %3520 = vmatpush2.msra.mxu0 0.0
  %3521 = vmatprep.subr.mxu0 0.0
  %3522 = vmatpush2.msra.mxu0 0.0
  %3523 = vmatprep.mubr.f32.mxu0 0.0
  %3524 = vmatmul.mubr.f32.gmra.mxu0 %v3386
  %v3525 = vpop.f32.mrf.mxu0
  %v3526 = vadd.f32 0.0, %v3525
  %v3527 = vpop.f32.mrf.mxu0
  %v3528 = vadd.f32 0.0, %v3527
  %3529 = vdwg.mxu0
  %v3530 = vadd.f32 %v3308, %v3455
  %v3531 = vadd.f32 %v3310, %v3457
  %v3532 = vadd.f32 %v3379, %v3526
  %v3533 = vadd.f32 %v3381, %v3528
  %s3534 = scalar_lea.vmem %s18, 24
  %v3535 = vld [vmem:[%s3534] sm:$0xff]
  %v3537 = vsel %vm466, %v3535, 0
  %3539 = vmatprep.subr.mxu0 0.0
  %3540 = vmatpush1.msra.mxu0 0.0
  %3541 = vmatprep.subr.mxu0 0.0
  %3542 = vmatpush1.msra.mxu0 0.0
  %3543 = vmatprep.subr.mxu0 0.0
  %3544 = vmatpush1.msra.mxu0 0.0
  %3545 = vmatprep.subr.mxu0 0.0
  %3546 = vmatpush1.msra.mxu0 0.0
  %3547 = vmatprep.subr.mxu0 0.0
  %3548 = vmatpush1.msra.mxu0 0.0
  %3549 = vmatprep.subr.mxu0 0.0
  %3550 = vmatpush1.msra.mxu0 0.0
  %3551 = vmatprep.subr.mxu0 0.0
  %3552 = vmatpush1.msra.mxu0 0.0
  %3553 = vmatprep.subr.mxu0 0.0
  %3554 = vmatpush1.msra.mxu0 0.0
  %3555 = vmatprep.subr.mxu0 0.0
  %3556 = vmatpush1.msra.mxu0 0.0
  %3557 = vmatprep.subr.mxu0 0.0
  %3558 = vmatpush1.msra.mxu0 0.0
  %3559 = vmatprep.subr.mxu0 0.0
  %3560 = vmatpush1.msra.mxu0 0.0
  %3561 = vmatprep.subr.mxu0 0.0
  %3562 = vmatpush1.msra.mxu0 0.0
  %3563 = vmatprep.subr.mxu0 0.0
  %3564 = vmatpush1.msra.mxu0 0.0
  %3565 = vmatprep.subr.mxu0 0.0
  %3566 = vmatpush1.msra.mxu0 0.0
  %3567 = vmatprep.subr.mxu0 %v3088
  %3568 = vmatpush1.msra.mxu0 %v3087
  %3569 = vmatprep.subr.mxu0 %v3084
  %3570 = vmatpush1.msra.mxu0 %v3083
  %3571 = vmatprep.subr.mxu0 0.0
  %3572 = vmatpush2.msra.mxu0 0.0
  %3573 = vmatprep.subr.mxu0 0.0
  %3574 = vmatpush2.msra.mxu0 0.0
  %3575 = vmatprep.subr.mxu0 0.0
  %3576 = vmatpush2.msra.mxu0 0.0
  %3577 = vmatprep.subr.mxu0 0.0
  %3578 = vmatpush2.msra.mxu0 0.0
  %3579 = vmatprep.subr.mxu0 0.0
  %3580 = vmatpush2.msra.mxu0 0.0
  %3581 = vmatprep.subr.mxu0 0.0
  %3582 = vmatpush2.msra.mxu0 0.0
  %3583 = vmatprep.subr.mxu0 0.0
  %3584 = vmatpush2.msra.mxu0 0.0
  %3585 = vmatprep.subr.mxu0 0.0
  %3586 = vmatpush2.msra.mxu0 0.0
  %3587 = vmatprep.subr.mxu0 0.0
  %3588 = vmatpush2.msra.mxu0 0.0
  %3589 = vmatprep.subr.mxu0 0.0
  %3590 = vmatpush2.msra.mxu0 0.0
  %3591 = vmatprep.subr.mxu0 0.0
  %3592 = vmatpush2.msra.mxu0 0.0
  %3593 = vmatprep.subr.mxu0 0.0
  %3594 = vmatpush2.msra.mxu0 0.0
  %3595 = vmatprep.subr.mxu0 0.0
  %3596 = vmatpush2.msra.mxu0 0.0
  %3597 = vmatprep.subr.mxu0 0.0
  %3598 = vmatpush2.msra.mxu0 0.0
  %3599 = vmatprep.subr.mxu0 0.0
  %3600 = vmatpush2.msra.mxu0 0.0
  %3601 = vmatprep.subr.mxu0 0.0
  %3602 = vmatpush2.msra.mxu0 0.0
  %3603 = vmatprep.mubr.f32.mxu0 0.0
  %3604 = vmatmul.mubr.f32.gmra.mxu0 %v3537
  %v3605 = vpop.f32.mrf.mxu0
  %v3606 = vadd.f32 0.0, %v3605
  %v3607 = vpop.f32.mrf.mxu0
  %v3608 = vadd.f32 0.0, %v3607
  %3609 = vdwg.mxu0
  %3610 = vmatprep.subr.mxu0 0.0
  %3611 = vmatpush1.msra.mxu0 0.0
  %3612 = vmatprep.subr.mxu0 0.0
  %3613 = vmatpush1.msra.mxu0 0.0
  %3614 = vmatprep.subr.mxu0 0.0
  %3615 = vmatpush1.msra.mxu0 0.0
  %3616 = vmatprep.subr.mxu0 0.0
  %3617 = vmatpush1.msra.mxu0 0.0
  %3618 = vmatprep.subr.mxu0 0.0
  %3619 = vmatpush1.msra.mxu0 0.0
  %3620 = vmatprep.subr.mxu0 0.0
  %3621 = vmatpush1.msra.mxu0 0.0
  %3622 = vmatprep.subr.mxu0 0.0
  %3623 = vmatpush1.msra.mxu0 0.0
  %3624 = vmatprep.subr.mxu0 0.0
  %3625 = vmatpush1.msra.mxu0 0.0
  %3626 = vmatprep.subr.mxu0 0.0
  %3627 = vmatpush1.msra.mxu0 0.0
  %3628 = vmatprep.subr.mxu0 0.0
  %3629 = vmatpush1.msra.mxu0 0.0
  %3630 = vmatprep.subr.mxu0 0.0
  %3631 = vmatpush1.msra.mxu0 0.0
  %3632 = vmatprep.subr.mxu0 0.0
  %3633 = vmatpush1.msra.mxu0 0.0
  %3634 = vmatprep.subr.mxu0 0.0
  %3635 = vmatpush1.msra.mxu0 0.0
  %3636 = vmatprep.subr.mxu0 0.0
  %3637 = vmatpush1.msra.mxu0 0.0
  %3638 = vmatprep.subr.mxu0 0.0
  %3639 = vmatpush1.msra.mxu0 %v3089
  %3640 = vmatprep.subr.mxu0 0.0
  %3641 = vmatpush1.msra.mxu0 %v3085
  %3642 = vmatprep.subr.mxu0 0.0
  %3643 = vmatpush2.msra.mxu0 0.0
  %3644 = vmatprep.subr.mxu0 0.0
  %3645 = vmatpush2.msra.mxu0 0.0
  %3646 = vmatprep.subr.mxu0 0.0
  %3647 = vmatpush2.msra.mxu0 0.0
  %3648 = vmatprep.subr.mxu0 0.0
  %3649 = vmatpush2.msra.mxu0 0.0
  %3650 = vmatprep.subr.mxu0 0.0
  %3651 = vmatpush2.msra.mxu0 0.0
  %3652 = vmatprep.subr.mxu0 0.0
  %3653 = vmatpush2.msra.mxu0 0.0
  %3654 = vmatprep.subr.mxu0 0.0
  %3655 = vmatpush2.msra.mxu0 0.0
  %3656 = vmatprep.subr.mxu0 0.0
  %3657 = vmatpush2.msra.mxu0 0.0
  %3658 = vmatprep.subr.mxu0 0.0
  %3659 = vmatpush2.msra.mxu0 0.0
  %3660 = vmatprep.subr.mxu0 0.0
  %3661 = vmatpush2.msra.mxu0 0.0
  %3662 = vmatprep.subr.mxu0 0.0
  %3663 = vmatpush2.msra.mxu0 0.0
  %3664 = vmatprep.subr.mxu0 0.0
  %3665 = vmatpush2.msra.mxu0 0.0
  %3666 = vmatprep.subr.mxu0 0.0
  %3667 = vmatpush2.msra.mxu0 0.0
  %3668 = vmatprep.subr.mxu0 0.0
  %3669 = vmatpush2.msra.mxu0 0.0
  %3670 = vmatprep.subr.mxu0 0.0
  %3671 = vmatpush2.msra.mxu0 0.0
  %3672 = vmatprep.subr.mxu0 0.0
  %3673 = vmatpush2.msra.mxu0 0.0
  %3674 = vmatprep.mubr.f32.mxu0 0.0
  %3675 = vmatmul.mubr.f32.gmra.mxu0 %v3537
  %v3676 = vpop.f32.mrf.mxu0
  %v3677 = vadd.f32 0.0, %v3676
  %v3678 = vpop.f32.mrf.mxu0
  %v3679 = vadd.f32 0.0, %v3678
  %3680 = vdwg.mxu0
  %v3681 = vadd.f32 %v3530, %v3606
  %v3682 = vadd.f32 %v3531, %v3608
  %v3683 = vadd.f32 %v3532, %v3677
  %v3684 = vadd.f32 %v3533, %v3679
  %s3685 = scalar_lea.vmem %s18, 32
  %v3686 = vld [vmem:[%s3685] sm:$0xff]
  %v3688 = vsel %vm466, %v3686, 0
  %3690 = vmatprep.subr.mxu0 0.0
  %3691 = vmatpush1.msra.mxu0 0.0
  %3692 = vmatprep.subr.mxu0 0.0
  %3693 = vmatpush1.msra.mxu0 0.0
  %3694 = vmatprep.subr.mxu0 0.0
  %3695 = vmatpush1.msra.mxu0 0.0
  %3696 = vmatprep.subr.mxu0 0.0
  %3697 = vmatpush1.msra.mxu0 0.0
  %3698 = vmatprep.subr.mxu0 0.0
  %3699 = vmatpush1.msra.mxu0 0.0
  %3700 = vmatprep.subr.mxu0 0.0
  %3701 = vmatpush1.msra.mxu0 0.0
  %3702 = vmatprep.subr.mxu0 0.0
  %3703 = vmatpush1.msra.mxu0 0.0
  %3704 = vmatprep.subr.mxu0 0.0
  %3705 = vmatpush1.msra.mxu0 0.0
  %3706 = vmatprep.subr.mxu0 0.0
  %3707 = vmatpush1.msra.mxu0 0.0
  %3708 = vmatprep.subr.mxu0 0.0
  %3709 = vmatpush1.msra.mxu0 0.0
  %3710 = vmatprep.subr.mxu0 0.0
  %3711 = vmatpush1.msra.mxu0 0.0
  %3712 = vmatprep.subr.mxu0 0.0
  %3713 = vmatpush1.msra.mxu0 0.0
  %3714 = vmatprep.subr.mxu0 0.0
  %3715 = vmatpush1.msra.mxu0 0.0
  %3716 = vmatprep.subr.mxu0 0.0
  %3717 = vmatpush1.msra.mxu0 0.0
  %3718 = vmatprep.subr.mxu0 %v3089
  %3719 = vmatpush1.msra.mxu0 %v3088
  %3720 = vmatprep.subr.mxu0 %v3085
  %3721 = vmatpush1.msra.mxu0 %v3084
  %3722 = vmatprep.subr.mxu0 0.0
  %3723 = vmatpush2.msra.mxu0 0.0
  %3724 = vmatprep.subr.mxu0 0.0
  %3725 = vmatpush2.msra.mxu0 0.0
  %3726 = vmatprep.subr.mxu0 0.0
  %3727 = vmatpush2.msra.mxu0 0.0
  %3728 = vmatprep.subr.mxu0 0.0
  %3729 = vmatpush2.msra.mxu0 0.0
  %3730 = vmatprep.subr.mxu0 0.0
  %3731 = vmatpush2.msra.mxu0 0.0
  %3732 = vmatprep.subr.mxu0 0.0
  %3733 = vmatpush2.msra.mxu0 0.0
  %3734 = vmatprep.subr.mxu0 0.0
  %3735 = vmatpush2.msra.mxu0 0.0
  %3736 = vmatprep.subr.mxu0 0.0
  %3737 = vmatpush2.msra.mxu0 0.0
  %3738 = vmatprep.subr.mxu0 0.0
  %3739 = vmatpush2.msra.mxu0 0.0
  %3740 = vmatprep.subr.mxu0 0.0
  %3741 = vmatpush2.msra.mxu0 0.0
  %3742 = vmatprep.subr.mxu0 0.0
  %3743 = vmatpush2.msra.mxu0 0.0
  %3744 = vmatprep.subr.mxu0 0.0
  %3745 = vmatpush2.msra.mxu0 0.0
  %3746 = vmatprep.subr.mxu0 0.0
  %3747 = vmatpush2.msra.mxu0 0.0
  %3748 = vmatprep.subr.mxu0 0.0
  %3749 = vmatpush2.msra.mxu0 0.0
  %3750 = vmatprep.subr.mxu0 0.0
  %3751 = vmatpush2.msra.mxu0 0.0
  %3752 = vmatprep.subr.mxu0 0.0
  %3753 = vmatpush2.msra.mxu0 0.0
  %3754 = vmatprep.mubr.f32.mxu0 0.0
  %3755 = vmatmul.mubr.f32.gmra.mxu0 %v3688
  %v3756 = vpop.f32.mrf.mxu0
  %v3757 = vadd.f32 0.0, %v3756
  %v3758 = vpop.f32.mrf.mxu0
  %v3759 = vadd.f32 0.0, %v3758
  %3760 = vdwg.mxu0
  %3761 = vmatprep.subr.mxu0 0.0
  %3762 = vmatpush1.msra.mxu0 0.0
  %3763 = vmatprep.subr.mxu0 0.0
  %3764 = vmatpush1.msra.mxu0 0.0
  %3765 = vmatprep.subr.mxu0 0.0
  %3766 = vmatpush1.msra.mxu0 0.0
  %3767 = vmatprep.subr.mxu0 0.0
  %3768 = vmatpush1.msra.mxu0 0.0
  %3769 = vmatprep.subr.mxu0 0.0
  %3770 = vmatpush1.msra.mxu0 0.0
  %3771 = vmatprep.subr.mxu0 0.0
  %3772 = vmatpush1.msra.mxu0 0.0
  %3773 = vmatprep.subr.mxu0 0.0
  %3774 = vmatpush1.msra.mxu0 0.0
  %3775 = vmatprep.subr.mxu0 0.0
  %3776 = vmatpush1.msra.mxu0 0.0
  %3777 = vmatprep.subr.mxu0 0.0
  %3778 = vmatpush1.msra.mxu0 0.0
  %3779 = vmatprep.subr.mxu0 0.0
  %3780 = vmatpush1.msra.mxu0 0.0
  %3781 = vmatprep.subr.mxu0 0.0
  %3782 = vmatpush1.msra.mxu0 0.0
  %3783 = vmatprep.subr.mxu0 0.0
  %3784 = vmatpush1.msra.mxu0 0.0
  %3785 = vmatprep.subr.mxu0 0.0
  %3786 = vmatpush1.msra.mxu0 0.0
  %3787 = vmatprep.subr.mxu0 0.0
  %3788 = vmatpush1.msra.mxu0 0.0
  %3789 = vmatprep.subr.mxu0 0.0
  %3790 = vmatpush1.msra.mxu0 0.0
  %3791 = vmatprep.subr.mxu0 0.0
  %3792 = vmatpush1.msra.mxu0 0.0
  %3793 = vmatprep.subr.mxu0 0.0
  %3794 = vmatpush2.msra.mxu0 0.0
  %3795 = vmatprep.subr.mxu0 0.0
  %3796 = vmatpush2.msra.mxu0 0.0
  %3797 = vmatprep.subr.mxu0 0.0
  %3798 = vmatpush2.msra.mxu0 0.0
  %3799 = vmatprep.subr.mxu0 0.0
  %3800 = vmatpush2.msra.mxu0 0.0
  %3801 = vmatprep.subr.mxu0 0.0
  %3802 = vmatpush2.msra.mxu0 0.0
  %3803 = vmatprep.subr.mxu0 0.0
  %3804 = vmatpush2.msra.mxu0 0.0
  %3805 = vmatprep.subr.mxu0 0.0
  %3806 = vmatpush2.msra.mxu0 0.0
  %3807 = vmatprep.subr.mxu0 0.0
  %3808 = vmatpush2.msra.mxu0 0.0
  %3809 = vmatprep.subr.mxu0 0.0
  %3810 = vmatpush2.msra.mxu0 0.0
  %3811 = vmatprep.subr.mxu0 0.0
  %3812 = vmatpush2.msra.mxu0 0.0
  %3813 = vmatprep.subr.mxu0 0.0
  %3814 = vmatpush2.msra.mxu0 0.0
  %3815 = vmatprep.subr.mxu0 0.0
  %3816 = vmatpush2.msra.mxu0 0.0
  %3817 = vmatprep.subr.mxu0 0.0
  %3818 = vmatpush2.msra.mxu0 0.0
  %3819 = vmatprep.subr.mxu0 0.0
  %3820 = vmatpush2.msra.mxu0 0.0
  %3821 = vmatprep.subr.mxu0 0.0
  %3822 = vmatpush2.msra.mxu0 0.0
  %3823 = vmatprep.subr.mxu0 0.0
  %3824 = vmatpush2.msra.mxu0 0.0
  %3825 = vmatprep.mubr.f32.mxu0 0.0
  %3826 = vmatmul.mubr.f32.gmra.mxu0 %v3688
  %v3827 = vpop.f32.mrf.mxu0
  %v3828 = vadd.f32 0.0, %v3827
  %v3829 = vpop.f32.mrf.mxu0
  %v3830 = vadd.f32 0.0, %v3829
  %3831 = vdwg.mxu0
  %v3832 = vadd.f32 %v3681, %v3757
  %v3833 = vadd.f32 %v3682, %v3759
  %v3834 = vadd.f32 %v3683, %v3828
  %v3835 = vadd.f32 %v3684, %v3830
  %v3836 = vld [vmem:[%s19] sm:$0xff]
  %3838 = vset.pattern.permute.xlu0 0
  %3839 = vperm.xlu0 %3838, %v3836
  %v3840 = vpop.permute.xlu0 %3839
  %v3842 = vadd.f32 %v3832, %v3840
  %v3843 = vadd.f32 %v3833, %v3840
  %v3844 = vadd.f32 %v3834, %v3840
  %v3845 = vadd.f32 %v3835, %v3840
  %v3846 = vmax.f32 %v3842, 0.0
  %v3847 = vmax.f32 %v3843, 0.0
  %v3848 = vmax.f32 %v3844, 0.0
  %v3849 = vmax.f32 %v3845, 0.0
  %v3850 = vld [vmem:[%s20] sm:$0xff]
  %v3851 = vld [vmem:[%s20 + $0x8] sm:$0xff]
  %v3852 = vld [vmem:[%s20 + $0x10] sm:$0xff]
  %v3853 = vld [vmem:[%s20 + $0x18] sm:$0xff]
  %v3854 = vld [vmem:[%s21] sm:$0xff]
  %v3855 = vld [vmem:[%s21 + $0x8] sm:$0xff]
  %v3856 = vld [vmem:[%s21 + $0x10] sm:$0xff]
  %v3857 = vld [vmem:[%s21 + $0x18] sm:$0xff]
  %v3859 = vsel %vm926, %v3854, 0
  %v3862 = vsel %vm926, %v3855, 0
  %v3865 = vsel %vm926, %v3856, 0
  %v3868 = vsel %vm926, %v3857, 0
  %3870 = vmatprep.subr.mxu0 0.0
  %3871 = vmatpush1.msra.mxu0 0.0
  %3872 = vmatprep.subr.mxu0 0.0
  %3873 = vmatpush1.msra.mxu0 0.0
  %3874 = vmatprep.subr.mxu0 0.0
  %3875 = vmatpush1.msra.mxu0 0.0
  %3876 = vmatprep.subr.mxu0 0.0
  %3877 = vmatpush1.msra.mxu0 0.0
  %3878 = vmatprep.subr.mxu0 0.0
  %3879 = vmatpush1.msra.mxu0 0.0
  %3880 = vmatprep.subr.mxu0 0.0
  %3881 = vmatpush1.msra.mxu0 0.0
  %3882 = vmatprep.subr.mxu0 0.0
  %3883 = vmatpush1.msra.mxu0 0.0
  %3884 = vmatprep.subr.mxu0 0.0
  %3885 = vmatpush1.msra.mxu0 0.0
  %3886 = vmatprep.subr.mxu0 0.0
  %3887 = vmatpush1.msra.mxu0 0.0
  %3888 = vmatprep.subr.mxu0 0.0
  %3889 = vmatpush1.msra.mxu0 0.0
  %3890 = vmatprep.subr.mxu0 0.0
  %3891 = vmatpush1.msra.mxu0 0.0
  %3892 = vmatprep.subr.mxu0 0.0
  %3893 = vmatpush1.msra.mxu0 0.0
  %3894 = vmatprep.subr.mxu0 0.0
  %3895 = vmatpush1.msra.mxu0 0.0
  %3896 = vmatprep.subr.mxu0 0.0
  %3897 = vmatpush1.msra.mxu0 0.0
  %3898 = vmatprep.subr.mxu0 0.0
  %3899 = vmatpush1.msra.mxu0 0.0
  %3900 = vmatprep.subr.mxu0 %v3847
  %3901 = vmatpush1.msra.mxu0 %v3846
  %3902 = vmatprep.subr.mxu0 0.0
  %3903 = vmatpush2.msra.mxu0 0.0
  %3904 = vmatprep.subr.mxu0 0.0
  %3905 = vmatpush2.msra.mxu0 0.0
  %3906 = vmatprep.subr.mxu0 0.0
  %3907 = vmatpush2.msra.mxu0 0.0
  %3908 = vmatprep.subr.mxu0 0.0
  %3909 = vmatpush2.msra.mxu0 0.0
  %3910 = vmatprep.subr.mxu0 0.0
  %3911 = vmatpush2.msra.mxu0 0.0
  %3912 = vmatprep.subr.mxu0 0.0
  %3913 = vmatpush2.msra.mxu0 0.0
  %3914 = vmatprep.subr.mxu0 0.0
  %3915 = vmatpush2.msra.mxu0 0.0
  %3916 = vmatprep.subr.mxu0 0.0
  %3917 = vmatpush2.msra.mxu0 0.0
  %3918 = vmatprep.subr.mxu0 0.0
  %3919 = vmatpush2.msra.mxu0 0.0
  %3920 = vmatprep.subr.mxu0 0.0
  %3921 = vmatpush2.msra.mxu0 0.0
  %3922 = vmatprep.subr.mxu0 0.0
  %3923 = vmatpush2.msra.mxu0 0.0
  %3924 = vmatprep.subr.mxu0 0.0
  %3925 = vmatpush2.msra.mxu0 0.0
  %3926 = vmatprep.subr.mxu0 0.0
  %3927 = vmatpush2.msra.mxu0 0.0
  %3928 = vmatprep.subr.mxu0 0.0
  %3929 = vmatpush2.msra.mxu0 0.0
  %3930 = vmatprep.subr.mxu0 0.0
  %3931 = vmatpush2.msra.mxu0 0.0
  %3932 = vmatprep.subr.mxu0 0.0
  %3933 = vmatpush2.msra.mxu0 0.0
  %3934 = vmatprep.mubr.f32.mxu0 0.0
  %3935 = vmatmul.mubr.f32.gmra.mxu0 %v3859
  %v3936 = vpop.f32.mrf.mxu0
  %v3937 = vadd.f32 0.0, %v3936
  %v3938 = vpop.f32.mrf.mxu0
  %v3939 = vadd.f32 0.0, %v3938
  %3940 = vmatprep.mubr.f32.mxu0 0.0
  %3941 = vmatmul.mubr.f32.gmra.mxu0 %v3862
  %v3942 = vpop.f32.mrf.mxu0
  %v3943 = vadd.f32 0.0, %v3942
  %v3944 = vpop.f32.mrf.mxu0
  %v3945 = vadd.f32 0.0, %v3944
  %3946 = vmatprep.mubr.f32.mxu0 0.0
  %3947 = vmatmul.mubr.f32.gmra.mxu0 %v3865
  %v3948 = vpop.f32.mrf.mxu0
  %v3949 = vadd.f32 0.0, %v3948
  %v3950 = vpop.f32.mrf.mxu0
  %v3951 = vadd.f32 0.0, %v3950
  %3952 = vmatprep.mubr.f32.mxu0 0.0
  %3953 = vmatmul.mubr.f32.gmra.mxu0 %v3868
  %v3954 = vpop.f32.mrf.mxu0
  %v3955 = vadd.f32 0.0, %v3954
  %v3956 = vpop.f32.mrf.mxu0
  %v3957 = vadd.f32 0.0, %v3956
  %3958 = vdwg.mxu0
  %3959 = vmatprep.subr.mxu0 0.0
  %3960 = vmatpush1.msra.mxu0 0.0
  %3961 = vmatprep.subr.mxu0 0.0
  %3962 = vmatpush1.msra.mxu0 0.0
  %3963 = vmatprep.subr.mxu0 0.0
  %3964 = vmatpush1.msra.mxu0 0.0
  %3965 = vmatprep.subr.mxu0 0.0
  %3966 = vmatpush1.msra.mxu0 0.0
  %3967 = vmatprep.subr.mxu0 0.0
  %3968 = vmatpush1.msra.mxu0 0.0
  %3969 = vmatprep.subr.mxu0 0.0
  %3970 = vmatpush1.msra.mxu0 0.0
  %3971 = vmatprep.subr.mxu0 0.0
  %3972 = vmatpush1.msra.mxu0 0.0
  %3973 = vmatprep.subr.mxu0 0.0
  %3974 = vmatpush1.msra.mxu0 0.0
  %3975 = vmatprep.subr.mxu0 0.0
  %3976 = vmatpush1.msra.mxu0 0.0
  %3977 = vmatprep.subr.mxu0 0.0
  %3978 = vmatpush1.msra.mxu0 0.0
  %3979 = vmatprep.subr.mxu0 0.0
  %3980 = vmatpush1.msra.mxu0 0.0
  %3981 = vmatprep.subr.mxu0 0.0
  %3982 = vmatpush1.msra.mxu0 0.0
  %3983 = vmatprep.subr.mxu0 0.0
  %3984 = vmatpush1.msra.mxu0 0.0
  %3985 = vmatprep.subr.mxu0 0.0
  %3986 = vmatpush1.msra.mxu0 0.0
  %3987 = vmatprep.subr.mxu0 0.0
  %3988 = vmatpush1.msra.mxu0 0.0
  %3989 = vmatprep.subr.mxu0 %v3849
  %3990 = vmatpush1.msra.mxu0 %v3848
  %3991 = vmatprep.subr.mxu0 0.0
  %3992 = vmatpush2.msra.mxu0 0.0
  %3993 = vmatprep.subr.mxu0 0.0
  %3994 = vmatpush2.msra.mxu0 0.0
  %3995 = vmatprep.subr.mxu0 0.0
  %3996 = vmatpush2.msra.mxu0 0.0
  %3997 = vmatprep.subr.mxu0 0.0
  %3998 = vmatpush2.msra.mxu0 0.0
  %3999 = vmatprep.subr.mxu0 0.0
  %4000 = vmatpush2.msra.mxu0 0.0
  %4001 = vmatprep.subr.mxu0 0.0
  %4002 = vmatpush2.msra.mxu0 0.0
  %4003 = vmatprep.subr.mxu0 0.0
  %4004 = vmatpush2.msra.mxu0 0.0
  %4005 = vmatprep.subr.mxu0 0.0
  %4006 = vmatpush2.msra.mxu0 0.0
  %4007 = vmatprep.subr.mxu0 0.0
  %4008 = vmatpush2.msra.mxu0 0.0
  %4009 = vmatprep.subr.mxu0 0.0
  %4010 = vmatpush2.msra.mxu0 0.0
  %4011 = vmatprep.subr.mxu0 0.0
  %4012 = vmatpush2.msra.mxu0 0.0
  %4013 = vmatprep.subr.mxu0 0.0
  %4014 = vmatpush2.msra.mxu0 0.0
  %4015 = vmatprep.subr.mxu0 0.0
  %4016 = vmatpush2.msra.mxu0 0.0
  %4017 = vmatprep.subr.mxu0 0.0
  %4018 = vmatpush2.msra.mxu0 0.0
  %4019 = vmatprep.subr.mxu0 0.0
  %4020 = vmatpush2.msra.mxu0 0.0
  %4021 = vmatprep.subr.mxu0 0.0
  %4022 = vmatpush2.msra.mxu0 0.0
  %4023 = vmatprep.mubr.f32.mxu0 0.0
  %4024 = vmatmul.mubr.f32.gmra.mxu0 %v3859
  %v4025 = vpop.f32.mrf.mxu0
  %v4026 = vadd.f32 0.0, %v4025
  %v4027 = vpop.f32.mrf.mxu0
  %v4028 = vadd.f32 0.0, %v4027
  %4029 = vmatprep.mubr.f32.mxu0 0.0
  %4030 = vmatmul.mubr.f32.gmra.mxu0 %v3862
  %v4031 = vpop.f32.mrf.mxu0
  %v4032 = vadd.f32 0.0, %v4031
  %v4033 = vpop.f32.mrf.mxu0
  %v4034 = vadd.f32 0.0, %v4033
  %4035 = vmatprep.mubr.f32.mxu0 0.0
  %4036 = vmatmul.mubr.f32.gmra.mxu0 %v3865
  %v4037 = vpop.f32.mrf.mxu0
  %v4038 = vadd.f32 0.0, %v4037
  %v4039 = vpop.f32.mrf.mxu0
  %v4040 = vadd.f32 0.0, %v4039
  %4041 = vmatprep.mubr.f32.mxu0 0.0
  %4042 = vmatmul.mubr.f32.gmra.mxu0 %v3868
  %v4043 = vpop.f32.mrf.mxu0
  %v4044 = vadd.f32 0.0, %v4043
  %v4045 = vpop.f32.mrf.mxu0
  %v4046 = vadd.f32 0.0, %v4045
  %4047 = vdwg.mxu0
  %v4049 = vsel %vm926, %v3850, 0
  %v4052 = vsel %vm926, %v3851, 0
  %v4055 = vsel %vm926, %v3852, 0
  %v4058 = vsel %vm926, %v3853, 0
  %4060 = vmatprep.subr.mxu0 0.0
  %4061 = vmatpush1.msra.mxu0 0.0
  %4062 = vmatprep.subr.mxu0 0.0
  %4063 = vmatpush1.msra.mxu0 0.0
  %4064 = vmatprep.subr.mxu0 0.0
  %4065 = vmatpush1.msra.mxu0 0.0
  %4066 = vmatprep.subr.mxu0 0.0
  %4067 = vmatpush1.msra.mxu0 0.0
  %4068 = vmatprep.subr.mxu0 0.0
  %4069 = vmatpush1.msra.mxu0 0.0
  %4070 = vmatprep.subr.mxu0 0.0
  %4071 = vmatpush1.msra.mxu0 0.0
  %4072 = vmatprep.subr.mxu0 0.0
  %4073 = vmatpush1.msra.mxu0 0.0
  %4074 = vmatprep.subr.mxu0 0.0
  %4075 = vmatpush1.msra.mxu0 0.0
  %4076 = vmatprep.subr.mxu0 0.0
  %4077 = vmatpush1.msra.mxu0 0.0
  %4078 = vmatprep.subr.mxu0 0.0
  %4079 = vmatpush1.msra.mxu0 0.0
  %4080 = vmatprep.subr.mxu0 0.0
  %4081 = vmatpush1.msra.mxu0 0.0
  %4082 = vmatprep.subr.mxu0 0.0
  %4083 = vmatpush1.msra.mxu0 0.0
  %4084 = vmatprep.subr.mxu0 0.0
  %4085 = vmatpush1.msra.mxu0 0.0
  %4086 = vmatprep.subr.mxu0 0.0
  %4087 = vmatpush1.msra.mxu0 0.0
  %4088 = vmatprep.subr.mxu0 0.0
  %4089 = vmatpush1.msra.mxu0 0.0
  %4090 = vmatprep.subr.mxu0 %v2735
  %4091 = vmatpush1.msra.mxu0 %v2734
  %4092 = vmatprep.subr.mxu0 0.0
  %4093 = vmatpush2.msra.mxu0 0.0
  %4094 = vmatprep.subr.mxu0 0.0
  %4095 = vmatpush2.msra.mxu0 0.0
  %4096 = vmatprep.subr.mxu0 0.0
  %4097 = vmatpush2.msra.mxu0 0.0
  %4098 = vmatprep.subr.mxu0 0.0
  %4099 = vmatpush2.msra.mxu0 0.0
  %4100 = vmatprep.subr.mxu0 0.0
  %4101 = vmatpush2.msra.mxu0 0.0
  %4102 = vmatprep.subr.mxu0 0.0
  %4103 = vmatpush2.msra.mxu0 0.0
  %4104 = vmatprep.subr.mxu0 0.0
  %4105 = vmatpush2.msra.mxu0 0.0
  %4106 = vmatprep.subr.mxu0 0.0
  %4107 = vmatpush2.msra.mxu0 0.0
  %4108 = vmatprep.subr.mxu0 0.0
  %4109 = vmatpush2.msra.mxu0 0.0
  %4110 = vmatprep.subr.mxu0 0.0
  %4111 = vmatpush2.msra.mxu0 0.0
  %4112 = vmatprep.subr.mxu0 0.0
  %4113 = vmatpush2.msra.mxu0 0.0
  %4114 = vmatprep.subr.mxu0 0.0
  %4115 = vmatpush2.msra.mxu0 0.0
  %4116 = vmatprep.subr.mxu0 0.0
  %4117 = vmatpush2.msra.mxu0 0.0
  %4118 = vmatprep.subr.mxu0 0.0
  %4119 = vmatpush2.msra.mxu0 0.0
  %4120 = vmatprep.subr.mxu0 0.0
  %4121 = vmatpush2.msra.mxu0 0.0
  %4122 = vmatprep.subr.mxu0 0.0
  %4123 = vmatpush2.msra.mxu0 0.0
  %4124 = vmatprep.mubr.f32.mxu0 0.0
  %4125 = vmatmul.mubr.f32.gmra.mxu0 %v4049
  %v4126 = vpop.f32.mrf.mxu0
  %v4127 = vadd.f32 %v3937, %v4126
  %v4128 = vpop.f32.mrf.mxu0
  %v4129 = vadd.f32 %v3939, %v4128
  %4130 = vmatprep.mubr.f32.mxu0 0.0
  %4131 = vmatmul.mubr.f32.gmra.mxu0 %v4052
  %v4132 = vpop.f32.mrf.mxu0
  %v4133 = vadd.f32 %v3943, %v4132
  %v4134 = vpop.f32.mrf.mxu0
  %v4135 = vadd.f32 %v3945, %v4134
  %4136 = vmatprep.mubr.f32.mxu0 0.0
  %4137 = vmatmul.mubr.f32.gmra.mxu0 %v4055
  %v4138 = vpop.f32.mrf.mxu0
  %v4139 = vadd.f32 %v3949, %v4138
  %v4140 = vpop.f32.mrf.mxu0
  %v4141 = vadd.f32 %v3951, %v4140
  %4142 = vmatprep.mubr.f32.mxu0 0.0
  %4143 = vmatmul.mubr.f32.gmra.mxu0 %v4058
  %v4144 = vpop.f32.mrf.mxu0
  %v4145 = vadd.f32 %v3955, %v4144
  %v4146 = vpop.f32.mrf.mxu0
  %v4147 = vadd.f32 %v3957, %v4146
  %4148 = vdwg.mxu0
  %4149 = vmatprep.subr.mxu0 0.0
  %4150 = vmatpush1.msra.mxu0 0.0
  %4151 = vmatprep.subr.mxu0 0.0
  %4152 = vmatpush1.msra.mxu0 0.0
  %4153 = vmatprep.subr.mxu0 0.0
  %4154 = vmatpush1.msra.mxu0 0.0
  %4155 = vmatprep.subr.mxu0 0.0
  %4156 = vmatpush1.msra.mxu0 0.0
  %4157 = vmatprep.subr.mxu0 0.0
  %4158 = vmatpush1.msra.mxu0 0.0
  %4159 = vmatprep.subr.mxu0 0.0
  %4160 = vmatpush1.msra.mxu0 0.0
  %4161 = vmatprep.subr.mxu0 0.0
  %4162 = vmatpush1.msra.mxu0 0.0
  %4163 = vmatprep.subr.mxu0 0.0
  %4164 = vmatpush1.msra.mxu0 0.0
  %4165 = vmatprep.subr.mxu0 0.0
  %4166 = vmatpush1.msra.mxu0 0.0
  %4167 = vmatprep.subr.mxu0 0.0
  %4168 = vmatpush1.msra.mxu0 0.0
  %4169 = vmatprep.subr.mxu0 0.0
  %4170 = vmatpush1.msra.mxu0 0.0
  %4171 = vmatprep.subr.mxu0 0.0
  %4172 = vmatpush1.msra.mxu0 0.0
  %4173 = vmatprep.subr.mxu0 0.0
  %4174 = vmatpush1.msra.mxu0 0.0
  %4175 = vmatprep.subr.mxu0 0.0
  %4176 = vmatpush1.msra.mxu0 0.0
  %4177 = vmatprep.subr.mxu0 0.0
  %4178 = vmatpush1.msra.mxu0 0.0
  %4179 = vmatprep.subr.mxu0 %v2737
  %4180 = vmatpush1.msra.mxu0 %v2736
  %4181 = vmatprep.subr.mxu0 0.0
  %4182 = vmatpush2.msra.mxu0 0.0
  %4183 = vmatprep.subr.mxu0 0.0
  %4184 = vmatpush2.msra.mxu0 0.0
  %4185 = vmatprep.subr.mxu0 0.0
  %4186 = vmatpush2.msra.mxu0 0.0
  %4187 = vmatprep.subr.mxu0 0.0
  %4188 = vmatpush2.msra.mxu0 0.0
  %4189 = vmatprep.subr.mxu0 0.0
  %4190 = vmatpush2.msra.mxu0 0.0
  %4191 = vmatprep.subr.mxu0 0.0
  %4192 = vmatpush2.msra.mxu0 0.0
  %4193 = vmatprep.subr.mxu0 0.0
  %4194 = vmatpush2.msra.mxu0 0.0
  %4195 = vmatprep.subr.mxu0 0.0
  %4196 = vmatpush2.msra.mxu0 0.0
  %4197 = vmatprep.subr.mxu0 0.0
  %4198 = vmatpush2.msra.mxu0 0.0
  %4199 = vmatprep.subr.mxu0 0.0
  %4200 = vmatpush2.msra.mxu0 0.0
  %4201 = vmatprep.subr.mxu0 0.0
  %4202 = vmatpush2.msra.mxu0 0.0
  %4203 = vmatprep.subr.mxu0 0.0
  %4204 = vmatpush2.msra.mxu0 0.0
  %4205 = vmatprep.subr.mxu0 0.0
  %4206 = vmatpush2.msra.mxu0 0.0
  %4207 = vmatprep.subr.mxu0 0.0
  %4208 = vmatpush2.msra.mxu0 0.0
  %4209 = vmatprep.subr.mxu0 0.0
  %4210 = vmatpush2.msra.mxu0 0.0
  %4211 = vmatprep.subr.mxu0 0.0
  %4212 = vmatpush2.msra.mxu0 0.0
  %4213 = vmatprep.mubr.f32.mxu0 0.0
  %4214 = vmatmul.mubr.f32.gmra.mxu0 %v4049
  %v4215 = vpop.f32.mrf.mxu0
  %v4216 = vadd.f32 %v4026, %v4215
  %v4217 = vpop.f32.mrf.mxu0
  %v4218 = vadd.f32 %v4028, %v4217
  %4219 = vmatprep.mubr.f32.mxu0 0.0
  %4220 = vmatmul.mubr.f32.gmra.mxu0 %v4052
  %v4221 = vpop.f32.mrf.mxu0
  %v4222 = vadd.f32 %v4032, %v4221
  %v4223 = vpop.f32.mrf.mxu0
  %v4224 = vadd.f32 %v4034, %v4223
  %4225 = vmatprep.mubr.f32.mxu0 0.0
  %4226 = vmatmul.mubr.f32.gmra.mxu0 %v4055
  %v4227 = vpop.f32.mrf.mxu0
  %v4228 = vadd.f32 %v4038, %v4227
  %v4229 = vpop.f32.mrf.mxu0
  %v4230 = vadd.f32 %v4040, %v4229
  %4231 = vmatprep.mubr.f32.mxu0 0.0
  %4232 = vmatmul.mubr.f32.gmra.mxu0 %v4058
  %v4233 = vpop.f32.mrf.mxu0
  %v4234 = vadd.f32 %v4044, %v4233
  %v4235 = vpop.f32.mrf.mxu0
  %v4236 = vadd.f32 %v4046, %v4235
  %4237 = vdwg.mxu0
  %v4238 = vld [vmem:[%s22] sm:$0xff]
  %v4239 = vld [vmem:[%s22 + $0x8] sm:$0xff]
  %v4240 = vld [vmem:[%s22 + $0x10] sm:$0xff]
  %v4241 = vld [vmem:[%s22 + $0x18] sm:$0xff]
  %4243 = vset.pattern.permute.xlu0 0
  %4244 = vperm.xlu0 %4243, %v4238
  %v4245 = vpop.permute.xlu0 %4244
  %4248 = vset.pattern.permute.xlu0 0
  %4249 = vperm.xlu0 %4248, %v4239
  %v4250 = vpop.permute.xlu0 %4249
  %4253 = vset.pattern.permute.xlu0 0
  %4254 = vperm.xlu0 %4253, %v4240
  %v4255 = vpop.permute.xlu0 %4254
  %4258 = vset.pattern.permute.xlu0 0
  %4259 = vperm.xlu0 %4258, %v4241
  %v4260 = vpop.permute.xlu0 %4259
  %v4262 = vadd.f32 %v4127, %v4245
  %v4263 = vadd.f32 %v4129, %v4245
  %v4264 = vadd.f32 %v4216, %v4245
  %v4265 = vadd.f32 %v4218, %v4245
  %v4266 = vadd.f32 %v4133, %v4250
  %v4267 = vadd.f32 %v4135, %v4250
  %v4268 = vadd.f32 %v4222, %v4250
  %v4269 = vadd.f32 %v4224, %v4250
  %v4270 = vadd.f32 %v4139, %v4255
  %v4271 = vadd.f32 %v4141, %v4255
  %v4272 = vadd.f32 %v4228, %v4255
  %v4273 = vadd.f32 %v4230, %v4255
  %v4274 = vadd.f32 %v4145, %v4260
  %v4275 = vadd.f32 %v4147, %v4260
  %v4276 = vadd.f32 %v4234, %v4260
  %v4277 = vadd.f32 %v4236, %v4260
  %v4278 = vmax.f32 %v4262, 0.0
  %v4279 = vmax.f32 %v4263, 0.0
  %v4280 = vmax.f32 %v4264, 0.0
  %v4281 = vmax.f32 %v4265, 0.0
  %v4282 = vmax.f32 %v4266, 0.0
  %v4283 = vmax.f32 %v4267, 0.0
  %v4284 = vmax.f32 %v4268, 0.0
  %v4285 = vmax.f32 %v4269, 0.0
  %v4286 = vmax.f32 %v4270, 0.0
  %v4287 = vmax.f32 %v4271, 0.0
  %v4288 = vmax.f32 %v4272, 0.0
  %v4289 = vmax.f32 %v4273, 0.0
  %v4290 = vmax.f32 %v4274, 0.0
  %v4291 = vmax.f32 %v4275, 0.0
  %v4292 = vmax.f32 %v4276, 0.0
  %v4293 = vmax.f32 %v4277, 0.0
  %4294 = vst.msk [vmem:[%s23] sm:$0xff] %vm179, %v4278
  %4295 = vst.msk [vmem:[%s23 + $0x8] sm:$0xff] %vm179, %v4282
  %4296 = vst.msk [vmem:[%s23 + $0x10] sm:$0xff] %vm179, %v4286
  %4297 = vst.msk [vmem:[%s23 + $0x18] sm:$0xff] %vm179, %v4290
  %4302 = vrot.lane.b32.xlu0 %v4278, 64
  %v4303 = vpop.permute.xlu0 %4302
  %4304 = vrot.lane.b32.xlu0 %v4282, 64
  %v4305 = vpop.permute.xlu0 %4304
  %4306 = vrot.lane.b32.xlu0 %v4286, 64
  %v4307 = vpop.permute.xlu0 %4306
  %4308 = vrot.lane.b32.xlu0 %v4290, 64
  %v4309 = vpop.permute.xlu0 %4308
  %s4314 = scalar_lea.vmem %s23, 32
  %4315 = vst.msk [vmem:[%s4314] sm:$0xff] %vm179, %v4303
  %4316 = vst.msk [vmem:[%s4314 + $0x8] sm:$0xff] %vm179, %v4305
  %4317 = vst.msk [vmem:[%s4314 + $0x10] sm:$0xff] %vm179, %v4307
  %4318 = vst.msk [vmem:[%s4314 + $0x18] sm:$0xff] %vm179, %v4309
  %s4319 = scalar_lea.vmem %s23, 64
  %4320 = vst.msk [vmem:[%s4319] sm:$0xff] %vm179, %v4279
  %4321 = vst.msk [vmem:[%s4319 + $0x8] sm:$0xff] %vm179, %v4283
  %4322 = vst.msk [vmem:[%s4319 + $0x10] sm:$0xff] %vm179, %v4287
  %4323 = vst.msk [vmem:[%s4319 + $0x18] sm:$0xff] %vm179, %v4291
  %4328 = vrot.lane.b32.xlu0 %v4279, 64
  %v4329 = vpop.permute.xlu0 %4328
  %4330 = vrot.lane.b32.xlu0 %v4283, 64
  %v4331 = vpop.permute.xlu0 %4330
  %4332 = vrot.lane.b32.xlu0 %v4287, 64
  %v4333 = vpop.permute.xlu0 %4332
  %4334 = vrot.lane.b32.xlu0 %v4291, 64
  %v4335 = vpop.permute.xlu0 %4334
  %s4340 = scalar_lea.vmem %s23, 96
  %4341 = vst.msk [vmem:[%s4340] sm:$0xff] %vm179, %v4329
  %4342 = vst.msk [vmem:[%s4340 + $0x8] sm:$0xff] %vm179, %v4331
  %4343 = vst.msk [vmem:[%s4340 + $0x10] sm:$0xff] %vm179, %v4333
  %4344 = vst.msk [vmem:[%s4340 + $0x18] sm:$0xff] %vm179, %v4335
  %s4345 = scalar_lea.vmem %s23, 128
  %4346 = vst.msk [vmem:[%s4345] sm:$0xff] %vm179, %v4280
  %4347 = vst.msk [vmem:[%s4345 + $0x8] sm:$0xff] %vm179, %v4284
  %4348 = vst.msk [vmem:[%s4345 + $0x10] sm:$0xff] %vm179, %v4288
  %4349 = vst.msk [vmem:[%s4345 + $0x18] sm:$0xff] %vm179, %v4292
  %4354 = vrot.lane.b32.xlu0 %v4280, 64
  %v4355 = vpop.permute.xlu0 %4354
  %4356 = vrot.lane.b32.xlu0 %v4284, 64
  %v4357 = vpop.permute.xlu0 %4356
  %4358 = vrot.lane.b32.xlu0 %v4288, 64
  %v4359 = vpop.permute.xlu0 %4358
  %4360 = vrot.lane.b32.xlu0 %v4292, 64
  %v4361 = vpop.permute.xlu0 %4360
  %s4366 = scalar_lea.vmem %s23, 160
  %4367 = vst.msk [vmem:[%s4366] sm:$0xff] %vm179, %v4355
  %4368 = vst.msk [vmem:[%s4366 + $0x8] sm:$0xff] %vm179, %v4357
  %4369 = vst.msk [vmem:[%s4366 + $0x10] sm:$0xff] %vm179, %v4359
  %4370 = vst.msk [vmem:[%s4366 + $0x18] sm:$0xff] %vm179, %v4361
  %s4371 = scalar_lea.vmem %s23, 192
  %4372 = vst.msk [vmem:[%s4371] sm:$0xff] %vm179, %v4281
  %4373 = vst.msk [vmem:[%s4371 + $0x8] sm:$0xff] %vm179, %v4285
  %4374 = vst.msk [vmem:[%s4371 + $0x10] sm:$0xff] %vm179, %v4289
  %4375 = vst.msk [vmem:[%s4371 + $0x18] sm:$0xff] %vm179, %v4293
  %4380 = vrot.lane.b32.xlu0 %v4281, 64
  %v4381 = vpop.permute.xlu0 %4380
  %4382 = vrot.lane.b32.xlu0 %v4285, 64
  %v4383 = vpop.permute.xlu0 %4382
  %4384 = vrot.lane.b32.xlu0 %v4289, 64
  %v4385 = vpop.permute.xlu0 %4384
  %4386 = vrot.lane.b32.xlu0 %v4293, 64
  %v4387 = vpop.permute.xlu0 %4386
  %s4392 = scalar_lea.vmem %s23, 224
  %4393 = vst.msk [vmem:[%s4392] sm:$0xff] %vm179, %v4381
  %4394 = vst.msk [vmem:[%s4392 + $0x8] sm:$0xff] %vm179, %v4383
  %4395 = vst.msk [vmem:[%s4392 + $0x10] sm:$0xff] %vm179, %v4385
  %4396 = vst.msk [vmem:[%s4392 + $0x18] sm:$0xff] %vm179, %v4387
  %v4397 = vadd.f32 %v4278, %v4279
  %v4398 = vadd.f32 %v4397, %v4280
  %v4399 = vadd.f32 %v4398, %v4281
  %4400 = vadd.xlane.f32.xlu0 %v4399
  %v4401 = vpop.xlane.xlu0 %4400
  %v4402 = vadd.f32 %v4282, %v4283
  %v4403 = vadd.f32 %v4402, %v4284
  %v4404 = vadd.f32 %v4403, %v4285
  %4405 = vadd.xlane.f32.xlu0 %v4404
  %v4406 = vpop.xlane.xlu0 %4405
  %v4407 = vadd.f32 %v4286, %v4287
  %v4408 = vadd.f32 %v4407, %v4288
  %v4409 = vadd.f32 %v4408, %v4289
  %4410 = vadd.xlane.f32.xlu0 %v4409
  %v4411 = vpop.xlane.xlu0 %4410
  %v4412 = vadd.f32 %v4290, %v4291
  %v4413 = vadd.f32 %v4412, %v4292
  %v4414 = vadd.f32 %v4413, %v4293
  %4415 = vadd.xlane.f32.xlu0 %v4414
  %v4416 = vpop.xlane.xlu0 %4415
  %vm4417 = vcmask 7168
  %4418 = vst.msk [vmem:[%s24] sm:$0xff] %vm4417, %v4401
  %4419 = vst.msk [vmem:[%s24 + $0x8] sm:$0xff] %vm4417, %v4406
  %4420 = vst.msk [vmem:[%s24 + $0x10] sm:$0xff] %vm4417, %v4411
  %4421 = vst.msk [vmem:[%s24 + $0x18] sm:$0xff] %vm4417, %v4416
  // Predicated region
  $region94: #{dense_tblock_forward.2} parent=0 // pred_check
    _
  $region95: #{dense_tblock_forward.2} parent=0 // pred_check_branch
    %4423 = sbr.rel (0) target = $region97
  $region96: #{dense_tblock_forward.2} parent=0 // pred_region
    _
  $region97: #{dense_tblock_forward.2} parent=0 // pred_fallthru
    _
  // Predicated region
  $region98: #{dense_tblock_forward.2} parent=0 // pred_check
    _
  $region99: #{dense_tblock_forward.2} parent=0 // pred_check_branch
    %4425 = sbr.rel (0) target = $region101
  $region100: #{dense_tblock_forward.2} parent=0 // pred_region
    _
  $region101: #{dense_tblock_forward.2} parent=0 // pred_fallthru
    _
  // Predicated region
  $region102: #{dense_tblock_forward.2} parent=0 // pred_check
    _
  $region103: #{dense_tblock_forward.2} parent=0 // pred_check_branch
    %4427 = sbr.rel (0) target = $region105
  $region104: #{dense_tblock_forward.2} parent=0 // pred_region
    _
  $region105: #{dense_tblock_forward.2} parent=0 // pred_fallthru
    _
  // Predicated region
  $region106: #{dense_tblock_forward.2} parent=0 // pred_check
    _
  $region107: #{dense_tblock_forward.2} parent=0 // pred_check_branch
    %4429 = sbr.rel (0) target = $region109
  $region108: #{dense_tblock_forward.2} parent=0 // pred_region
    _
  $region109: #{dense_tblock_forward.2} parent=0 // pred_fallthru
    _

</llo_original>
